<compile_context>
chip_gen: v6e
topology: v6e:2x2x1
jax: 0.10.0
libtpu: 0.0.40
codegen_flags: <defaults>
</compile_context>

<pallas_src>
import math
import functools

import jax
import jax.numpy as jnp
from jax.experimental import pallas as pl
from jax.experimental.pallas import tpu as pltpu


def _round_up(a, b):
    return (a + b - 1) // b * b


def _vmem_capacity_bytes():
    try:
        return int(pltpu.get_tpu_info().vmem_capacity_bytes)
    except Exception:
        return 64 << 20  # conservative (v7x-sized) fallback; safe on every generation


def _choose_block_rows(n_rows, requested):
    """Clamp to the row count (multiple of 8) and aim for >= 2 row tiles so the
    'parallel' grid axis can shard across both TensorCores on v7x."""
    n8 = _round_up(max(n_rows, 1), 8)
    br = min(max(requested, 8), n8)
    if n8 > 8 and br >= n8:                    # a single tile would cover all rows
        br = _round_up((n_rows + 1) // 2, 8)   # split into (at least) two tiles
    return max(8, _round_up(br, 8))


def _qsae_kernel(k_count, n_valid, block_rows, n_search_iters,
                 x_ref, wenc_ref, benc_ref, wdec_ref,
                 xrec_ref, scores_ref, act_ref, qerr_ref, rerr_ref):
    i = pl.program_id(0)

    x = x_ref[...]                                           # (tm, d_model)
    xf = x.astype(jnp.float32)

    # ---------------- encode: sigmoid(x @ Wenc^T + b) ----------------
    pre = jnp.dot(x.astype(wenc_ref.dtype), wenc_ref[...],
                  preferred_element_type=jnp.float32)        # (tm, d_hidden) f32
    scores = jax.nn.sigmoid(pre + benc_ref[...])             # f32, in [0, 1]

    # ---- exact 'lower'-interpolation quantile threshold per row ----
    # torch.quantile(..., interpolation='lower') picks the k_count-th smallest
    # element per row (k_count = floor(q*(n-1)) + 1). sigmoid(x) >= 0, and for
    # non-negative IEEE f32 the value order equals the int32 bit-pattern order,
    # so a fixed bit-space binary search finds the exact order statistic with
    # O(n) work per step (no (tm, n, n) pairwise intermediate).
    # Initial bracket width = 0x3F800000 - (-1) = 0x3F800001 < 2^30, so 30 passes
    # shrink it to exactly 1 (w_{t+1}-1 <= (w_t-1)/2).
    bits = pltpu.bitcast(scores, jnp.int32)                  # (tm, d_hidden)
    tm = bits.shape[0]
    lo = jnp.full((tm, 1), -1, dtype=jnp.int32)              # invariant: count(<= lo) <  k
    hi = jnp.full((tm, 1), 0x3F800000, dtype=jnp.int32)      # bits(1.0f): count(<= hi) >= k
    for _ in range(n_search_iters):
        mid = lo + ((hi - lo) >> 1)
        cnt = jnp.sum((bits <= mid).astype(jnp.int32), axis=-1, keepdims=True)
        go_hi = cnt >= k_count
        hi = jnp.where(go_hi, mid, hi)
        lo = jnp.where(go_hi, lo, mid)
    # hi is now exactly the bit pattern of the per-row threshold score, so
    # (bits >= hi) == (scores >= threshold).
    act = (bits >= hi).astype(jnp.float32)                   # binary activations (0/1)

    scores_ref[...] = scores.astype(scores_ref.dtype)
    act_ref[...] = act.astype(act_ref.dtype)

    # ---------- decode (straight-through): xrec = act @ Wdec^T ----------
    xrec = jnp.dot(act.astype(wdec_ref.dtype), wdec_ref[...],
                   preferred_element_type=jnp.float32)       # (tm, d_model) f32
    xrec_ref[...] = xrec.astype(xrec_ref.dtype)

    # ---- per-tile, lane-preserving partial error sums ----
    # Reduce only over rows (sublane axis); keep the feature axis lane-dense.
    # Rows past n_valid are padding and are masked out.
    row = i * block_rows + jax.lax.broadcasted_iota(jnp.int32, (tm, 1), 0)
    valid = row < n_valid                                    # (tm, 1) bool
    qd = scores - act
    rd = xrec - xf
    q_vec = jnp.sum(jnp.where(valid, qd * qd, 0.0), axis=0, keepdims=True)  # (1, d_hidden)
    r_vec = jnp.sum(jnp.where(valid, rd * rd, 0.0), axis=0, keepdims=True)  # (1, d_model)
    qerr_ref[...] = q_vec.reshape(1, 1, q_vec.shape[-1])
    rerr_ref[...] = r_vec.reshape(1, 1, r_vec.shape[-1])


def qsae_prepare(wenc, benc, wdec, compute_dtype=jnp.bfloat16):
    """Hoisted, call-once weight preparation: transpose to (in, out) and cast the
    MXU operands. compute_dtype=jnp.bfloat16 gives ~3-6x MXU throughput and halves
    weight DMA/VMEM; pass jnp.float32 for bit-faithful fp32 module semantics."""
    d_hidden, d_model = wenc.shape
    assert benc.shape == (d_hidden,)
    assert wdec.shape == (d_model, d_hidden)
    wenc_t = jnp.transpose(wenc).astype(compute_dtype)       # (d_model, d_hidden)
    wdec_t = jnp.transpose(wdec).astype(compute_dtype)       # (d_hidden, d_model)
    benc_2d = benc.reshape(1, d_hidden).astype(jnp.float32)
    return wenc_t, benc_2d, wdec_t


def qsae_apply(x, params, topk, *, block_rows=None):
    """x: (..., d_model). params = qsae_prepare(...). Returns
    (x_reconstructed, scores, activations, quantization_error, reconstruction_error)."""
    wenc_t, benc_2d, wdec_t = params
    d_model, d_hidden = wenc_t.shape
    assert x.shape[-1] == d_model
    lead = x.shape[:-1]
    x2 = x.reshape(-1, d_model)
    N = x2.shape[0]

    # torch.quantile(scores, 1 - topk/d_model, interpolation='lower'):
    #   index into ascending sort = floor(q*(n-1)); threshold = (idx+1)-th smallest.
    q = 1.0 - topk / d_model
    idx = int(math.floor(q * (d_hidden - 1)))
    k_count = max(1, min(idx + 1, d_hidden))

    if block_rows is None:
        # Larger M-tiles amortize per-grid-step overhead when the VMEM budget allows.
        per_row_bytes = 4 * (2 * d_model + 4 * d_hidden)
        block_rows = 256 if per_row_bytes * 256 <= (16 << 20) else 128
    block_rows = _choose_block_rows(N, block_rows)

    n_pad = _round_up(N, block_rows)
    grid = n_pad // block_rows
    x_p = x2 if n_pad == N else jnp.pad(x2, ((0, n_pad - N), (0, 0)))

    # ---- VMEM budget: always pass a limit (v5e default is only 16 MiB), capped
    #      at the physical per-core capacity (v7x = 64 MiB). ----
    w_item = jnp.dtype(wenc_t.dtype).itemsize
    x_item = max(jnp.dtype(x_p.dtype).itemsize, 4)
    est = (2 * 2 * block_rows * d_model * x_item          # x in + xrec out (double-buffered)
           + 2 * 2 * block_rows * d_hidden * 4            # scores + act outputs (double-buffered)
           + 2 * d_model * d_hidden * w_item              # enc + dec weights (single-buffered)
           + 2 * d_hidden * 4                             # bias
           + 2 * 2 * (d_hidden + d_model) * 4             # partial-sum outputs
           + block_rows * (6 * d_hidden + 2 * d_model) * 4  # in-kernel f32 intermediates
           + (4 << 20))                                   # slack
    cap = _vmem_capacity_bytes() - (2 << 20)              # leave headroom below physical
    vmem_limit = int(min(max(est, 32 << 20), cap))

    kernel = functools.partial(_qsae_kernel, k_count, N, block_rows, 30)

    out_shapes = (
        jax.ShapeDtypeStruct((n_pad, d_model), jnp.float32),   # x_reconstructed
        jax.ShapeDtypeStruct((n_pad, d_hidden), jnp.float32),  # scores
        jax.ShapeDtypeStruct((n_pad, d_hidden), jnp.float32),  # activations
        jax.ShapeDtypeStruct((grid, 1, d_hidden), jnp.float32),  # per-tile sum (scores-act)^2
        jax.ShapeDtypeStruct((grid, 1, d_model), jnp.float32),   # per-tile sum (xrec-x)^2
    )
    out_specs = (
        pl.BlockSpec((block_rows, d_model), lambda i: (i, 0)),
        pl.BlockSpec((block_rows, d_hidden), lambda i: (i, 0)),
        pl.BlockSpec((block_rows, d_hidden), lambda i: (i, 0)),
        pl.BlockSpec((1, 1, d_hidden), lambda i: (i, 0, 0)),
        pl.BlockSpec((1, 1, d_model), lambda i: (i, 0, 0)),
    )

    def _const_spec(shape, single_buffer):
        idx_map = lambda i: (0,) * len(shape)
        if single_buffer:
            # Grid-invariant block: one VMEM buffer is enough (DMA'd once).
            return pl.BlockSpec(shape, idx_map, pipeline_mode=pl.Buffered(1))
        return pl.BlockSpec(shape, idx_map)

    def _build(single_buffer_weights):
        in_specs = [
            pl.BlockSpec((block_rows, d_model), lambda i: (i, 0)),
            _const_spec((d_model, d_hidden), single_buffer_weights),
            _const_spec((1, d_hidden), single_buffer_weights),
            _const_spec((d_hidden, d_model), single_buffer_weights),
        ]
        return pl.pallas_call(
            kernel,
            out_shape=out_shapes,
            grid=(grid,),
            in_specs=in_specs,
            out_specs=out_specs,
            compiler_params=pltpu.CompilerParams(
                dimension_semantics=("parallel",),   # per-tile partials -> no serial dependency
                vmem_limit_bytes=vmem_limit,
            ),
        )

    try:
        xrec, scores, acts, qerr_p, rerr_p = _build(True)(x_p, wenc_t, benc_2d, wdec_t)
    except Exception:
        # Fallback if pl.Buffered(1) single-buffering is unsupported in this jax build.
        xrec, scores, acts, qerr_p, rerr_p = _build(False)(x_p, wenc_t, benc_2d, wdec_t)

    if n_pad != N:
        xrec, scores, acts = xrec[:N], scores[:N], acts[:N]
    quantization_error = jnp.sum(qerr_p) / (N * d_hidden)
    reconstruction_error = jnp.sum(rerr_p) / (N * d_model)

    xrec = xrec.reshape(lead + (d_model,))
    scores = scores.reshape(lead + (d_hidden,))
    acts = acts.reshape(lead + (d_hidden,))
    return xrec, scores, acts, quantization_error, reconstruction_error


def qsae_forward(x, wenc, benc, wdec, topk, *, block_rows=None, compute_dtype=jnp.bfloat16):
    """Convenience wrapper: prepare + apply (prefer calling qsae_prepare once and
    reusing the params across forward calls)."""
    params = qsae_prepare(wenc, benc, wdec, compute_dtype)
    return qsae_apply(x, params, topk, block_rows=block_rows)


if __name__ == "__main__":
    # cfg mirroring the torch module's __init__ (enc_dtype='fp32')
    cfg = dict(sparse_dims=128, llm_dims=64, enc_dtype="fp32", seed=0, topk=8)
    d_hidden, d_model, topk = cfg["sparse_dims"], cfg["llm_dims"], cfg["topk"]
    B, S = 2, 8                                    # small batch x seq of tokens

    key = jax.random.PRNGKey(0)
    k_we, k_be, k_wd, k_x = jax.random.split(key, 4)

    # kaiming_uniform_(a=0): bound = sqrt(6 / fan_in); linear bias: U(-1/sqrt(fan_in), ..)
    b_enc_w = math.sqrt(6.0 / d_model)
    wenc = jax.random.uniform(k_we, (d_hidden, d_model), jnp.float32, -b_enc_w, b_enc_w)
    benc = jax.random.uniform(k_be, (d_hidden,), jnp.float32,
                              -1.0 / math.sqrt(d_model), 1.0 / math.sqrt(d_model))
    b_dec_w = math.sqrt(6.0 / d_hidden)
    wdec = jax.random.uniform(k_wd, (d_model, d_hidden), jnp.float32, -b_dec_w, b_dec_w)

    x = jax.random.normal(k_x, (B, S, d_model), jnp.float32)

    params = qsae_prepare(wenc, benc, wdec)          # bf16 MXU operands by default
    xrec, scores, acts, qerr, rerr = qsae_apply(x, params, topk)
    jax.block_until_ready((xrec, scores, acts, qerr, rerr))

    # ---- lightweight correctness checks against pure JAX ----
    x2d = x.reshape(B * S, d_model)
    s2d = scores.reshape(B * S, d_hidden)
    a2d = acts.reshape(B * S, d_hidden)
    r2d = xrec.reshape(B * S, d_model)

    # encode (bf16 MXU operands, f32 accumulation) vs fp32 reference
    scores_f32 = jax.nn.sigmoid(x2d @ wenc.T + benc)
    assert float(jnp.max(jnp.abs(s2d - scores_f32))) < 3e-2

    # quantile / threshold / activation logic is exact on the kernel's own scores
    idx = int(math.floor((1.0 - topk / d_model) * (d_hidden - 1)))
    thr = jnp.sort(s2d, axis=-1)[:, idx:idx + 1]
    acts_ref = (s2d >= thr).astype(jnp.float32)
    assert jnp.array_equal(a2d, acts_ref)

    # decode (act is exactly representable in bf16; weights bf16-quantized)
    wdec_q = wdec.astype(jnp.bfloat16).astype(jnp.float32)
    xrec_ref = a2d @ wdec_q.T
    assert jnp.allclose(r2d, xrec_ref, atol=2e-3, rtol=1e-3)

    # error scalars (computed from the kernel's own scores/act/xrec)
    assert jnp.allclose(qerr, jnp.mean((s2d - a2d) ** 2), atol=1e-5, rtol=1e-3)
    assert jnp.allclose(rerr, jnp.mean((r2d - x2d) ** 2), atol=1e-5, rtol=1e-3)

    print("KERNEL_OK")
</pallas_src>

<mosaic_0001>
module attributes {stable_mosaic.version = 11 : i64} {
  func.func @_qsae_kernel(%arg0: i32, %arg1: memref<8x64xf32, #tpu.memory_space<vmem>>, %arg2: memref<64x128xbf16, #tpu.memory_space<vmem>>, %arg3: memref<1x128xf32, #tpu.memory_space<vmem>>, %arg4: memref<128x64xbf16, #tpu.memory_space<vmem>>, %arg5: memref<8x64xf32, #tpu.memory_space<vmem>>, %arg6: memref<8x128xf32, #tpu.memory_space<vmem>>, %arg7: memref<8x128xf32, #tpu.memory_space<vmem>>, %arg8: memref<1x1x128xf32, #tpu.memory_space<vmem>>, %arg9: memref<1x1x64xf32, #tpu.memory_space<vmem>>) attributes {dimension_semantics = [#tpu.dimension_semantics<parallel>], iteration_bounds = array<i64: 2>, scalar_prefetch = 0 : i64, scratch_operands = 0 : i64, tpu.core_type = #tpu.core_type<tc>, window_params = [{transform_indices = @transform_0, window_bounds = array<i64: 8, 64>}, {pipeline_mode = #tpu.pipeline_mode<synchronous>, transform_indices = @transform_1, window_bounds = array<i64: 64, 128>}, {pipeline_mode = #tpu.pipeline_mode<synchronous>, transform_indices = @transform_2, window_bounds = array<i64: 1, 128>}, {pipeline_mode = #tpu.pipeline_mode<synchronous>, transform_indices = @transform_3, window_bounds = array<i64: 128, 64>}, {transform_indices = @transform_4, window_bounds = array<i64: 8, 64>}, {transform_indices = @transform_5, window_bounds = array<i64: 8, 128>}, {transform_indices = @transform_6, window_bounds = array<i64: 8, 128>}, {transform_indices = @transform_7, window_bounds = array<i64: 1, 1, 128>}, {transform_indices = @transform_8, window_bounds = array<i64: 1, 1, 64>}]} {
    %c0 = arith.constant 0 : index
    %c0_0 = arith.constant 0 : index
    %0 = vector.load %arg1[%c0, %c0_0] : memref<8x64xf32, #tpu.memory_space<vmem>>, vector<8x64xf32>
    %1 = arith.truncf %0 : vector<8x64xf32> to vector<8x64xbf16>
    %c0_1 = arith.constant 0 : index
    %c0_2 = arith.constant 0 : index
    %2 = vector.load %arg2[%c0_1, %c0_2] : memref<64x128xbf16, #tpu.memory_space<vmem>>, vector<64x128xbf16>
    %cst = arith.constant dense<0.000000e+00> : vector<8x128xf32>
    %3 = tpu.matmul %1, %2, %cst {dimension_numbers = #tpu.dot_dimension_numbers<[1], [0], [0], [1], [0, 0, 1, 1], [], []>} : vector<8x64xbf16>, vector<64x128xbf16>, vector<8x128xf32> -> vector<8x128xf32>
    %c0_3 = arith.constant 0 : index
    %c0_4 = arith.constant 0 : index
    %4 = vector.load %arg3[%c0_3, %c0_4] : memref<1x128xf32, #tpu.memory_space<vmem>>, vector<1x128xf32>
    %5 = vector.broadcast %4 : vector<1x128xf32> to vector<8x128xf32>
    %6 = arith.addf %3, %5 : vector<8x128xf32>
    %7 = arith.negf %6 : vector<8x128xf32>
    %8 = math.exp %7 : vector<8x128xf32>
    %cst_5 = arith.constant 1.000000e+00 : f32
    %9 = vector.broadcast %cst_5 : f32 to vector<8x128xf32>
    %10 = arith.addf %9, %8 : vector<8x128xf32>
    %11 = arith.divf %9, %10 : vector<8x128xf32>
    %12 = tpu.bitcast %11 : vector<8x128xf32> -> vector<8x128xi32>
    %c-1_i32 = arith.constant -1 : i32
    %13 = vector.broadcast %c-1_i32 : i32 to vector<8x1xi32>
    %c1065353216_i32 = arith.constant 1065353216 : i32
    %14 = vector.broadcast %c1065353216_i32 : i32 to vector<8x1xi32>
    %15 = arith.subi %14, %13 : vector<8x1xi32>
    %c1_i32 = arith.constant 1 : i32
    %16 = vector.broadcast %c1_i32 : i32 to vector<8x1xi32>
    %17 = arith.shrsi %15, %16 : vector<8x1xi32>
    %18 = arith.addi %13, %17 : vector<8x1xi32>
    %19 = vector.broadcast %18 : vector<8x1xi32> to vector<8x128xi32>
    %20 = arith.cmpi sle, %12, %19 : vector<8x128xi32>
    %21 = arith.extui %20 : vector<8x128xi1> to vector<8x128xi32>
    %cst_6 = arith.constant dense<0> : vector<8xi32>
    %22 = vector.multi_reduction <add>, %21, %cst_6 [1] : vector<8x128xi32> to vector<8xi32>
    %23 = vector.shape_cast %22 : vector<8xi32> to vector<8x1xi32>
    %c112_i32 = arith.constant 112 : i32
    %24 = vector.broadcast %c112_i32 : i32 to vector<8x1xi32>
    %25 = arith.cmpi sge, %23, %24 : vector<8x1xi32>
    %26 = arith.select %25, %18, %14 : vector<8x1xi1>, vector<8x1xi32>
    %27 = arith.select %25, %13, %18 : vector<8x1xi1>, vector<8x1xi32>
    %28 = arith.subi %26, %27 : vector<8x1xi32>
    %c1_i32_7 = arith.constant 1 : i32
    %29 = vector.broadcast %c1_i32_7 : i32 to vector<8x1xi32>
    %30 = arith.shrsi %28, %29 : vector<8x1xi32>
    %31 = arith.addi %27, %30 : vector<8x1xi32>
    %32 = vector.broadcast %31 : vector<8x1xi32> to vector<8x128xi32>
    %33 = arith.cmpi sle, %12, %32 : vector<8x128xi32>
    %34 = arith.extui %33 : vector<8x128xi1> to vector<8x128xi32>
    %cst_8 = arith.constant dense<0> : vector<8xi32>
    %35 = vector.multi_reduction <add>, %34, %cst_8 [1] : vector<8x128xi32> to vector<8xi32>
    %36 = vector.shape_cast %35 : vector<8xi32> to vector<8x1xi32>
    %c112_i32_9 = arith.constant 112 : i32
    %37 = vector.broadcast %c112_i32_9 : i32 to vector<8x1xi32>
    %38 = arith.cmpi sge, %36, %37 : vector<8x1xi32>
    %39 = arith.select %38, %31, %26 : vector<8x1xi1>, vector<8x1xi32>
    %40 = arith.select %38, %27, %31 : vector<8x1xi1>, vector<8x1xi32>
    %41 = arith.subi %39, %40 : vector<8x1xi32>
    %c1_i32_10 = arith.constant 1 : i32
    %42 = vector.broadcast %c1_i32_10 : i32 to vector<8x1xi32>
    %43 = arith.shrsi %41, %42 : vector<8x1xi32>
    %44 = arith.addi %40, %43 : vector<8x1xi32>
    %45 = vector.broadcast %44 : vector<8x1xi32> to vector<8x128xi32>
    %46 = arith.cmpi sle, %12, %45 : vector<8x128xi32>
    %47 = arith.extui %46 : vector<8x128xi1> to vector<8x128xi32>
    %cst_11 = arith.constant dense<0> : vector<8xi32>
    %48 = vector.multi_reduction <add>, %47, %cst_11 [1] : vector<8x128xi32> to vector<8xi32>
    %49 = vector.shape_cast %48 : vector<8xi32> to vector<8x1xi32>
    %c112_i32_12 = arith.constant 112 : i32
    %50 = vector.broadcast %c112_i32_12 : i32 to vector<8x1xi32>
    %51 = arith.cmpi sge, %49, %50 : vector<8x1xi32>
    %52 = arith.select %51, %44, %39 : vector<8x1xi1>, vector<8x1xi32>
    %53 = arith.select %51, %40, %44 : vector<8x1xi1>, vector<8x1xi32>
    %54 = arith.subi %52, %53 : vector<8x1xi32>
    %c1_i32_13 = arith.constant 1 : i32
    %55 = vector.broadcast %c1_i32_13 : i32 to vector<8x1xi32>
    %56 = arith.shrsi %54, %55 : vector<8x1xi32>
    %57 = arith.addi %53, %56 : vector<8x1xi32>
    %58 = vector.broadcast %57 : vector<8x1xi32> to vector<8x128xi32>
    %59 = arith.cmpi sle, %12, %58 : vector<8x128xi32>
    %60 = arith.extui %59 : vector<8x128xi1> to vector<8x128xi32>
    %cst_14 = arith.constant dense<0> : vector<8xi32>
    %61 = vector.multi_reduction <add>, %60, %cst_14 [1] : vector<8x128xi32> to vector<8xi32>
    %62 = vector.shape_cast %61 : vector<8xi32> to vector<8x1xi32>
    %c112_i32_15 = arith.constant 112 : i32
    %63 = vector.broadcast %c112_i32_15 : i32 to vector<8x1xi32>
    %64 = arith.cmpi sge, %62, %63 : vector<8x1xi32>
    %65 = arith.select %64, %57, %52 : vector<8x1xi1>, vector<8x1xi32>
    %66 = arith.select %64, %53, %57 : vector<8x1xi1>, vector<8x1xi32>
    %67 = arith.subi %65, %66 : vector<8x1xi32>
    %c1_i32_16 = arith.constant 1 : i32
    %68 = vector.broadcast %c1_i32_16 : i32 to vector<8x1xi32>
    %69 = arith.shrsi %67, %68 : vector<8x1xi32>
    %70 = arith.addi %66, %69 : vector<8x1xi32>
    %71 = vector.broadcast %70 : vector<8x1xi32> to vector<8x128xi32>
    %72 = arith.cmpi sle, %12, %71 : vector<8x128xi32>
    %73 = arith.extui %72 : vector<8x128xi1> to vector<8x128xi32>
    %cst_17 = arith.constant dense<0> : vector<8xi32>
    %74 = vector.multi_reduction <add>, %73, %cst_17 [1] : vector<8x128xi32> to vector<8xi32>
    %75 = vector.shape_cast %74 : vector<8xi32> to vector<8x1xi32>
    %c112_i32_18 = arith.constant 112 : i32
    %76 = vector.broadcast %c112_i32_18 : i32 to vector<8x1xi32>
    %77 = arith.cmpi sge, %75, %76 : vector<8x1xi32>
    %78 = arith.select %77, %70, %65 : vector<8x1xi1>, vector<8x1xi32>
    %79 = arith.select %77, %66, %70 : vector<8x1xi1>, vector<8x1xi32>
    %80 = arith.subi %78, %79 : vector<8x1xi32>
    %c1_i32_19 = arith.constant 1 : i32
    %81 = vector.broadcast %c1_i32_19 : i32 to vector<8x1xi32>
    %82 = arith.shrsi %80, %81 : vector<8x1xi32>
    %83 = arith.addi %79, %82 : vector<8x1xi32>
    %84 = vector.broadcast %83 : vector<8x1xi32> to vector<8x128xi32>
    %85 = arith.cmpi sle, %12, %84 : vector<8x128xi32>
    %86 = arith.extui %85 : vector<8x128xi1> to vector<8x128xi32>
    %cst_20 = arith.constant dense<0> : vector<8xi32>
    %87 = vector.multi_reduction <add>, %86, %cst_20 [1] : vector<8x128xi32> to vector<8xi32>
    %88 = vector.shape_cast %87 : vector<8xi32> to vector<8x1xi32>
    %c112_i32_21 = arith.constant 112 : i32
    %89 = vector.broadcast %c112_i32_21 : i32 to vector<8x1xi32>
    %90 = arith.cmpi sge, %88, %89 : vector<8x1xi32>
    %91 = arith.select %90, %83, %78 : vector<8x1xi1>, vector<8x1xi32>
    %92 = arith.select %90, %79, %83 : vector<8x1xi1>, vector<8x1xi32>
    %93 = arith.subi %91, %92 : vector<8x1xi32>
    %c1_i32_22 = arith.constant 1 : i32
    %94 = vector.broadcast %c1_i32_22 : i32 to vector<8x1xi32>
    %95 = arith.shrsi %93, %94 : vector<8x1xi32>
    %96 = arith.addi %92, %95 : vector<8x1xi32>
    %97 = vector.broadcast %96 : vector<8x1xi32> to vector<8x128xi32>
    %98 = arith.cmpi sle, %12, %97 : vector<8x128xi32>
    %99 = arith.extui %98 : vector<8x128xi1> to vector<8x128xi32>
    %cst_23 = arith.constant dense<0> : vector<8xi32>
    %100 = vector.multi_reduction <add>, %99, %cst_23 [1] : vector<8x128xi32> to vector<8xi32>
    %101 = vector.shape_cast %100 : vector<8xi32> to vector<8x1xi32>
    %c112_i32_24 = arith.constant 112 : i32
    %102 = vector.broadcast %c112_i32_24 : i32 to vector<8x1xi32>
    %103 = arith.cmpi sge, %101, %102 : vector<8x1xi32>
    %104 = arith.select %103, %96, %91 : vector<8x1xi1>, vector<8x1xi32>
    %105 = arith.select %103, %92, %96 : vector<8x1xi1>, vector<8x1xi32>
    %106 = arith.subi %104, %105 : vector<8x1xi32>
    %c1_i32_25 = arith.constant 1 : i32
    %107 = vector.broadcast %c1_i32_25 : i32 to vector<8x1xi32>
    %108 = arith.shrsi %106, %107 : vector<8x1xi32>
    %109 = arith.addi %105, %108 : vector<8x1xi32>
    %110 = vector.broadcast %109 : vector<8x1xi32> to vector<8x128xi32>
    %111 = arith.cmpi sle, %12, %110 : vector<8x128xi32>
    %112 = arith.extui %111 : vector<8x128xi1> to vector<8x128xi32>
    %cst_26 = arith.constant dense<0> : vector<8xi32>
    %113 = vector.multi_reduction <add>, %112, %cst_26 [1] : vector<8x128xi32> to vector<8xi32>
    %114 = vector.shape_cast %113 : vector<8xi32> to vector<8x1xi32>
    %c112_i32_27 = arith.constant 112 : i32
    %115 = vector.broadcast %c112_i32_27 : i32 to vector<8x1xi32>
    %116 = arith.cmpi sge, %114, %115 : vector<8x1xi32>
    %117 = arith.select %116, %109, %104 : vector<8x1xi1>, vector<8x1xi32>
    %118 = arith.select %116, %105, %109 : vector<8x1xi1>, vector<8x1xi32>
    %119 = arith.subi %117, %118 : vector<8x1xi32>
    %c1_i32_28 = arith.constant 1 : i32
    %120 = vector.broadcast %c1_i32_28 : i32 to vector<8x1xi32>
    %121 = arith.shrsi %119, %120 : vector<8x1xi32>
    %122 = arith.addi %118, %121 : vector<8x1xi32>
    %123 = vector.broadcast %122 : vector<8x1xi32> to vector<8x128xi32>
    %124 = arith.cmpi sle, %12, %123 : vector<8x128xi32>
    %125 = arith.extui %124 : vector<8x128xi1> to vector<8x128xi32>
    %cst_29 = arith.constant dense<0> : vector<8xi32>
    %126 = vector.multi_reduction <add>, %125, %cst_29 [1] : vector<8x128xi32> to vector<8xi32>
    %127 = vector.shape_cast %126 : vector<8xi32> to vector<8x1xi32>
    %c112_i32_30 = arith.constant 112 : i32
    %128 = vector.broadcast %c112_i32_30 : i32 to vector<8x1xi32>
    %129 = arith.cmpi sge, %127, %128 : vector<8x1xi32>
    %130 = arith.select %129, %122, %117 : vector<8x1xi1>, vector<8x1xi32>
    %131 = arith.select %129, %118, %122 : vector<8x1xi1>, vector<8x1xi32>
    %132 = arith.subi %130, %131 : vector<8x1xi32>
    %c1_i32_31 = arith.constant 1 : i32
    %133 = vector.broadcast %c1_i32_31 : i32 to vector<8x1xi32>
    %134 = arith.shrsi %132, %133 : vector<8x1xi32>
    %135 = arith.addi %131, %134 : vector<8x1xi32>
    %136 = vector.broadcast %135 : vector<8x1xi32> to vector<8x128xi32>
    %137 = arith.cmpi sle, %12, %136 : vector<8x128xi32>
    %138 = arith.extui %137 : vector<8x128xi1> to vector<8x128xi32>
    %cst_32 = arith.constant dense<0> : vector<8xi32>
    %139 = vector.multi_reduction <add>, %138, %cst_32 [1] : vector<8x128xi32> to vector<8xi32>
    %140 = vector.shape_cast %139 : vector<8xi32> to vector<8x1xi32>
    %c112_i32_33 = arith.constant 112 : i32
    %141 = vector.broadcast %c112_i32_33 : i32 to vector<8x1xi32>
    %142 = arith.cmpi sge, %140, %141 : vector<8x1xi32>
    %143 = arith.select %142, %135, %130 : vector<8x1xi1>, vector<8x1xi32>
    %144 = arith.select %142, %131, %135 : vector<8x1xi1>, vector<8x1xi32>
    %145 = arith.subi %143, %144 : vector<8x1xi32>
    %c1_i32_34 = arith.constant 1 : i32
    %146 = vector.broadcast %c1_i32_34 : i32 to vector<8x1xi32>
    %147 = arith.shrsi %145, %146 : vector<8x1xi32>
    %148 = arith.addi %144, %147 : vector<8x1xi32>
    %149 = vector.broadcast %148 : vector<8x1xi32> to vector<8x128xi32>
    %150 = arith.cmpi sle, %12, %149 : vector<8x128xi32>
    %151 = arith.extui %150 : vector<8x128xi1> to vector<8x128xi32>
    %cst_35 = arith.constant dense<0> : vector<8xi32>
    %152 = vector.multi_reduction <add>, %151, %cst_35 [1] : vector<8x128xi32> to vector<8xi32>
    %153 = vector.shape_cast %152 : vector<8xi32> to vector<8x1xi32>
    %c112_i32_36 = arith.constant 112 : i32
    %154 = vector.broadcast %c112_i32_36 : i32 to vector<8x1xi32>
    %155 = arith.cmpi sge, %153, %154 : vector<8x1xi32>
    %156 = arith.select %155, %148, %143 : vector<8x1xi1>, vector<8x1xi32>
    %157 = arith.select %155, %144, %148 : vector<8x1xi1>, vector<8x1xi32>
    %158 = arith.subi %156, %157 : vector<8x1xi32>
    %c1_i32_37 = arith.constant 1 : i32
    %159 = vector.broadcast %c1_i32_37 : i32 to vector<8x1xi32>
    %160 = arith.shrsi %158, %159 : vector<8x1xi32>
    %161 = arith.addi %157, %160 : vector<8x1xi32>
    %162 = vector.broadcast %161 : vector<8x1xi32> to vector<8x128xi32>
    %163 = arith.cmpi sle, %12, %162 : vector<8x128xi32>
    %164 = arith.extui %163 : vector<8x128xi1> to vector<8x128xi32>
    %cst_38 = arith.constant dense<0> : vector<8xi32>
    %165 = vector.multi_reduction <add>, %164, %cst_38 [1] : vector<8x128xi32> to vector<8xi32>
    %166 = vector.shape_cast %165 : vector<8xi32> to vector<8x1xi32>
    %c112_i32_39 = arith.constant 112 : i32
    %167 = vector.broadcast %c112_i32_39 : i32 to vector<8x1xi32>
    %168 = arith.cmpi sge, %166, %167 : vector<8x1xi32>
    %169 = arith.select %168, %161, %156 : vector<8x1xi1>, vector<8x1xi32>
    %170 = arith.select %168, %157, %161 : vector<8x1xi1>, vector<8x1xi32>
    %171 = arith.subi %169, %170 : vector<8x1xi32>
    %c1_i32_40 = arith.constant 1 : i32
    %172 = vector.broadcast %c1_i32_40 : i32 to vector<8x1xi32>
    %173 = arith.shrsi %171, %172 : vector<8x1xi32>
    %174 = arith.addi %170, %173 : vector<8x1xi32>
    %175 = vector.broadcast %174 : vector<8x1xi32> to vector<8x128xi32>
    %176 = arith.cmpi sle, %12, %175 : vector<8x128xi32>
    %177 = arith.extui %176 : vector<8x128xi1> to vector<8x128xi32>
    %cst_41 = arith.constant dense<0> : vector<8xi32>
    %178 = vector.multi_reduction <add>, %177, %cst_41 [1] : vector<8x128xi32> to vector<8xi32>
    %179 = vector.shape_cast %178 : vector<8xi32> to vector<8x1xi32>
    %c112_i32_42 = arith.constant 112 : i32
    %180 = vector.broadcast %c112_i32_42 : i32 to vector<8x1xi32>
    %181 = arith.cmpi sge, %179, %180 : vector<8x1xi32>
    %182 = arith.select %181, %174, %169 : vector<8x1xi1>, vector<8x1xi32>
    %183 = arith.select %181, %170, %174 : vector<8x1xi1>, vector<8x1xi32>
    %184 = arith.subi %182, %183 : vector<8x1xi32>
    %c1_i32_43 = arith.constant 1 : i32
    %185 = vector.broadcast %c1_i32_43 : i32 to vector<8x1xi32>
    %186 = arith.shrsi %184, %185 : vector<8x1xi32>
    %187 = arith.addi %183, %186 : vector<8x1xi32>
    %188 = vector.broadcast %187 : vector<8x1xi32> to vector<8x128xi32>
    %189 = arith.cmpi sle, %12, %188 : vector<8x128xi32>
    %190 = arith.extui %189 : vector<8x128xi1> to vector<8x128xi32>
    %cst_44 = arith.constant dense<0> : vector<8xi32>
    %191 = vector.multi_reduction <add>, %190, %cst_44 [1] : vector<8x128xi32> to vector<8xi32>
    %192 = vector.shape_cast %191 : vector<8xi32> to vector<8x1xi32>
    %c112_i32_45 = arith.constant 112 : i32
    %193 = vector.broadcast %c112_i32_45 : i32 to vector<8x1xi32>
    %194 = arith.cmpi sge, %192, %193 : vector<8x1xi32>
    %195 = arith.select %194, %187, %182 : vector<8x1xi1>, vector<8x1xi32>
    %196 = arith.select %194, %183, %187 : vector<8x1xi1>, vector<8x1xi32>
    %197 = arith.subi %195, %196 : vector<8x1xi32>
    %c1_i32_46 = arith.constant 1 : i32
    %198 = vector.broadcast %c1_i32_46 : i32 to vector<8x1xi32>
    %199 = arith.shrsi %197, %198 : vector<8x1xi32>
    %200 = arith.addi %196, %199 : vector<8x1xi32>
    %201 = vector.broadcast %200 : vector<8x1xi32> to vector<8x128xi32>
    %202 = arith.cmpi sle, %12, %201 : vector<8x128xi32>
    %203 = arith.extui %202 : vector<8x128xi1> to vector<8x128xi32>
    %cst_47 = arith.constant dense<0> : vector<8xi32>
    %204 = vector.multi_reduction <add>, %203, %cst_47 [1] : vector<8x128xi32> to vector<8xi32>
    %205 = vector.shape_cast %204 : vector<8xi32> to vector<8x1xi32>
    %c112_i32_48 = arith.constant 112 : i32
    %206 = vector.broadcast %c112_i32_48 : i32 to vector<8x1xi32>
    %207 = arith.cmpi sge, %205, %206 : vector<8x1xi32>
    %208 = arith.select %207, %200, %195 : vector<8x1xi1>, vector<8x1xi32>
    %209 = arith.select %207, %196, %200 : vector<8x1xi1>, vector<8x1xi32>
    %210 = arith.subi %208, %209 : vector<8x1xi32>
    %c1_i32_49 = arith.constant 1 : i32
    %211 = vector.broadcast %c1_i32_49 : i32 to vector<8x1xi32>
    %212 = arith.shrsi %210, %211 : vector<8x1xi32>
    %213 = arith.addi %209, %212 : vector<8x1xi32>
    %214 = vector.broadcast %213 : vector<8x1xi32> to vector<8x128xi32>
    %215 = arith.cmpi sle, %12, %214 : vector<8x128xi32>
    %216 = arith.extui %215 : vector<8x128xi1> to vector<8x128xi32>
    %cst_50 = arith.constant dense<0> : vector<8xi32>
    %217 = vector.multi_reduction <add>, %216, %cst_50 [1] : vector<8x128xi32> to vector<8xi32>
    %218 = vector.shape_cast %217 : vector<8xi32> to vector<8x1xi32>
    %c112_i32_51 = arith.constant 112 : i32
    %219 = vector.broadcast %c112_i32_51 : i32 to vector<8x1xi32>
    %220 = arith.cmpi sge, %218, %219 : vector<8x1xi32>
    %221 = arith.select %220, %213, %208 : vector<8x1xi1>, vector<8x1xi32>
    %222 = arith.select %220, %209, %213 : vector<8x1xi1>, vector<8x1xi32>
    %223 = arith.subi %221, %222 : vector<8x1xi32>
    %c1_i32_52 = arith.constant 1 : i32
    %224 = vector.broadcast %c1_i32_52 : i32 to vector<8x1xi32>
    %225 = arith.shrsi %223, %224 : vector<8x1xi32>
    %226 = arith.addi %222, %225 : vector<8x1xi32>
    %227 = vector.broadcast %226 : vector<8x1xi32> to vector<8x128xi32>
    %228 = arith.cmpi sle, %12, %227 : vector<8x128xi32>
    %229 = arith.extui %228 : vector<8x128xi1> to vector<8x128xi32>
    %cst_53 = arith.constant dense<0> : vector<8xi32>
    %230 = vector.multi_reduction <add>, %229, %cst_53 [1] : vector<8x128xi32> to vector<8xi32>
    %231 = vector.shape_cast %230 : vector<8xi32> to vector<8x1xi32>
    %c112_i32_54 = arith.constant 112 : i32
    %232 = vector.broadcast %c112_i32_54 : i32 to vector<8x1xi32>
    %233 = arith.cmpi sge, %231, %232 : vector<8x1xi32>
    %234 = arith.select %233, %226, %221 : vector<8x1xi1>, vector<8x1xi32>
    %235 = arith.select %233, %222, %226 : vector<8x1xi1>, vector<8x1xi32>
    %236 = arith.subi %234, %235 : vector<8x1xi32>
    %c1_i32_55 = arith.constant 1 : i32
    %237 = vector.broadcast %c1_i32_55 : i32 to vector<8x1xi32>
    %238 = arith.shrsi %236, %237 : vector<8x1xi32>
    %239 = arith.addi %235, %238 : vector<8x1xi32>
    %240 = vector.broadcast %239 : vector<8x1xi32> to vector<8x128xi32>
    %241 = arith.cmpi sle, %12, %240 : vector<8x128xi32>
    %242 = arith.extui %241 : vector<8x128xi1> to vector<8x128xi32>
    %cst_56 = arith.constant dense<0> : vector<8xi32>
    %243 = vector.multi_reduction <add>, %242, %cst_56 [1] : vector<8x128xi32> to vector<8xi32>
    %244 = vector.shape_cast %243 : vector<8xi32> to vector<8x1xi32>
    %c112_i32_57 = arith.constant 112 : i32
    %245 = vector.broadcast %c112_i32_57 : i32 to vector<8x1xi32>
    %246 = arith.cmpi sge, %244, %245 : vector<8x1xi32>
    %247 = arith.select %246, %239, %234 : vector<8x1xi1>, vector<8x1xi32>
    %248 = arith.select %246, %235, %239 : vector<8x1xi1>, vector<8x1xi32>
    %249 = arith.subi %247, %248 : vector<8x1xi32>
    %c1_i32_58 = arith.constant 1 : i32
    %250 = vector.broadcast %c1_i32_58 : i32 to vector<8x1xi32>
    %251 = arith.shrsi %249, %250 : vector<8x1xi32>
    %252 = arith.addi %248, %251 : vector<8x1xi32>
    %253 = vector.broadcast %252 : vector<8x1xi32> to vector<8x128xi32>
    %254 = arith.cmpi sle, %12, %253 : vector<8x128xi32>
    %255 = arith.extui %254 : vector<8x128xi1> to vector<8x128xi32>
    %cst_59 = arith.constant dense<0> : vector<8xi32>
    %256 = vector.multi_reduction <add>, %255, %cst_59 [1] : vector<8x128xi32> to vector<8xi32>
    %257 = vector.shape_cast %256 : vector<8xi32> to vector<8x1xi32>
    %c112_i32_60 = arith.constant 112 : i32
    %258 = vector.broadcast %c112_i32_60 : i32 to vector<8x1xi32>
    %259 = arith.cmpi sge, %257, %258 : vector<8x1xi32>
    %260 = arith.select %259, %252, %247 : vector<8x1xi1>, vector<8x1xi32>
    %261 = arith.select %259, %248, %252 : vector<8x1xi1>, vector<8x1xi32>
    %262 = arith.subi %260, %261 : vector<8x1xi32>
    %c1_i32_61 = arith.constant 1 : i32
    %263 = vector.broadcast %c1_i32_61 : i32 to vector<8x1xi32>
    %264 = arith.shrsi %262, %263 : vector<8x1xi32>
    %265 = arith.addi %261, %264 : vector<8x1xi32>
    %266 = vector.broadcast %265 : vector<8x1xi32> to vector<8x128xi32>
    %267 = arith.cmpi sle, %12, %266 : vector<8x128xi32>
    %268 = arith.extui %267 : vector<8x128xi1> to vector<8x128xi32>
    %cst_62 = arith.constant dense<0> : vector<8xi32>
    %269 = vector.multi_reduction <add>, %268, %cst_62 [1] : vector<8x128xi32> to vector<8xi32>
    %270 = vector.shape_cast %269 : vector<8xi32> to vector<8x1xi32>
    %c112_i32_63 = arith.constant 112 : i32
    %271 = vector.broadcast %c112_i32_63 : i32 to vector<8x1xi32>
    %272 = arith.cmpi sge, %270, %271 : vector<8x1xi32>
    %273 = arith.select %272, %265, %260 : vector<8x1xi1>, vector<8x1xi32>
    %274 = arith.select %272, %261, %265 : vector<8x1xi1>, vector<8x1xi32>
    %275 = arith.subi %273, %274 : vector<8x1xi32>
    %c1_i32_64 = arith.constant 1 : i32
    %276 = vector.broadcast %c1_i32_64 : i32 to vector<8x1xi32>
    %277 = arith.shrsi %275, %276 : vector<8x1xi32>
    %278 = arith.addi %274, %277 : vector<8x1xi32>
    %279 = vector.broadcast %278 : vector<8x1xi32> to vector<8x128xi32>
    %280 = arith.cmpi sle, %12, %279 : vector<8x128xi32>
    %281 = arith.extui %280 : vector<8x128xi1> to vector<8x128xi32>
    %cst_65 = arith.constant dense<0> : vector<8xi32>
    %282 = vector.multi_reduction <add>, %281, %cst_65 [1] : vector<8x128xi32> to vector<8xi32>
    %283 = vector.shape_cast %282 : vector<8xi32> to vector<8x1xi32>
    %c112_i32_66 = arith.constant 112 : i32
    %284 = vector.broadcast %c112_i32_66 : i32 to vector<8x1xi32>
    %285 = arith.cmpi sge, %283, %284 : vector<8x1xi32>
    %286 = arith.select %285, %278, %273 : vector<8x1xi1>, vector<8x1xi32>
    %287 = arith.select %285, %274, %278 : vector<8x1xi1>, vector<8x1xi32>
    %288 = arith.subi %286, %287 : vector<8x1xi32>
    %c1_i32_67 = arith.constant 1 : i32
    %289 = vector.broadcast %c1_i32_67 : i32 to vector<8x1xi32>
    %290 = arith.shrsi %288, %289 : vector<8x1xi32>
    %291 = arith.addi %287, %290 : vector<8x1xi32>
    %292 = vector.broadcast %291 : vector<8x1xi32> to vector<8x128xi32>
    %293 = arith.cmpi sle, %12, %292 : vector<8x128xi32>
    %294 = arith.extui %293 : vector<8x128xi1> to vector<8x128xi32>
    %cst_68 = arith.constant dense<0> : vector<8xi32>
    %295 = vector.multi_reduction <add>, %294, %cst_68 [1] : vector<8x128xi32> to vector<8xi32>
    %296 = vector.shape_cast %295 : vector<8xi32> to vector<8x1xi32>
    %c112_i32_69 = arith.constant 112 : i32
    %297 = vector.broadcast %c112_i32_69 : i32 to vector<8x1xi32>
    %298 = arith.cmpi sge, %296, %297 : vector<8x1xi32>
    %299 = arith.select %298, %291, %286 : vector<8x1xi1>, vector<8x1xi32>
    %300 = arith.select %298, %287, %291 : vector<8x1xi1>, vector<8x1xi32>
    %301 = arith.subi %299, %300 : vector<8x1xi32>
    %c1_i32_70 = arith.constant 1 : i32
    %302 = vector.broadcast %c1_i32_70 : i32 to vector<8x1xi32>
    %303 = arith.shrsi %301, %302 : vector<8x1xi32>
    %304 = arith.addi %300, %303 : vector<8x1xi32>
    %305 = vector.broadcast %304 : vector<8x1xi32> to vector<8x128xi32>
    %306 = arith.cmpi sle, %12, %305 : vector<8x128xi32>
    %307 = arith.extui %306 : vector<8x128xi1> to vector<8x128xi32>
    %cst_71 = arith.constant dense<0> : vector<8xi32>
    %308 = vector.multi_reduction <add>, %307, %cst_71 [1] : vector<8x128xi32> to vector<8xi32>
    %309 = vector.shape_cast %308 : vector<8xi32> to vector<8x1xi32>
    %c112_i32_72 = arith.constant 112 : i32
    %310 = vector.broadcast %c112_i32_72 : i32 to vector<8x1xi32>
    %311 = arith.cmpi sge, %309, %310 : vector<8x1xi32>
    %312 = arith.select %311, %304, %299 : vector<8x1xi1>, vector<8x1xi32>
    %313 = arith.select %311, %300, %304 : vector<8x1xi1>, vector<8x1xi32>
    %314 = arith.subi %312, %313 : vector<8x1xi32>
    %c1_i32_73 = arith.constant 1 : i32
    %315 = vector.broadcast %c1_i32_73 : i32 to vector<8x1xi32>
    %316 = arith.shrsi %314, %315 : vector<8x1xi32>
    %317 = arith.addi %313, %316 : vector<8x1xi32>
    %318 = vector.broadcast %317 : vector<8x1xi32> to vector<8x128xi32>
    %319 = arith.cmpi sle, %12, %318 : vector<8x128xi32>
    %320 = arith.extui %319 : vector<8x128xi1> to vector<8x128xi32>
    %cst_74 = arith.constant dense<0> : vector<8xi32>
    %321 = vector.multi_reduction <add>, %320, %cst_74 [1] : vector<8x128xi32> to vector<8xi32>
    %322 = vector.shape_cast %321 : vector<8xi32> to vector<8x1xi32>
    %c112_i32_75 = arith.constant 112 : i32
    %323 = vector.broadcast %c112_i32_75 : i32 to vector<8x1xi32>
    %324 = arith.cmpi sge, %322, %323 : vector<8x1xi32>
    %325 = arith.select %324, %317, %312 : vector<8x1xi1>, vector<8x1xi32>
    %326 = arith.select %324, %313, %317 : vector<8x1xi1>, vector<8x1xi32>
    %327 = arith.subi %325, %326 : vector<8x1xi32>
    %c1_i32_76 = arith.constant 1 : i32
    %328 = vector.broadcast %c1_i32_76 : i32 to vector<8x1xi32>
    %329 = arith.shrsi %327, %328 : vector<8x1xi32>
    %330 = arith.addi %326, %329 : vector<8x1xi32>
    %331 = vector.broadcast %330 : vector<8x1xi32> to vector<8x128xi32>
    %332 = arith.cmpi sle, %12, %331 : vector<8x128xi32>
    %333 = arith.extui %332 : vector<8x128xi1> to vector<8x128xi32>
    %cst_77 = arith.constant dense<0> : vector<8xi32>
    %334 = vector.multi_reduction <add>, %333, %cst_77 [1] : vector<8x128xi32> to vector<8xi32>
    %335 = vector.shape_cast %334 : vector<8xi32> to vector<8x1xi32>
    %c112_i32_78 = arith.constant 112 : i32
    %336 = vector.broadcast %c112_i32_78 : i32 to vector<8x1xi32>
    %337 = arith.cmpi sge, %335, %336 : vector<8x1xi32>
    %338 = arith.select %337, %330, %325 : vector<8x1xi1>, vector<8x1xi32>
    %339 = arith.select %337, %326, %330 : vector<8x1xi1>, vector<8x1xi32>
    %340 = arith.subi %338, %339 : vector<8x1xi32>
    %c1_i32_79 = arith.constant 1 : i32
    %341 = vector.broadcast %c1_i32_79 : i32 to vector<8x1xi32>
    %342 = arith.shrsi %340, %341 : vector<8x1xi32>
    %343 = arith.addi %339, %342 : vector<8x1xi32>
    %344 = vector.broadcast %343 : vector<8x1xi32> to vector<8x128xi32>
    %345 = arith.cmpi sle, %12, %344 : vector<8x128xi32>
    %346 = arith.extui %345 : vector<8x128xi1> to vector<8x128xi32>
    %cst_80 = arith.constant dense<0> : vector<8xi32>
    %347 = vector.multi_reduction <add>, %346, %cst_80 [1] : vector<8x128xi32> to vector<8xi32>
    %348 = vector.shape_cast %347 : vector<8xi32> to vector<8x1xi32>
    %c112_i32_81 = arith.constant 112 : i32
    %349 = vector.broadcast %c112_i32_81 : i32 to vector<8x1xi32>
    %350 = arith.cmpi sge, %348, %349 : vector<8x1xi32>
    %351 = arith.select %350, %343, %338 : vector<8x1xi1>, vector<8x1xi32>
    %352 = arith.select %350, %339, %343 : vector<8x1xi1>, vector<8x1xi32>
    %353 = arith.subi %351, %352 : vector<8x1xi32>
    %c1_i32_82 = arith.constant 1 : i32
    %354 = vector.broadcast %c1_i32_82 : i32 to vector<8x1xi32>
    %355 = arith.shrsi %353, %354 : vector<8x1xi32>
    %356 = arith.addi %352, %355 : vector<8x1xi32>
    %357 = vector.broadcast %356 : vector<8x1xi32> to vector<8x128xi32>
    %358 = arith.cmpi sle, %12, %357 : vector<8x128xi32>
    %359 = arith.extui %358 : vector<8x128xi1> to vector<8x128xi32>
    %cst_83 = arith.constant dense<0> : vector<8xi32>
    %360 = vector.multi_reduction <add>, %359, %cst_83 [1] : vector<8x128xi32> to vector<8xi32>
    %361 = vector.shape_cast %360 : vector<8xi32> to vector<8x1xi32>
    %c112_i32_84 = arith.constant 112 : i32
    %362 = vector.broadcast %c112_i32_84 : i32 to vector<8x1xi32>
    %363 = arith.cmpi sge, %361, %362 : vector<8x1xi32>
    %364 = arith.select %363, %356, %351 : vector<8x1xi1>, vector<8x1xi32>
    %365 = arith.select %363, %352, %356 : vector<8x1xi1>, vector<8x1xi32>
    %366 = arith.subi %364, %365 : vector<8x1xi32>
    %c1_i32_85 = arith.constant 1 : i32
    %367 = vector.broadcast %c1_i32_85 : i32 to vector<8x1xi32>
    %368 = arith.shrsi %366, %367 : vector<8x1xi32>
    %369 = arith.addi %365, %368 : vector<8x1xi32>
    %370 = vector.broadcast %369 : vector<8x1xi32> to vector<8x128xi32>
    %371 = arith.cmpi sle, %12, %370 : vector<8x128xi32>
    %372 = arith.extui %371 : vector<8x128xi1> to vector<8x128xi32>
    %cst_86 = arith.constant dense<0> : vector<8xi32>
    %373 = vector.multi_reduction <add>, %372, %cst_86 [1] : vector<8x128xi32> to vector<8xi32>
    %374 = vector.shape_cast %373 : vector<8xi32> to vector<8x1xi32>
    %c112_i32_87 = arith.constant 112 : i32
    %375 = vector.broadcast %c112_i32_87 : i32 to vector<8x1xi32>
    %376 = arith.cmpi sge, %374, %375 : vector<8x1xi32>
    %377 = arith.select %376, %369, %364 : vector<8x1xi1>, vector<8x1xi32>
    %378 = arith.select %376, %365, %369 : vector<8x1xi1>, vector<8x1xi32>
    %379 = arith.subi %377, %378 : vector<8x1xi32>
    %c1_i32_88 = arith.constant 1 : i32
    %380 = vector.broadcast %c1_i32_88 : i32 to vector<8x1xi32>
    %381 = arith.shrsi %379, %380 : vector<8x1xi32>
    %382 = arith.addi %378, %381 : vector<8x1xi32>
    %383 = vector.broadcast %382 : vector<8x1xi32> to vector<8x128xi32>
    %384 = arith.cmpi sle, %12, %383 : vector<8x128xi32>
    %385 = arith.extui %384 : vector<8x128xi1> to vector<8x128xi32>
    %cst_89 = arith.constant dense<0> : vector<8xi32>
    %386 = vector.multi_reduction <add>, %385, %cst_89 [1] : vector<8x128xi32> to vector<8xi32>
    %387 = vector.shape_cast %386 : vector<8xi32> to vector<8x1xi32>
    %c112_i32_90 = arith.constant 112 : i32
    %388 = vector.broadcast %c112_i32_90 : i32 to vector<8x1xi32>
    %389 = arith.cmpi sge, %387, %388 : vector<8x1xi32>
    %390 = arith.select %389, %382, %377 : vector<8x1xi1>, vector<8x1xi32>
    %391 = arith.select %389, %378, %382 : vector<8x1xi1>, vector<8x1xi32>
    %392 = arith.subi %390, %391 : vector<8x1xi32>
    %c1_i32_91 = arith.constant 1 : i32
    %393 = vector.broadcast %c1_i32_91 : i32 to vector<8x1xi32>
    %394 = arith.shrsi %392, %393 : vector<8x1xi32>
    %395 = arith.addi %391, %394 : vector<8x1xi32>
    %396 = vector.broadcast %395 : vector<8x1xi32> to vector<8x128xi32>
    %397 = arith.cmpi sle, %12, %396 : vector<8x128xi32>
    %398 = arith.extui %397 : vector<8x128xi1> to vector<8x128xi32>
    %cst_92 = arith.constant dense<0> : vector<8xi32>
    %399 = vector.multi_reduction <add>, %398, %cst_92 [1] : vector<8x128xi32> to vector<8xi32>
    %400 = vector.shape_cast %399 : vector<8xi32> to vector<8x1xi32>
    %c112_i32_93 = arith.constant 112 : i32
    %401 = vector.broadcast %c112_i32_93 : i32 to vector<8x1xi32>
    %402 = arith.cmpi sge, %400, %401 : vector<8x1xi32>
    %403 = arith.select %402, %395, %390 : vector<8x1xi1>, vector<8x1xi32>
    %404 = vector.broadcast %403 : vector<8x1xi32> to vector<8x128xi32>
    %405 = arith.cmpi sge, %12, %404 : vector<8x128xi32>
    %406 = arith.extui %405 : vector<8x128xi1> to vector<8x128xi32>
    %407 = arith.sitofp %406 : vector<8x128xi32> to vector<8x128xf32>
    %c0_94 = arith.constant 0 : index
    %c0_95 = arith.constant 0 : index
    %408 = vector.load %arg6[%c0_94, %c0_95] : memref<8x128xf32, #tpu.memory_space<vmem>>, vector<8x128xf32>
    tpu.vector_store %arg6[%c0_94, %c0_95], %11 {strides = array<i32>} : memref<8x128xf32, #tpu.memory_space<vmem>>, vector<8x128xf32>,
    %c0_96 = arith.constant 0 : index
    %c0_97 = arith.constant 0 : index
    %409 = vector.load %arg7[%c0_96, %c0_97] : memref<8x128xf32, #tpu.memory_space<vmem>>, vector<8x128xf32>
    tpu.vector_store %arg7[%c0_96, %c0_97], %407 {strides = array<i32>} : memref<8x128xf32, #tpu.memory_space<vmem>>, vector<8x128xf32>,
    %410 = arith.truncf %407 : vector<8x128xf32> to vector<8x128xbf16>
    %c0_98 = arith.constant 0 : index
    %c0_99 = arith.constant 0 : index
    %411 = vector.load %arg4[%c0_98, %c0_99] : memref<128x64xbf16, #tpu.memory_space<vmem>>, vector<128x64xbf16>
    %cst_100 = arith.constant dense<0.000000e+00> : vector<8x64xf32>
    %412 = tpu.matmul %410, %411, %cst_100 {dimension_numbers = #tpu.dot_dimension_numbers<[1], [0], [0], [1], [0, 0, 1, 1], [], []>} : vector<8x128xbf16>, vector<128x64xbf16>, vector<8x64xf32> -> vector<8x64xf32>
    %c0_101 = arith.constant 0 : index
    %c0_102 = arith.constant 0 : index
    %413 = vector.load %arg5[%c0_101, %c0_102] : memref<8x64xf32, #tpu.memory_space<vmem>>, vector<8x64xf32>
    tpu.vector_store %arg5[%c0_101, %c0_102], %412 {strides = array<i32>} : memref<8x64xf32, #tpu.memory_space<vmem>>, vector<8x64xf32>,
    %c8_i32 = arith.constant 8 : i32
    %414 = arith.muli %arg0, %c8_i32 : i32
    %415 = tpu.iota {dimensions = array<i32: 0>} : vector<8x1xi32>
    %416 = vector.broadcast %414 : i32 to vector<8x1xi32>
    %417 = arith.addi %416, %415 : vector<8x1xi32>
    %c16_i32 = arith.constant 16 : i32
    %418 = vector.broadcast %c16_i32 : i32 to vector<8x1xi32>
    %419 = arith.cmpi slt, %417, %418 : vector<8x1xi32>
    %420 = arith.subf %11, %407 : vector<8x128xf32>
    %421 = arith.subf %412, %0 : vector<8x64xf32>
    %422 = arith.mulf %420, %420 : vector<8x128xf32>
    %cst_103 = arith.constant 0.000000e+00 : f32
    %423 = vector.shape_cast %419 : vector<8x1xi1> to vector<8x1xi1>
    %424 = vector.broadcast %423 : vector<8x1xi1> to vector<8x128xi1>
    %425 = vector.broadcast %cst_103 : f32 to vector<8x128xf32>
    %426 = arith.select %424, %422, %425 : vector<8x128xi1>, vector<8x128xf32>
    %cst_104 = arith.constant dense<0.000000e+00> : vector<128xf32>
    %427 = vector.multi_reduction <add>, %426, %cst_104 [0] : vector<8x128xf32> to vector<128xf32>
    %428 = vector.shape_cast %427 : vector<128xf32> to vector<1x128xf32>
    %429 = arith.mulf %421, %421 : vector<8x64xf32>
    %cst_105 = arith.constant 0.000000e+00 : f32
    %430 = vector.shape_cast %419 : vector<8x1xi1> to vector<8x1xi1>
    %431 = vector.broadcast %430 : vector<8x1xi1> to vector<8x64xi1>
    %432 = vector.broadcast %cst_105 : f32 to vector<8x64xf32>
    %433 = arith.select %431, %429, %432 : vector<8x64xi1>, vector<8x64xf32>
    %cst_106 = arith.constant dense<0.000000e+00> : vector<64xf32>
    %434 = vector.multi_reduction <add>, %433, %cst_106 [0] : vector<8x64xf32> to vector<64xf32>
    %435 = vector.shape_cast %434 : vector<64xf32> to vector<1x64xf32>
    %436 = vector.shape_cast %428 : vector<1x128xf32> to vector<1x1x128xf32>
    %c0_107 = arith.constant 0 : index
    %c0_108 = arith.constant 0 : index
    %c0_109 = arith.constant 0 : index
    %437 = vector.load %arg8[%c0_107, %c0_108, %c0_109] : memref<1x1x128xf32, #tpu.memory_space<vmem>>, vector<1x1x128xf32>
    tpu.vector_store %arg8[%c0_107, %c0_108, %c0_109], %436 {strides = array<i32>} : memref<1x1x128xf32, #tpu.memory_space<vmem>>, vector<1x1x128xf32>,
    %438 = vector.shape_cast %435 : vector<1x64xf32> to vector<1x1x64xf32>
    %c0_110 = arith.constant 0 : index
    %c0_111 = arith.constant 0 : index
    %c0_112 = arith.constant 0 : index
    %439 = vector.load %arg9[%c0_110, %c0_111, %c0_112] : memref<1x1x64xf32, #tpu.memory_space<vmem>>, vector<1x1x64xf32>
    tpu.vector_store %arg9[%c0_110, %c0_111, %c0_112], %438 {strides = array<i32>} : memref<1x1x64xf32, #tpu.memory_space<vmem>>, vector<1x1x64xf32>,
    return
  }
  func.func @transform_0(%arg0: i32) -> (i32, i32) {
    %c0_i32 = arith.constant 0 : i32
    %c0_i32_0 = arith.constant 0 : i32
    return %arg0, %c0_i32 : i32, i32
  }
  func.func @transform_1(%arg0: i32) -> (i32, i32) {
    %c0_i32 = arith.constant 0 : i32
    %c0_i32_0 = arith.constant 0 : i32
    %c0_i32_1 = arith.constant 0 : i32
    return %c0_i32, %c0_i32_0 : i32, i32
  }
  func.func @transform_2(%arg0: i32) -> (i32, i32) {
    %c0_i32 = arith.constant 0 : i32
    %c0_i32_0 = arith.constant 0 : i32
    %c0_i32_1 = arith.constant 0 : i32
    return %c0_i32, %c0_i32_0 : i32, i32
  }
  func.func @transform_3(%arg0: i32) -> (i32, i32) {
    %c0_i32 = arith.constant 0 : i32
    %c0_i32_0 = arith.constant 0 : i32
    %c0_i32_1 = arith.constant 0 : i32
    return %c0_i32, %c0_i32_0 : i32, i32
  }
  func.func @transform_4(%arg0: i32) -> (i32, i32) {
    %c0_i32 = arith.constant 0 : i32
    %c0_i32_0 = arith.constant 0 : i32
    return %arg0, %c0_i32 : i32, i32
  }
  func.func @transform_5(%arg0: i32) -> (i32, i32) {
    %c0_i32 = arith.constant 0 : i32
    %c0_i32_0 = arith.constant 0 : i32
    return %arg0, %c0_i32 : i32, i32
  }
  func.func @transform_6(%arg0: i32) -> (i32, i32) {
    %c0_i32 = arith.constant 0 : i32
    %c0_i32_0 = arith.constant 0 : i32
    return %arg0, %c0_i32 : i32, i32
  }
  func.func @transform_7(%arg0: i32) -> (i32, i32, i32) {
    %c0_i32 = arith.constant 0 : i32
    %c0_i32_0 = arith.constant 0 : i32
    %c0_i32_1 = arith.constant 0 : i32
    return %arg0, %c0_i32, %c0_i32_0 : i32, i32, i32
  }
  func.func @transform_8(%arg0: i32) -> (i32, i32, i32) {
    %c0_i32 = arith.constant 0 : i32
    %c0_i32_0 = arith.constant 0 : i32
    %c0_i32_1 = arith.constant 0 : i32
    return %arg0, %c0_i32, %c0_i32_0 : i32, i32, i32
  }
}

module attributes {stable_mosaic.version = 11 : i64} {
  func.func @_qsae_kernel(%arg0: i32, %arg1: memref<8x64xf32, #tpu.memory_space<vmem>>, %arg2: memref<64x128xbf16, #tpu.memory_space<vmem>>, %arg3: memref<1x128xf32, #tpu.memory_space<vmem>>, %arg4: memref<128x64xbf16, #tpu.memory_space<vmem>>, %arg5: memref<8x64xf32, #tpu.memory_space<vmem>>, %arg6: memref<8x128xf32, #tpu.memory_space<vmem>>, %arg7: memref<8x128xf32, #tpu.memory_space<vmem>>, %arg8: memref<1x1x128xf32, #tpu.memory_space<vmem>>, %arg9: memref<1x1x64xf32, #tpu.memory_space<vmem>>) attributes {dimension_semantics = [#tpu.dimension_semantics<parallel>], iteration_bounds = array<i64: 2>, scalar_prefetch = 0 : i64, scratch_operands = 0 : i64, tpu.core_type = #tpu.core_type<tc>, window_params = [{transform_indices = @transform_0, window_bounds = array<i64: 8, 64>}, {pipeline_mode = #tpu.pipeline_mode<synchronous>, transform_indices = @transform_1, window_bounds = array<i64: 64, 128>}, {pipeline_mode = #tpu.pipeline_mode<synchronous>, transform_indices = @transform_2, window_bounds = array<i64: 1, 128>}, {pipeline_mode = #tpu.pipeline_mode<synchronous>, transform_indices = @transform_3, window_bounds = array<i64: 128, 64>}, {transform_indices = @transform_4, window_bounds = array<i64: 8, 64>}, {transform_indices = @transform_5, window_bounds = array<i64: 8, 128>}, {transform_indices = @transform_6, window_bounds = array<i64: 8, 128>}, {transform_indices = @transform_7, window_bounds = array<i64: 1, 1, 128>}, {transform_indices = @transform_8, window_bounds = array<i64: 1, 1, 64>}]} {
    %c0 = arith.constant 0 : index
    %c0_0 = arith.constant 0 : index
    %0 = vector.load %arg1[%c0, %c0_0] : memref<8x64xf32, #tpu.memory_space<vmem>>, vector<8x64xf32>
    %1 = arith.truncf %0 : vector<8x64xf32> to vector<8x64xbf16>
    %c0_1 = arith.constant 0 : index
    %c0_2 = arith.constant 0 : index
    %2 = vector.load %arg2[%c0_1, %c0_2] : memref<64x128xbf16, #tpu.memory_space<vmem>>, vector<64x128xbf16>
    %cst = arith.constant dense<0.000000e+00> : vector<8x128xf32>
    %3 = tpu.matmul %1, %2, %cst {dimension_numbers = #tpu.dot_dimension_numbers<[1], [0], [0], [1], [0, 0, 1, 1], [], []>} : vector<8x64xbf16>, vector<64x128xbf16>, vector<8x128xf32> -> vector<8x128xf32>
    %c0_3 = arith.constant 0 : index
    %c0_4 = arith.constant 0 : index
    %4 = vector.load %arg3[%c0_3, %c0_4] : memref<1x128xf32, #tpu.memory_space<vmem>>, vector<1x128xf32>
    %5 = vector.broadcast %4 : vector<1x128xf32> to vector<8x128xf32>
    %6 = arith.addf %3, %5 : vector<8x128xf32>
    %7 = arith.negf %6 : vector<8x128xf32>
    %8 = math.exp %7 : vector<8x128xf32>
    %cst_5 = arith.constant 1.000000e+00 : f32
    %9 = vector.broadcast %cst_5 : f32 to vector<8x128xf32>
    %10 = arith.addf %9, %8 : vector<8x128xf32>
    %11 = arith.divf %9, %10 : vector<8x128xf32>
    %12 = tpu.bitcast %11 : vector<8x128xf32> -> vector<8x128xi32>
    %c-1_i32 = arith.constant -1 : i32
    %13 = vector.broadcast %c-1_i32 : i32 to vector<8x1xi32>
    %c1065353216_i32 = arith.constant 1065353216 : i32
    %14 = vector.broadcast %c1065353216_i32 : i32 to vector<8x1xi32>
    %15 = arith.subi %14, %13 : vector<8x1xi32>
    %c1_i32 = arith.constant 1 : i32
    %16 = vector.broadcast %c1_i32 : i32 to vector<8x1xi32>
    %17 = arith.shrsi %15, %16 : vector<8x1xi32>
    %18 = arith.addi %13, %17 : vector<8x1xi32>
    %19 = vector.broadcast %18 : vector<8x1xi32> to vector<8x128xi32>
    %20 = arith.cmpi sle, %12, %19 : vector<8x128xi32>
    %21 = arith.extui %20 : vector<8x128xi1> to vector<8x128xi32>
    %cst_6 = arith.constant dense<0> : vector<8xi32>
    %22 = vector.multi_reduction <add>, %21, %cst_6 [1] : vector<8x128xi32> to vector<8xi32>
    %23 = vector.shape_cast %22 : vector<8xi32> to vector<8x1xi32>
    %c112_i32 = arith.constant 112 : i32
    %24 = vector.broadcast %c112_i32 : i32 to vector<8x1xi32>
    %25 = arith.cmpi sge, %23, %24 : vector<8x1xi32>
    %26 = arith.select %25, %18, %14 : vector<8x1xi1>, vector<8x1xi32>
    %27 = arith.select %25, %13, %18 : vector<8x1xi1>, vector<8x1xi32>
    %28 = arith.subi %26, %27 : vector<8x1xi32>
    %c1_i32_7 = arith.constant 1 : i32
    %29 = vector.broadcast %c1_i32_7 : i32 to vector<8x1xi32>
    %30 = arith.shrsi %28, %29 : vector<8x1xi32>
    %31 = arith.addi %27, %30 : vector<8x1xi32>
    %32 = vector.broadcast %31 : vector<8x1xi32> to vector<8x128xi32>
    %33 = arith.cmpi sle, %12, %32 : vector<8x128xi32>
    %34 = arith.extui %33 : vector<8x128xi1> to vector<8x128xi32>
    %cst_8 = arith.constant dense<0> : vector<8xi32>
    %35 = vector.multi_reduction <add>, %34, %cst_8 [1] : vector<8x128xi32> to vector<8xi32>
    %36 = vector.shape_cast %35 : vector<8xi32> to vector<8x1xi32>
    %c112_i32_9 = arith.constant 112 : i32
    %37 = vector.broadcast %c112_i32_9 : i32 to vector<8x1xi32>
    %38 = arith.cmpi sge, %36, %37 : vector<8x1xi32>
    %39 = arith.select %38, %31, %26 : vector<8x1xi1>, vector<8x1xi32>
    %40 = arith.select %38, %27, %31 : vector<8x1xi1>, vector<8x1xi32>
    %41 = arith.subi %39, %40 : vector<8x1xi32>
    %c1_i32_10 = arith.constant 1 : i32
    %42 = vector.broadcast %c1_i32_10 : i32 to vector<8x1xi32>
    %43 = arith.shrsi %41, %42 : vector<8x1xi32>
    %44 = arith.addi %40, %43 : vector<8x1xi32>
    %45 = vector.broadcast %44 : vector<8x1xi32> to vector<8x128xi32>
    %46 = arith.cmpi sle, %12, %45 : vector<8x128xi32>
    %47 = arith.extui %46 : vector<8x128xi1> to vector<8x128xi32>
    %cst_11 = arith.constant dense<0> : vector<8xi32>
    %48 = vector.multi_reduction <add>, %47, %cst_11 [1] : vector<8x128xi32> to vector<8xi32>
    %49 = vector.shape_cast %48 : vector<8xi32> to vector<8x1xi32>
    %c112_i32_12 = arith.constant 112 : i32
    %50 = vector.broadcast %c112_i32_12 : i32 to vector<8x1xi32>
    %51 = arith.cmpi sge, %49, %50 : vector<8x1xi32>
    %52 = arith.select %51, %44, %39 : vector<8x1xi1>, vector<8x1xi32>
    %53 = arith.select %51, %40, %44 : vector<8x1xi1>, vector<8x1xi32>
    %54 = arith.subi %52, %53 : vector<8x1xi32>
    %c1_i32_13 = arith.constant 1 : i32
    %55 = vector.broadcast %c1_i32_13 : i32 to vector<8x1xi32>
    %56 = arith.shrsi %54, %55 : vector<8x1xi32>
    %57 = arith.addi %53, %56 : vector<8x1xi32>
    %58 = vector.broadcast %57 : vector<8x1xi32> to vector<8x128xi32>
    %59 = arith.cmpi sle, %12, %58 : vector<8x128xi32>
    %60 = arith.extui %59 : vector<8x128xi1> to vector<8x128xi32>
    %cst_14 = arith.constant dense<0> : vector<8xi32>
    %61 = vector.multi_reduction <add>, %60, %cst_14 [1] : vector<8x128xi32> to vector<8xi32>
    %62 = vector.shape_cast %61 : vector<8xi32> to vector<8x1xi32>
    %c112_i32_15 = arith.constant 112 : i32
    %63 = vector.broadcast %c112_i32_15 : i32 to vector<8x1xi32>
    %64 = arith.cmpi sge, %62, %63 : vector<8x1xi32>
    %65 = arith.select %64, %57, %52 : vector<8x1xi1>, vector<8x1xi32>
    %66 = arith.select %64, %53, %57 : vector<8x1xi1>, vector<8x1xi32>
    %67 = arith.subi %65, %66 : vector<8x1xi32>
    %c1_i32_16 = arith.constant 1 : i32
    %68 = vector.broadcast %c1_i32_16 : i32 to vector<8x1xi32>
    %69 = arith.shrsi %67, %68 : vector<8x1xi32>
    %70 = arith.addi %66, %69 : vector<8x1xi32>
    %71 = vector.broadcast %70 : vector<8x1xi32> to vector<8x128xi32>
    %72 = arith.cmpi sle, %12, %71 : vector<8x128xi32>
    %73 = arith.extui %72 : vector<8x128xi1> to vector<8x128xi32>
    %cst_17 = arith.constant dense<0> : vector<8xi32>
    %74 = vector.multi_reduction <add>, %73, %cst_17 [1] : vector<8x128xi32> to vector<8xi32>
    %75 = vector.shape_cast %74 : vector<8xi32> to vector<8x1xi32>
    %c112_i32_18 = arith.constant 112 : i32
    %76 = vector.broadcast %c112_i32_18 : i32 to vector<8x1xi32>
    %77 = arith.cmpi sge, %75, %76 : vector<8x1xi32>
    %78 = arith.select %77, %70, %65 : vector<8x1xi1>, vector<8x1xi32>
    %79 = arith.select %77, %66, %70 : vector<8x1xi1>, vector<8x1xi32>
    %80 = arith.subi %78, %79 : vector<8x1xi32>
    %c1_i32_19 = arith.constant 1 : i32
    %81 = vector.broadcast %c1_i32_19 : i32 to vector<8x1xi32>
    %82 = arith.shrsi %80, %81 : vector<8x1xi32>
    %83 = arith.addi %79, %82 : vector<8x1xi32>
    %84 = vector.broadcast %83 : vector<8x1xi32> to vector<8x128xi32>
    %85 = arith.cmpi sle, %12, %84 : vector<8x128xi32>
    %86 = arith.extui %85 : vector<8x128xi1> to vector<8x128xi32>
    %cst_20 = arith.constant dense<0> : vector<8xi32>
    %87 = vector.multi_reduction <add>, %86, %cst_20 [1] : vector<8x128xi32> to vector<8xi32>
    %88 = vector.shape_cast %87 : vector<8xi32> to vector<8x1xi32>
    %c112_i32_21 = arith.constant 112 : i32
    %89 = vector.broadcast %c112_i32_21 : i32 to vector<8x1xi32>
    %90 = arith.cmpi sge, %88, %89 : vector<8x1xi32>
    %91 = arith.select %90, %83, %78 : vector<8x1xi1>, vector<8x1xi32>
    %92 = arith.select %90, %79, %83 : vector<8x1xi1>, vector<8x1xi32>
    %93 = arith.subi %91, %92 : vector<8x1xi32>
    %c1_i32_22 = arith.constant 1 : i32
    %94 = vector.broadcast %c1_i32_22 : i32 to vector<8x1xi32>
    %95 = arith.shrsi %93, %94 : vector<8x1xi32>
    %96 = arith.addi %92, %95 : vector<8x1xi32>
    %97 = vector.broadcast %96 : vector<8x1xi32> to vector<8x128xi32>
    %98 = arith.cmpi sle, %12, %97 : vector<8x128xi32>
    %99 = arith.extui %98 : vector<8x128xi1> to vector<8x128xi32>
    %cst_23 = arith.constant dense<0> : vector<8xi32>
    %100 = vector.multi_reduction <add>, %99, %cst_23 [1] : vector<8x128xi32> to vector<8xi32>
    %101 = vector.shape_cast %100 : vector<8xi32> to vector<8x1xi32>
    %c112_i32_24 = arith.constant 112 : i32
    %102 = vector.broadcast %c112_i32_24 : i32 to vector<8x1xi32>
    %103 = arith.cmpi sge, %101, %102 : vector<8x1xi32>
    %104 = arith.select %103, %96, %91 : vector<8x1xi1>, vector<8x1xi32>
    %105 = arith.select %103, %92, %96 : vector<8x1xi1>, vector<8x1xi32>
    %106 = arith.subi %104, %105 : vector<8x1xi32>
    %c1_i32_25 = arith.constant 1 : i32
    %107 = vector.broadcast %c1_i32_25 : i32 to vector<8x1xi32>
    %108 = arith.shrsi %106, %107 : vector<8x1xi32>
    %109 = arith.addi %105, %108 : vector<8x1xi32>
    %110 = vector.broadcast %109 : vector<8x1xi32> to vector<8x128xi32>
    %111 = arith.cmpi sle, %12, %110 : vector<8x128xi32>
    %112 = arith.extui %111 : vector<8x128xi1> to vector<8x128xi32>
    %cst_26 = arith.constant dense<0> : vector<8xi32>
    %113 = vector.multi_reduction <add>, %112, %cst_26 [1] : vector<8x128xi32> to vector<8xi32>
    %114 = vector.shape_cast %113 : vector<8xi32> to vector<8x1xi32>
    %c112_i32_27 = arith.constant 112 : i32
    %115 = vector.broadcast %c112_i32_27 : i32 to vector<8x1xi32>
    %116 = arith.cmpi sge, %114, %115 : vector<8x1xi32>
    %117 = arith.select %116, %109, %104 : vector<8x1xi1>, vector<8x1xi32>
    %118 = arith.select %116, %105, %109 : vector<8x1xi1>, vector<8x1xi32>
    %119 = arith.subi %117, %118 : vector<8x1xi32>
    %c1_i32_28 = arith.constant 1 : i32
    %120 = vector.broadcast %c1_i32_28 : i32 to vector<8x1xi32>
    %121 = arith.shrsi %119, %120 : vector<8x1xi32>
    %122 = arith.addi %118, %121 : vector<8x1xi32>
    %123 = vector.broadcast %122 : vector<8x1xi32> to vector<8x128xi32>
    %124 = arith.cmpi sle, %12, %123 : vector<8x128xi32>
    %125 = arith.extui %124 : vector<8x128xi1> to vector<8x128xi32>
    %cst_29 = arith.constant dense<0> : vector<8xi32>
    %126 = vector.multi_reduction <add>, %125, %cst_29 [1] : vector<8x128xi32> to vector<8xi32>
    %127 = vector.shape_cast %126 : vector<8xi32> to vector<8x1xi32>
    %c112_i32_30 = arith.constant 112 : i32
    %128 = vector.broadcast %c112_i32_30 : i32 to vector<8x1xi32>
    %129 = arith.cmpi sge, %127, %128 : vector<8x1xi32>
    %130 = arith.select %129, %122, %117 : vector<8x1xi1>, vector<8x1xi32>
    %131 = arith.select %129, %118, %122 : vector<8x1xi1>, vector<8x1xi32>
    %132 = arith.subi %130, %131 : vector<8x1xi32>
    %c1_i32_31 = arith.constant 1 : i32
    %133 = vector.broadcast %c1_i32_31 : i32 to vector<8x1xi32>
    %134 = arith.shrsi %132, %133 : vector<8x1xi32>
    %135 = arith.addi %131, %134 : vector<8x1xi32>
    %136 = vector.broadcast %135 : vector<8x1xi32> to vector<8x128xi32>
    %137 = arith.cmpi sle, %12, %136 : vector<8x128xi32>
    %138 = arith.extui %137 : vector<8x128xi1> to vector<8x128xi32>
    %cst_32 = arith.constant dense<0> : vector<8xi32>
    %139 = vector.multi_reduction <add>, %138, %cst_32 [1] : vector<8x128xi32> to vector<8xi32>
    %140 = vector.shape_cast %139 : vector<8xi32> to vector<8x1xi32>
    %c112_i32_33 = arith.constant 112 : i32
    %141 = vector.broadcast %c112_i32_33 : i32 to vector<8x1xi32>
    %142 = arith.cmpi sge, %140, %141 : vector<8x1xi32>
    %143 = arith.select %142, %135, %130 : vector<8x1xi1>, vector<8x1xi32>
    %144 = arith.select %142, %131, %135 : vector<8x1xi1>, vector<8x1xi32>
    %145 = arith.subi %143, %144 : vector<8x1xi32>
    %c1_i32_34 = arith.constant 1 : i32
    %146 = vector.broadcast %c1_i32_34 : i32 to vector<8x1xi32>
    %147 = arith.shrsi %145, %146 : vector<8x1xi32>
    %148 = arith.addi %144, %147 : vector<8x1xi32>
    %149 = vector.broadcast %148 : vector<8x1xi32> to vector<8x128xi32>
    %150 = arith.cmpi sle, %12, %149 : vector<8x128xi32>
    %151 = arith.extui %150 : vector<8x128xi1> to vector<8x128xi32>
    %cst_35 = arith.constant dense<0> : vector<8xi32>
    %152 = vector.multi_reduction <add>, %151, %cst_35 [1] : vector<8x128xi32> to vector<8xi32>
    %153 = vector.shape_cast %152 : vector<8xi32> to vector<8x1xi32>
    %c112_i32_36 = arith.constant 112 : i32
    %154 = vector.broadcast %c112_i32_36 : i32 to vector<8x1xi32>
    %155 = arith.cmpi sge, %153, %154 : vector<8x1xi32>
    %156 = arith.select %155, %148, %143 : vector<8x1xi1>, vector<8x1xi32>
    %157 = arith.select %155, %144, %148 : vector<8x1xi1>, vector<8x1xi32>
    %158 = arith.subi %156, %157 : vector<8x1xi32>
    %c1_i32_37 = arith.constant 1 : i32
    %159 = vector.broadcast %c1_i32_37 : i32 to vector<8x1xi32>
    %160 = arith.shrsi %158, %159 : vector<8x1xi32>
    %161 = arith.addi %157, %160 : vector<8x1xi32>
    %162 = vector.broadcast %161 : vector<8x1xi32> to vector<8x128xi32>
    %163 = arith.cmpi sle, %12, %162 : vector<8x128xi32>
    %164 = arith.extui %163 : vector<8x128xi1> to vector<8x128xi32>
    %cst_38 = arith.constant dense<0> : vector<8xi32>
    %165 = vector.multi_reduction <add>, %164, %cst_38 [1] : vector<8x128xi32> to vector<8xi32>
    %166 = vector.shape_cast %165 : vector<8xi32> to vector<8x1xi32>
    %c112_i32_39 = arith.constant 112 : i32
    %167 = vector.broadcast %c112_i32_39 : i32 to vector<8x1xi32>
    %168 = arith.cmpi sge, %166, %167 : vector<8x1xi32>
    %169 = arith.select %168, %161, %156 : vector<8x1xi1>, vector<8x1xi32>
    %170 = arith.select %168, %157, %161 : vector<8x1xi1>, vector<8x1xi32>
    %171 = arith.subi %169, %170 : vector<8x1xi32>
    %c1_i32_40 = arith.constant 1 : i32
    %172 = vector.broadcast %c1_i32_40 : i32 to vector<8x1xi32>
    %173 = arith.shrsi %171, %172 : vector<8x1xi32>
    %174 = arith.addi %170, %173 : vector<8x1xi32>
    %175 = vector.broadcast %174 : vector<8x1xi32> to vector<8x128xi32>
    %176 = arith.cmpi sle, %12, %175 : vector<8x128xi32>
    %177 = arith.extui %176 : vector<8x128xi1> to vector<8x128xi32>
    %cst_41 = arith.constant dense<0> : vector<8xi32>
    %178 = vector.multi_reduction <add>, %177, %cst_41 [1] : vector<8x128xi32> to vector<8xi32>
    %179 = vector.shape_cast %178 : vector<8xi32> to vector<8x1xi32>
    %c112_i32_42 = arith.constant 112 : i32
    %180 = vector.broadcast %c112_i32_42 : i32 to vector<8x1xi32>
    %181 = arith.cmpi sge, %179, %180 : vector<8x1xi32>
    %182 = arith.select %181, %174, %169 : vector<8x1xi1>, vector<8x1xi32>
    %183 = arith.select %181, %170, %174 : vector<8x1xi1>, vector<8x1xi32>
    %184 = arith.subi %182, %183 : vector<8x1xi32>
    %c1_i32_43 = arith.constant 1 : i32
    %185 = vector.broadcast %c1_i32_43 : i32 to vector<8x1xi32>
    %186 = arith.shrsi %184, %185 : vector<8x1xi32>
    %187 = arith.addi %183, %186 : vector<8x1xi32>
    %188 = vector.broadcast %187 : vector<8x1xi32> to vector<8x128xi32>
    %189 = arith.cmpi sle, %12, %188 : vector<8x128xi32>
    %190 = arith.extui %189 : vector<8x128xi1> to vector<8x128xi32>
    %cst_44 = arith.constant dense<0> : vector<8xi32>
    %191 = vector.multi_reduction <add>, %190, %cst_44 [1] : vector<8x128xi32> to vector<8xi32>
    %192 = vector.shape_cast %191 : vector<8xi32> to vector<8x1xi32>
    %c112_i32_45 = arith.constant 112 : i32
    %193 = vector.broadcast %c112_i32_45 : i32 to vector<8x1xi32>
    %194 = arith.cmpi sge, %192, %193 : vector<8x1xi32>
    %195 = arith.select %194, %187, %182 : vector<8x1xi1>, vector<8x1xi32>
    %196 = arith.select %194, %183, %187 : vector<8x1xi1>, vector<8x1xi32>
    %197 = arith.subi %195, %196 : vector<8x1xi32>
    %c1_i32_46 = arith.constant 1 : i32
    %198 = vector.broadcast %c1_i32_46 : i32 to vector<8x1xi32>
    %199 = arith.shrsi %197, %198 : vector<8x1xi32>
    %200 = arith.addi %196, %199 : vector<8x1xi32>
    %201 = vector.broadcast %200 : vector<8x1xi32> to vector<8x128xi32>
    %202 = arith.cmpi sle, %12, %201 : vector<8x128xi32>
    %203 = arith.extui %202 : vector<8x128xi1> to vector<8x128xi32>
    %cst_47 = arith.constant dense<0> : vector<8xi32>
    %204 = vector.multi_reduction <add>, %203, %cst_47 [1] : vector<8x128xi32> to vector<8xi32>
    %205 = vector.shape_cast %204 : vector<8xi32> to vector<8x1xi32>
    %c112_i32_48 = arith.constant 112 : i32
    %206 = vector.broadcast %c112_i32_48 : i32 to vector<8x1xi32>
    %207 = arith.cmpi sge, %205, %206 : vector<8x1xi32>
    %208 = arith.select %207, %200, %195 : vector<8x1xi1>, vector<8x1xi32>
    %209 = arith.select %207, %196, %200 : vector<8x1xi1>, vector<8x1xi32>
    %210 = arith.subi %208, %209 : vector<8x1xi32>
    %c1_i32_49 = arith.constant 1 : i32
    %211 = vector.broadcast %c1_i32_49 : i32 to vector<8x1xi32>
    %212 = arith.shrsi %210, %211 : vector<8x1xi32>
    %213 = arith.addi %209, %212 : vector<8x1xi32>
    %214 = vector.broadcast %213 : vector<8x1xi32> to vector<8x128xi32>
    %215 = arith.cmpi sle, %12, %214 : vector<8x128xi32>
    %216 = arith.extui %215 : vector<8x128xi1> to vector<8x128xi32>
    %cst_50 = arith.constant dense<0> : vector<8xi32>
    %217 = vector.multi_reduction <add>, %216, %cst_50 [1] : vector<8x128xi32> to vector<8xi32>
    %218 = vector.shape_cast %217 : vector<8xi32> to vector<8x1xi32>
    %c112_i32_51 = arith.constant 112 : i32
    %219 = vector.broadcast %c112_i32_51 : i32 to vector<8x1xi32>
    %220 = arith.cmpi sge, %218, %219 : vector<8x1xi32>
    %221 = arith.select %220, %213, %208 : vector<8x1xi1>, vector<8x1xi32>
    %222 = arith.select %220, %209, %213 : vector<8x1xi1>, vector<8x1xi32>
    %223 = arith.subi %221, %222 : vector<8x1xi32>
    %c1_i32_52 = arith.constant 1 : i32
    %224 = vector.broadcast %c1_i32_52 : i32 to vector<8x1xi32>
    %225 = arith.shrsi %223, %224 : vector<8x1xi32>
    %226 = arith.addi %222, %225 : vector<8x1xi32>
    %227 = vector.broadcast %226 : vector<8x1xi32> to vector<8x128xi32>
    %228 = arith.cmpi sle, %12, %227 : vector<8x128xi32>
    %229 = arith.extui %228 : vector<8x128xi1> to vector<8x128xi32>
    %cst_53 = arith.constant dense<0> : vector<8xi32>
    %230 = vector.multi_reduction <add>, %229, %cst_53 [1] : vector<8x128xi32> to vector<8xi32>
    %231 = vector.shape_cast %230 : vector<8xi32> to vector<8x1xi32>
    %c112_i32_54 = arith.constant 112 : i32
    %232 = vector.broadcast %c112_i32_54 : i32 to vector<8x1xi32>
    %233 = arith.cmpi sge, %231, %232 : vector<8x1xi32>
    %234 = arith.select %233, %226, %221 : vector<8x1xi1>, vector<8x1xi32>
    %235 = arith.select %233, %222, %226 : vector<8x1xi1>, vector<8x1xi32>
    %236 = arith.subi %234, %235 : vector<8x1xi32>
    %c1_i32_55 = arith.constant 1 : i32
    %237 = vector.broadcast %c1_i32_55 : i32 to vector<8x1xi32>
    %238 = arith.shrsi %236, %237 : vector<8x1xi32>
    %239 = arith.addi %235, %238 : vector<8x1xi32>
    %240 = vector.broadcast %239 : vector<8x1xi32> to vector<8x128xi32>
    %241 = arith.cmpi sle, %12, %240 : vector<8x128xi32>
    %242 = arith.extui %241 : vector<8x128xi1> to vector<8x128xi32>
    %cst_56 = arith.constant dense<0> : vector<8xi32>
    %243 = vector.multi_reduction <add>, %242, %cst_56 [1] : vector<8x128xi32> to vector<8xi32>
    %244 = vector.shape_cast %243 : vector<8xi32> to vector<8x1xi32>
    %c112_i32_57 = arith.constant 112 : i32
    %245 = vector.broadcast %c112_i32_57 : i32 to vector<8x1xi32>
    %246 = arith.cmpi sge, %244, %245 : vector<8x1xi32>
    %247 = arith.select %246, %239, %234 : vector<8x1xi1>, vector<8x1xi32>
    %248 = arith.select %246, %235, %239 : vector<8x1xi1>, vector<8x1xi32>
    %249 = arith.subi %247, %248 : vector<8x1xi32>
    %c1_i32_58 = arith.constant 1 : i32
    %250 = vector.broadcast %c1_i32_58 : i32 to vector<8x1xi32>
    %251 = arith.shrsi %249, %250 : vector<8x1xi32>
    %252 = arith.addi %248, %251 : vector<8x1xi32>
    %253 = vector.broadcast %252 : vector<8x1xi32> to vector<8x128xi32>
    %254 = arith.cmpi sle, %12, %253 : vector<8x128xi32>
    %255 = arith.extui %254 : vector<8x128xi1> to vector<8x128xi32>
    %cst_59 = arith.constant dense<0> : vector<8xi32>
    %256 = vector.multi_reduction <add>, %255, %cst_59 [1] : vector<8x128xi32> to vector<8xi32>
    %257 = vector.shape_cast %256 : vector<8xi32> to vector<8x1xi32>
    %c112_i32_60 = arith.constant 112 : i32
    %258 = vector.broadcast %c112_i32_60 : i32 to vector<8x1xi32>
    %259 = arith.cmpi sge, %257, %258 : vector<8x1xi32>
    %260 = arith.select %259, %252, %247 : vector<8x1xi1>, vector<8x1xi32>
    %261 = arith.select %259, %248, %252 : vector<8x1xi1>, vector<8x1xi32>
    %262 = arith.subi %260, %261 : vector<8x1xi32>
    %c1_i32_61 = arith.constant 1 : i32
    %263 = vector.broadcast %c1_i32_61 : i32 to vector<8x1xi32>
    %264 = arith.shrsi %262, %263 : vector<8x1xi32>
    %265 = arith.addi %261, %264 : vector<8x1xi32>
    %266 = vector.broadcast %265 : vector<8x1xi32> to vector<8x128xi32>
    %267 = arith.cmpi sle, %12, %266 : vector<8x128xi32>
    %268 = arith.extui %267 : vector<8x128xi1> to vector<8x128xi32>
    %cst_62 = arith.constant dense<0> : vector<8xi32>
    %269 = vector.multi_reduction <add>, %268, %cst_62 [1] : vector<8x128xi32> to vector<8xi32>
    %270 = vector.shape_cast %269 : vector<8xi32> to vector<8x1xi32>
    %c112_i32_63 = arith.constant 112 : i32
    %271 = vector.broadcast %c112_i32_63 : i32 to vector<8x1xi32>
    %272 = arith.cmpi sge, %270, %271 : vector<8x1xi32>
    %273 = arith.select %272, %265, %260 : vector<8x1xi1>, vector<8x1xi32>
    %274 = arith.select %272, %261, %265 : vector<8x1xi1>, vector<8x1xi32>
    %275 = arith.subi %273, %274 : vector<8x1xi32>
    %c1_i32_64 = arith.constant 1 : i32
    %276 = vector.broadcast %c1_i32_64 : i32 to vector<8x1xi32>
    %277 = arith.shrsi %275, %276 : vector<8x1xi32>
    %278 = arith.addi %274, %277 : vector<8x1xi32>
    %279 = vector.broadcast %278 : vector<8x1xi32> to vector<8x128xi32>
    %280 = arith.cmpi sle, %12, %279 : vector<8x128xi32>
    %281 = arith.extui %280 : vector<8x128xi1> to vector<8x128xi32>
    %cst_65 = arith.constant dense<0> : vector<8xi32>
    %282 = vector.multi_reduction <add>, %281, %cst_65 [1] : vector<8x128xi32> to vector<8xi32>
    %283 = vector.shape_cast %282 : vector<8xi32> to vector<8x1xi32>
    %c112_i32_66 = arith.constant 112 : i32
    %284 = vector.broadcast %c112_i32_66 : i32 to vector<8x1xi32>
    %285 = arith.cmpi sge, %283, %284 : vector<8x1xi32>
    %286 = arith.select %285, %278, %273 : vector<8x1xi1>, vector<8x1xi32>
    %287 = arith.select %285, %274, %278 : vector<8x1xi1>, vector<8x1xi32>
    %288 = arith.subi %286, %287 : vector<8x1xi32>
    %c1_i32_67 = arith.constant 1 : i32
    %289 = vector.broadcast %c1_i32_67 : i32 to vector<8x1xi32>
    %290 = arith.shrsi %288, %289 : vector<8x1xi32>
    %291 = arith.addi %287, %290 : vector<8x1xi32>
    %292 = vector.broadcast %291 : vector<8x1xi32> to vector<8x128xi32>
    %293 = arith.cmpi sle, %12, %292 : vector<8x128xi32>
    %294 = arith.extui %293 : vector<8x128xi1> to vector<8x128xi32>
    %cst_68 = arith.constant dense<0> : vector<8xi32>
    %295 = vector.multi_reduction <add>, %294, %cst_68 [1] : vector<8x128xi32> to vector<8xi32>
    %296 = vector.shape_cast %295 : vector<8xi32> to vector<8x1xi32>
    %c112_i32_69 = arith.constant 112 : i32
    %297 = vector.broadcast %c112_i32_69 : i32 to vector<8x1xi32>
    %298 = arith.cmpi sge, %296, %297 : vector<8x1xi32>
    %299 = arith.select %298, %291, %286 : vector<8x1xi1>, vector<8x1xi32>
    %300 = arith.select %298, %287, %291 : vector<8x1xi1>, vector<8x1xi32>
    %301 = arith.subi %299, %300 : vector<8x1xi32>
    %c1_i32_70 = arith.constant 1 : i32
    %302 = vector.broadcast %c1_i32_70 : i32 to vector<8x1xi32>
    %303 = arith.shrsi %301, %302 : vector<8x1xi32>
    %304 = arith.addi %300, %303 : vector<8x1xi32>
    %305 = vector.broadcast %304 : vector<8x1xi32> to vector<8x128xi32>
    %306 = arith.cmpi sle, %12, %305 : vector<8x128xi32>
    %307 = arith.extui %306 : vector<8x128xi1> to vector<8x128xi32>
    %cst_71 = arith.constant dense<0> : vector<8xi32>
    %308 = vector.multi_reduction <add>, %307, %cst_71 [1] : vector<8x128xi32> to vector<8xi32>
    %309 = vector.shape_cast %308 : vector<8xi32> to vector<8x1xi32>
    %c112_i32_72 = arith.constant 112 : i32
    %310 = vector.broadcast %c112_i32_72 : i32 to vector<8x1xi32>
    %311 = arith.cmpi sge, %309, %310 : vector<8x1xi32>
    %312 = arith.select %311, %304, %299 : vector<8x1xi1>, vector<8x1xi32>
    %313 = arith.select %311, %300, %304 : vector<8x1xi1>, vector<8x1xi32>
    %314 = arith.subi %312, %313 : vector<8x1xi32>
    %c1_i32_73 = arith.constant 1 : i32
    %315 = vector.broadcast %c1_i32_73 : i32 to vector<8x1xi32>
    %316 = arith.shrsi %314, %315 : vector<8x1xi32>
    %317 = arith.addi %313, %316 : vector<8x1xi32>
    %318 = vector.broadcast %317 : vector<8x1xi32> to vector<8x128xi32>
    %319 = arith.cmpi sle, %12, %318 : vector<8x128xi32>
    %320 = arith.extui %319 : vector<8x128xi1> to vector<8x128xi32>
    %cst_74 = arith.constant dense<0> : vector<8xi32>
    %321 = vector.multi_reduction <add>, %320, %cst_74 [1] : vector<8x128xi32> to vector<8xi32>
    %322 = vector.shape_cast %321 : vector<8xi32> to vector<8x1xi32>
    %c112_i32_75 = arith.constant 112 : i32
    %323 = vector.broadcast %c112_i32_75 : i32 to vector<8x1xi32>
    %324 = arith.cmpi sge, %322, %323 : vector<8x1xi32>
    %325 = arith.select %324, %317, %312 : vector<8x1xi1>, vector<8x1xi32>
    %326 = arith.select %324, %313, %317 : vector<8x1xi1>, vector<8x1xi32>
    %327 = arith.subi %325, %326 : vector<8x1xi32>
    %c1_i32_76 = arith.constant 1 : i32
    %328 = vector.broadcast %c1_i32_76 : i32 to vector<8x1xi32>
    %329 = arith.shrsi %327, %328 : vector<8x1xi32>
    %330 = arith.addi %326, %329 : vector<8x1xi32>
    %331 = vector.broadcast %330 : vector<8x1xi32> to vector<8x128xi32>
    %332 = arith.cmpi sle, %12, %331 : vector<8x128xi32>
    %333 = arith.extui %332 : vector<8x128xi1> to vector<8x128xi32>
    %cst_77 = arith.constant dense<0> : vector<8xi32>
    %334 = vector.multi_reduction <add>, %333, %cst_77 [1] : vector<8x128xi32> to vector<8xi32>
    %335 = vector.shape_cast %334 : vector<8xi32> to vector<8x1xi32>
    %c112_i32_78 = arith.constant 112 : i32
    %336 = vector.broadcast %c112_i32_78 : i32 to vector<8x1xi32>
    %337 = arith.cmpi sge, %335, %336 : vector<8x1xi32>
    %338 = arith.select %337, %330, %325 : vector<8x1xi1>, vector<8x1xi32>
    %339 = arith.select %337, %326, %330 : vector<8x1xi1>, vector<8x1xi32>
    %340 = arith.subi %338, %339 : vector<8x1xi32>
    %c1_i32_79 = arith.constant 1 : i32
    %341 = vector.broadcast %c1_i32_79 : i32 to vector<8x1xi32>
    %342 = arith.shrsi %340, %341 : vector<8x1xi32>
    %343 = arith.addi %339, %342 : vector<8x1xi32>
    %344 = vector.broadcast %343 : vector<8x1xi32> to vector<8x128xi32>
    %345 = arith.cmpi sle, %12, %344 : vector<8x128xi32>
    %346 = arith.extui %345 : vector<8x128xi1> to vector<8x128xi32>
    %cst_80 = arith.constant dense<0> : vector<8xi32>
    %347 = vector.multi_reduction <add>, %346, %cst_80 [1] : vector<8x128xi32> to vector<8xi32>
    %348 = vector.shape_cast %347 : vector<8xi32> to vector<8x1xi32>
    %c112_i32_81 = arith.constant 112 : i32
    %349 = vector.broadcast %c112_i32_81 : i32 to vector<8x1xi32>
    %350 = arith.cmpi sge, %348, %349 : vector<8x1xi32>
    %351 = arith.select %350, %343, %338 : vector<8x1xi1>, vector<8x1xi32>
    %352 = arith.select %350, %339, %343 : vector<8x1xi1>, vector<8x1xi32>
    %353 = arith.subi %351, %352 : vector<8x1xi32>
    %c1_i32_82 = arith.constant 1 : i32
    %354 = vector.broadcast %c1_i32_82 : i32 to vector<8x1xi32>
    %355 = arith.shrsi %353, %354 : vector<8x1xi32>
    %356 = arith.addi %352, %355 : vector<8x1xi32>
    %357 = vector.broadcast %356 : vector<8x1xi32> to vector<8x128xi32>
    %358 = arith.cmpi sle, %12, %357 : vector<8x128xi32>
    %359 = arith.extui %358 : vector<8x128xi1> to vector<8x128xi32>
    %cst_83 = arith.constant dense<0> : vector<8xi32>
    %360 = vector.multi_reduction <add>, %359, %cst_83 [1] : vector<8x128xi32> to vector<8xi32>
    %361 = vector.shape_cast %360 : vector<8xi32> to vector<8x1xi32>
    %c112_i32_84 = arith.constant 112 : i32
    %362 = vector.broadcast %c112_i32_84 : i32 to vector<8x1xi32>
    %363 = arith.cmpi sge, %361, %362 : vector<8x1xi32>
    %364 = arith.select %363, %356, %351 : vector<8x1xi1>, vector<8x1xi32>
    %365 = arith.select %363, %352, %356 : vector<8x1xi1>, vector<8x1xi32>
    %366 = arith.subi %364, %365 : vector<8x1xi32>
    %c1_i32_85 = arith.constant 1 : i32
    %367 = vector.broadcast %c1_i32_85 : i32 to vector<8x1xi32>
    %368 = arith.shrsi %366, %367 : vector<8x1xi32>
    %369 = arith.addi %365, %368 : vector<8x1xi32>
    %370 = vector.broadcast %369 : vector<8x1xi32> to vector<8x128xi32>
    %371 = arith.cmpi sle, %12, %370 : vector<8x128xi32>
    %372 = arith.extui %371 : vector<8x128xi1> to vector<8x128xi32>
    %cst_86 = arith.constant dense<0> : vector<8xi32>
    %373 = vector.multi_reduction <add>, %372, %cst_86 [1] : vector<8x128xi32> to vector<8xi32>
    %374 = vector.shape_cast %373 : vector<8xi32> to vector<8x1xi32>
    %c112_i32_87 = arith.constant 112 : i32
    %375 = vector.broadcast %c112_i32_87 : i32 to vector<8x1xi32>
    %376 = arith.cmpi sge, %374, %375 : vector<8x1xi32>
    %377 = arith.select %376, %369, %364 : vector<8x1xi1>, vector<8x1xi32>
    %378 = arith.select %376, %365, %369 : vector<8x1xi1>, vector<8x1xi32>
    %379 = arith.subi %377, %378 : vector<8x1xi32>
    %c1_i32_88 = arith.constant 1 : i32
    %380 = vector.broadcast %c1_i32_88 : i32 to vector<8x1xi32>
    %381 = arith.shrsi %379, %380 : vector<8x1xi32>
    %382 = arith.addi %378, %381 : vector<8x1xi32>
    %383 = vector.broadcast %382 : vector<8x1xi32> to vector<8x128xi32>
    %384 = arith.cmpi sle, %12, %383 : vector<8x128xi32>
    %385 = arith.extui %384 : vector<8x128xi1> to vector<8x128xi32>
    %cst_89 = arith.constant dense<0> : vector<8xi32>
    %386 = vector.multi_reduction <add>, %385, %cst_89 [1] : vector<8x128xi32> to vector<8xi32>
    %387 = vector.shape_cast %386 : vector<8xi32> to vector<8x1xi32>
    %c112_i32_90 = arith.constant 112 : i32
    %388 = vector.broadcast %c112_i32_90 : i32 to vector<8x1xi32>
    %389 = arith.cmpi sge, %387, %388 : vector<8x1xi32>
    %390 = arith.select %389, %382, %377 : vector<8x1xi1>, vector<8x1xi32>
    %391 = arith.select %389, %378, %382 : vector<8x1xi1>, vector<8x1xi32>
    %392 = arith.subi %390, %391 : vector<8x1xi32>
    %c1_i32_91 = arith.constant 1 : i32
    %393 = vector.broadcast %c1_i32_91 : i32 to vector<8x1xi32>
    %394 = arith.shrsi %392, %393 : vector<8x1xi32>
    %395 = arith.addi %391, %394 : vector<8x1xi32>
    %396 = vector.broadcast %395 : vector<8x1xi32> to vector<8x128xi32>
    %397 = arith.cmpi sle, %12, %396 : vector<8x128xi32>
    %398 = arith.extui %397 : vector<8x128xi1> to vector<8x128xi32>
    %cst_92 = arith.constant dense<0> : vector<8xi32>
    %399 = vector.multi_reduction <add>, %398, %cst_92 [1] : vector<8x128xi32> to vector<8xi32>
    %400 = vector.shape_cast %399 : vector<8xi32> to vector<8x1xi32>
    %c112_i32_93 = arith.constant 112 : i32
    %401 = vector.broadcast %c112_i32_93 : i32 to vector<8x1xi32>
    %402 = arith.cmpi sge, %400, %401 : vector<8x1xi32>
    %403 = arith.select %402, %395, %390 : vector<8x1xi1>, vector<8x1xi32>
    %404 = vector.broadcast %403 : vector<8x1xi32> to vector<8x128xi32>
    %405 = arith.cmpi sge, %12, %404 : vector<8x128xi32>
    %406 = arith.extui %405 : vector<8x128xi1> to vector<8x128xi32>
    %407 = arith.sitofp %406 : vector<8x128xi32> to vector<8x128xf32>
    %c0_94 = arith.constant 0 : index
    %c0_95 = arith.constant 0 : index
    %408 = vector.load %arg6[%c0_94, %c0_95] : memref<8x128xf32, #tpu.memory_space<vmem>>, vector<8x128xf32>
    tpu.vector_store %arg6[%c0_94, %c0_95], %11 {strides = array<i32>} : memref<8x128xf32, #tpu.memory_space<vmem>>, vector<8x128xf32>,
    %c0_96 = arith.constant 0 : index
    %c0_97 = arith.constant 0 : index
    %409 = vector.load %arg7[%c0_96, %c0_97] : memref<8x128xf32, #tpu.memory_space<vmem>>, vector<8x128xf32>
    tpu.vector_store %arg7[%c0_96, %c0_97], %407 {strides = array<i32>} : memref<8x128xf32, #tpu.memory_space<vmem>>, vector<8x128xf32>,
    %410 = arith.truncf %407 : vector<8x128xf32> to vector<8x128xbf16>
    %c0_98 = arith.constant 0 : index
    %c0_99 = arith.constant 0 : index
    %411 = vector.load %arg4[%c0_98, %c0_99] : memref<128x64xbf16, #tpu.memory_space<vmem>>, vector<128x64xbf16>
    %cst_100 = arith.constant dense<0.000000e+00> : vector<8x64xf32>
    %412 = tpu.matmul %410, %411, %cst_100 {dimension_numbers = #tpu.dot_dimension_numbers<[1], [0], [0], [1], [0, 0, 1, 1], [], []>} : vector<8x128xbf16>, vector<128x64xbf16>, vector<8x64xf32> -> vector<8x64xf32>
    %c0_101 = arith.constant 0 : index
    %c0_102 = arith.constant 0 : index
    %413 = vector.load %arg5[%c0_101, %c0_102] : memref<8x64xf32, #tpu.memory_space<vmem>>, vector<8x64xf32>
    tpu.vector_store %arg5[%c0_101, %c0_102], %412 {strides = array<i32>} : memref<8x64xf32, #tpu.memory_space<vmem>>, vector<8x64xf32>,
    %c8_i32 = arith.constant 8 : i32
    %414 = arith.muli %arg0, %c8_i32 : i32
    %415 = tpu.iota {dimensions = array<i32: 0>} : vector<8x1xi32>
    %416 = vector.broadcast %414 : i32 to vector<8x1xi32>
    %417 = arith.addi %416, %415 : vector<8x1xi32>
    %c16_i32 = arith.constant 16 : i32
    %418 = vector.broadcast %c16_i32 : i32 to vector<8x1xi32>
    %419 = arith.cmpi slt, %417, %418 : vector<8x1xi32>
    %420 = arith.subf %11, %407 : vector<8x128xf32>
    %421 = arith.subf %412, %0 : vector<8x64xf32>
    %422 = arith.mulf %420, %420 : vector<8x128xf32>
    %cst_103 = arith.constant 0.000000e+00 : f32
    %423 = vector.shape_cast %419 : vector<8x1xi1> to vector<8x1xi1>
    %424 = vector.broadcast %423 : vector<8x1xi1> to vector<8x128xi1>
    %425 = vector.broadcast %cst_103 : f32 to vector<8x128xf32>
    %426 = arith.select %424, %422, %425 : vector<8x128xi1>, vector<8x128xf32>
    %cst_104 = arith.constant dense<0.000000e+00> : vector<128xf32>
    %427 = vector.multi_reduction <add>, %426, %cst_104 [0] : vector<8x128xf32> to vector<128xf32>
    %428 = vector.shape_cast %427 : vector<128xf32> to vector<1x128xf32>
    %429 = arith.mulf %421, %421 : vector<8x64xf32>
    %cst_105 = arith.constant 0.000000e+00 : f32
    %430 = vector.shape_cast %419 : vector<8x1xi1> to vector<8x1xi1>
    %431 = vector.broadcast %430 : vector<8x1xi1> to vector<8x64xi1>
    %432 = vector.broadcast %cst_105 : f32 to vector<8x64xf32>
    %433 = arith.select %431, %429, %432 : vector<8x64xi1>, vector<8x64xf32>
    %cst_106 = arith.constant dense<0.000000e+00> : vector<64xf32>
    %434 = vector.multi_reduction <add>, %433, %cst_106 [0] : vector<8x64xf32> to vector<64xf32>
    %435 = vector.shape_cast %434 : vector<64xf32> to vector<1x64xf32>
    %436 = vector.shape_cast %428 : vector<1x128xf32> to vector<1x1x128xf32>
    %c0_107 = arith.constant 0 : index
    %c0_108 = arith.constant 0 : index
    %c0_109 = arith.constant 0 : index
    %437 = vector.load %arg8[%c0_107, %c0_108, %c0_109] : memref<1x1x128xf32, #tpu.memory_space<vmem>>, vector<1x1x128xf32>
    tpu.vector_store %arg8[%c0_107, %c0_108, %c0_109], %436 {strides = array<i32>} : memref<1x1x128xf32, #tpu.memory_space<vmem>>, vector<1x1x128xf32>,
    %438 = vector.shape_cast %435 : vector<1x64xf32> to vector<1x1x64xf32>
    %c0_110 = arith.constant 0 : index
    %c0_111 = arith.constant 0 : index
    %c0_112 = arith.constant 0 : index
    %439 = vector.load %arg9[%c0_110, %c0_111, %c0_112] : memref<1x1x64xf32, #tpu.memory_space<vmem>>, vector<1x1x64xf32>
    tpu.vector_store %arg9[%c0_110, %c0_111, %c0_112], %438 {strides = array<i32>} : memref<1x1x64xf32, #tpu.memory_space<vmem>>, vector<1x1x64xf32>,
    return
  }
  func.func @transform_0(%arg0: i32) -> (i32, i32) {
    %c0_i32 = arith.constant 0 : i32
    %c0_i32_0 = arith.constant 0 : i32
    return %arg0, %c0_i32 : i32, i32
  }
  func.func @transform_1(%arg0: i32) -> (i32, i32) {
    %c0_i32 = arith.constant 0 : i32
    %c0_i32_0 = arith.constant 0 : i32
    %c0_i32_1 = arith.constant 0 : i32
    return %c0_i32, %c0_i32_0 : i32, i32
  }
  func.func @transform_2(%arg0: i32) -> (i32, i32) {
    %c0_i32 = arith.constant 0 : i32
    %c0_i32_0 = arith.constant 0 : i32
    %c0_i32_1 = arith.constant 0 : i32
    return %c0_i32, %c0_i32_0 : i32, i32
  }
  func.func @transform_3(%arg0: i32) -> (i32, i32) {
    %c0_i32 = arith.constant 0 : i32
    %c0_i32_0 = arith.constant 0 : i32
    %c0_i32_1 = arith.constant 0 : i32
    return %c0_i32, %c0_i32_0 : i32, i32
  }
  func.func @transform_4(%arg0: i32) -> (i32, i32) {
    %c0_i32 = arith.constant 0 : i32
    %c0_i32_0 = arith.constant 0 : i32
    return %arg0, %c0_i32 : i32, i32
  }
  func.func @transform_5(%arg0: i32) -> (i32, i32) {
    %c0_i32 = arith.constant 0 : i32
    %c0_i32_0 = arith.constant 0 : i32
    return %arg0, %c0_i32 : i32, i32
  }
  func.func @transform_6(%arg0: i32) -> (i32, i32) {
    %c0_i32 = arith.constant 0 : i32
    %c0_i32_0 = arith.constant 0 : i32
    return %arg0, %c0_i32 : i32, i32
  }
  func.func @transform_7(%arg0: i32) -> (i32, i32, i32) {
    %c0_i32 = arith.constant 0 : i32
    %c0_i32_0 = arith.constant 0 : i32
    %c0_i32_1 = arith.constant 0 : i32
    return %arg0, %c0_i32, %c0_i32_0 : i32, i32, i32
  }
  func.func @transform_8(%arg0: i32) -> (i32, i32, i32) {
    %c0_i32 = arith.constant 0 : i32
    %c0_i32_0 = arith.constant 0 : i32
    %c0_i32_1 = arith.constant 0 : i32
    return %arg0, %c0_i32, %c0_i32_0 : i32, i32, i32
  }
}

</mosaic_0001>

<llo_original>
// kernel: tpu_custom_call.1
$region0: #{tpu_custom_call.1}
  #allocation0 [shape = 'u32[]', space=smem, size = 0x4, offset = 0x4, fixed_abs, tag = 'smem constant byte address 0x4 - core index']
  #allocation1 [shape = 'u32[144,128]{1,0:T(1,128)}', space=vmem, size = 0x12000, scoped, tag = 'internal scratch']
  %s0 = inlined_call_operand.vmem [shape: f32[16,64], index: 0, kind: input, shape index: {}]
  %s1 = inlined_call_operand.vmem [shape: bf16[64,128], index: 1, kind: input, shape index: {}]
  %s2 = inlined_call_operand.vmem [shape: f32[1,128], index: 2, kind: input, shape index: {}]
  %s3 = inlined_call_operand.vmem [shape: bf16[128,64], index: 3, kind: input, shape index: {}]
  %s4 = inlined_call_operand.hbm [shape: f32[16,64], index: 4, kind: output, shape index: {0}]
  %s5 = inlined_call_operand.hbm [shape: f32[16,128], index: 5, kind: output, shape index: {1}]
  %s6 = inlined_call_operand.hbm [shape: f32[16,128], index: 6, kind: output, shape index: {2}]
  %s7 = inlined_call_operand.hbm [shape: f32[2,1,128], index: 7, kind: output, shape index: {3}]
  %s8 = inlined_call_operand.hbm [shape: f32[2,1,64], index: 8, kind: output, shape index: {4}]
  %9 = xla_tuple %s4, %s5, %s6, %s7, %s8
  %s10 = sld [smem:[#allocation0]]
  $region81: #{tpu_custom_call.1} parent=0
    _
  %s12 = ssub.s32 1, %s10
  %s13 = scalar_select 0, %s12, %s10
  $region1: #{tpu_custom_call.1} parent=0
    #allocation2 [shape = 'u8[8192]{0}', space=vmem, size = 0x2000, scoped, tag = 'output window, operand 0']
    #allocation3 [shape = 's32[2]{0}', space=sflag, size = 0x8, scoped, tag = 'scoped memory for tpu_custom_call.1']
    #allocation4 [shape = 'u8[8192]{0}', space=vmem, size = 0x2000, scoped, tag = 'output window, operand 1']
    #allocation5 [shape = 's32[2]{0}', space=sflag, size = 0x8, scoped, tag = 'scoped memory for tpu_custom_call.1']
    #allocation6 [shape = 'u8[8192]{0}', space=vmem, size = 0x2000, scoped, tag = 'output window, operand 2']
    #allocation7 [shape = 'u8[1024]{0}', space=vmem, size = 0x400, scoped, tag = 'output window, operand 3']
    #allocation8 [shape = 's32[2]{0}', space=sflag, size = 0x8, scoped, tag = 'scoped memory for tpu_custom_call.1']
    #allocation9 [shape = 'u8[1024]{0}', space=vmem, size = 0x400, scoped, tag = 'output window, operand 4']
    %14 = vsyncpa [#allocation3], 0
    %s15 = scalar_lea.sflag [#allocation3], 1
    %16 = vsyncpa %s15, 0
    %17 = vsyncpa [#allocation5], 0
    %s18 = scalar_lea.sflag [#allocation5], 1
    %19 = vsyncpa %s18, 0
    %20 = vsyncpa [#allocation8], 0
    %s21 = scalar_lea.sflag [#allocation8], 1
    %22 = vsyncpa %s21, 0
    loop: start=0, step=1, limit=4
    $region2: #{tpu_custom_call.1} parent=1 // loop_pre_header
      _
    $region3: #{tpu_custom_call.1} parent=1 // loop_header
      %s24 = sphi 0, %s28
      %p25 = scmp.ge.s32.totalorder %s24, 4
      %s34 = sphi 0, %s36
      %s37 = sphi 0, %s34
      %s38 = sphi 0, %s37
      %s54 = sphi 0, %s38
      %s58 = sphi 0, %s58
      %s60 = sphi 0, %s58
      %s61 = sphi 0, %s60
      %s75 = sphi 0, %s61
      %s79 = sphi 0, %s79
      %s81 = sphi 0, %s79
      %s82 = sphi 0, %s81
      %s96 = sphi 0, %s82
      %s100 = sphi 0, %s100
      %s102 = sphi 0, %s100
      %s103 = sphi 0, %s102
      %s117 = sphi 0, %s103
      %s123 = sphi 0, %s125
      %s126 = sphi 0, %s123
      %s127 = sphi 0, %s126
      %s143 = sphi 0, %s127
      %s149 = sphi 0, %s151
      %s152 = sphi 0, %s149
      %s153 = sphi 0, %s152
      %s169 = sphi 0, %s153
      %s175 = sphi 0, %s177
      %s178 = sphi 0, %s175
      %s179 = sphi 0, %s178
      %s195 = sphi 0, %s179
      %s201 = sphi 0, %s203
      %s204 = sphi 0, %s201
      %s205 = sphi 0, %s204
      %s221 = sphi 0, %s205
      %s227 = sphi 0, %s229
      %s230 = sphi 0, %s227
      %s231 = sphi 0, %s230
      %s247 = sphi 0, %s231
    $region4: #{tpu_custom_call.1} parent=1 // loop_header_branch
      %27 = sbr.rel (%p25) target = $region8
    $region5: #{tpu_custom_call.1} parent=1 // loop_body
      %s29 = ssub.s32 %s24, 1
      %s30 = ssub.s32 %s24, 2
      %s31 = sadd.s32 %s24, 1
      %s32 = ssub.s32 %s24, %s31
      %p33 = scmp.eq.s32.totalorder %s32, 0
      %s35 = sadd.s32 %s34, 1
      %s36 = scalar_select %p33, %s34, %s35
      %p39 = pneg %p33
      %p40 = scmp.eq.s32.totalorder %s24, 1
      %p41 = por %p39, %p40
      %p42 = scmp.ne.s32.totalorder %s34, %s37
      %p43 = scmp.eq.s32.totalorder %s24, 0
      %p44 = por %p42, %p43
      %p45 = scmp.ne.s32.totalorder %s34, %s37
      %p46 = scmp.eq.s32.totalorder %s29, 1
      %p47 = por %p45, %p46
      %p48 = scmp.ne.s32.totalorder %s37, %s38
      %p49 = scmp.eq.s32.totalorder %s29, 0
      %p50 = por %p48, %p49
      %p51 = scmp.ne.s32.totalorder %s37, %s38
      %p52 = scmp.eq.s32.totalorder %s30, 1
      %p53 = por %p51, %p52
      %p55 = scmp.ne.s32.totalorder %s38, %s54
      %p56 = scmp.eq.s32.totalorder %s30, 0
      %p57 = por %p55, %p56
      %s59 = sadd.s32 %s58, 1
      %p62 = scmp.eq.s32.totalorder %s24, 1
      %p63 = scmp.ne.s32.totalorder %s58, %s60
      %p64 = scmp.eq.s32.totalorder %s24, 0
      %p65 = por %p63, %p64
      %p66 = scmp.ne.s32.totalorder %s58, %s60
      %p67 = scmp.eq.s32.totalorder %s29, 1
      %p68 = por %p66, %p67
      %p69 = scmp.ne.s32.totalorder %s60, %s61
      %p70 = scmp.eq.s32.totalorder %s29, 0
      %p71 = por %p69, %p70
      %p72 = scmp.ne.s32.totalorder %s60, %s61
      %p73 = scmp.eq.s32.totalorder %s30, 1
      %p74 = por %p72, %p73
      %p76 = scmp.ne.s32.totalorder %s61, %s75
      %p77 = scmp.eq.s32.totalorder %s30, 0
      %p78 = por %p76, %p77
      %s80 = sadd.s32 %s79, 1
      %p83 = scmp.eq.s32.totalorder %s24, 1
      %p84 = scmp.ne.s32.totalorder %s79, %s81
      %p85 = scmp.eq.s32.totalorder %s24, 0
      %p86 = por %p84, %p85
      %p87 = scmp.ne.s32.totalorder %s79, %s81
      %p88 = scmp.eq.s32.totalorder %s29, 1
      %p89 = por %p87, %p88
      %p90 = scmp.ne.s32.totalorder %s81, %s82
      %p91 = scmp.eq.s32.totalorder %s29, 0
      %p92 = por %p90, %p91
      %p93 = scmp.ne.s32.totalorder %s81, %s82
      %p94 = scmp.eq.s32.totalorder %s30, 1
      %p95 = por %p93, %p94
      %p97 = scmp.ne.s32.totalorder %s82, %s96
      %p98 = scmp.eq.s32.totalorder %s30, 0
      %p99 = por %p97, %p98
      %s101 = sadd.s32 %s100, 1
      %p104 = scmp.eq.s32.totalorder %s24, 1
      %p105 = scmp.ne.s32.totalorder %s100, %s102
      %p106 = scmp.eq.s32.totalorder %s24, 0
      %p107 = por %p105, %p106
      %p108 = scmp.ne.s32.totalorder %s100, %s102
      %p109 = scmp.eq.s32.totalorder %s29, 1
      %p110 = por %p108, %p109
      %p111 = scmp.ne.s32.totalorder %s102, %s103
      %p112 = scmp.eq.s32.totalorder %s29, 0
      %p113 = por %p111, %p112
      %p114 = scmp.ne.s32.totalorder %s102, %s103
      %p115 = scmp.eq.s32.totalorder %s30, 1
      %p116 = por %p114, %p115
      %p118 = scmp.ne.s32.totalorder %s103, %s117
      %p119 = scmp.eq.s32.totalorder %s30, 0
      %p120 = por %p118, %p119
      %s121 = ssub.s32 %s24, %s31
      %p122 = scmp.eq.s32.totalorder %s121, 0
      %s124 = sadd.s32 %s123, 1
      %s125 = scalar_select %p122, %s123, %s124
      %p128 = pneg %p122
      %p129 = scmp.eq.s32.totalorder %s24, 1
      %p130 = por %p128, %p129
      %p131 = scmp.ne.s32.totalorder %s123, %s126
      %p132 = scmp.eq.s32.totalorder %s24, 0
      %p133 = por %p131, %p132
      %p134 = scmp.ne.s32.totalorder %s123, %s126
      %p135 = scmp.eq.s32.totalorder %s29, 1
      %p136 = por %p134, %p135
      %p137 = scmp.ne.s32.totalorder %s126, %s127
      %p138 = scmp.eq.s32.totalorder %s29, 0
      %p139 = por %p137, %p138
      %p140 = scmp.ne.s32.totalorder %s126, %s127
      %p141 = scmp.eq.s32.totalorder %s30, 1
      %p142 = por %p140, %p141
      %p144 = scmp.ne.s32.totalorder %s127, %s143
      %p145 = scmp.eq.s32.totalorder %s30, 0
      %p146 = por %p144, %p145
      %s147 = ssub.s32 %s24, %s31
      %p148 = scmp.eq.s32.totalorder %s147, 0
      %s150 = sadd.s32 %s149, 1
      %s151 = scalar_select %p148, %s149, %s150
      %p154 = pneg %p148
      %p155 = scmp.eq.s32.totalorder %s24, 1
      %p156 = por %p154, %p155
      %p157 = scmp.ne.s32.totalorder %s149, %s152
      %p158 = scmp.eq.s32.totalorder %s24, 0
      %p159 = por %p157, %p158
      %p160 = scmp.ne.s32.totalorder %s149, %s152
      %p161 = scmp.eq.s32.totalorder %s29, 1
      %p162 = por %p160, %p161
      %p163 = scmp.ne.s32.totalorder %s152, %s153
      %p164 = scmp.eq.s32.totalorder %s29, 0
      %p165 = por %p163, %p164
      %p166 = scmp.ne.s32.totalorder %s152, %s153
      %p167 = scmp.eq.s32.totalorder %s30, 1
      %p168 = por %p166, %p167
      %p170 = scmp.ne.s32.totalorder %s153, %s169
      %p171 = scmp.eq.s32.totalorder %s30, 0
      %p172 = por %p170, %p171
      %s173 = ssub.s32 %s24, %s31
      %p174 = scmp.eq.s32.totalorder %s173, 0
      %s176 = sadd.s32 %s175, 1
      %s177 = scalar_select %p174, %s175, %s176
      %p180 = pneg %p174
      %p181 = scmp.eq.s32.totalorder %s24, 1
      %p182 = por %p180, %p181
      %p183 = scmp.ne.s32.totalorder %s175, %s178
      %p184 = scmp.eq.s32.totalorder %s24, 0
      %p185 = por %p183, %p184
      %p186 = scmp.ne.s32.totalorder %s175, %s178
      %p187 = scmp.eq.s32.totalorder %s29, 1
      %p188 = por %p186, %p187
      %p189 = scmp.ne.s32.totalorder %s178, %s179
      %p190 = scmp.eq.s32.totalorder %s29, 0
      %p191 = por %p189, %p190
      %p192 = scmp.ne.s32.totalorder %s178, %s179
      %p193 = scmp.eq.s32.totalorder %s30, 1
      %p194 = por %p192, %p193
      %p196 = scmp.ne.s32.totalorder %s179, %s195
      %p197 = scmp.eq.s32.totalorder %s30, 0
      %p198 = por %p196, %p197
      %s199 = ssub.s32 %s24, %s31
      %p200 = scmp.eq.s32.totalorder %s199, 0
      %s202 = sadd.s32 %s201, 1
      %s203 = scalar_select %p200, %s201, %s202
      %p206 = pneg %p200
      %p207 = scmp.eq.s32.totalorder %s24, 1
      %p208 = por %p206, %p207
      %p209 = scmp.ne.s32.totalorder %s201, %s204
      %p210 = scmp.eq.s32.totalorder %s24, 0
      %p211 = por %p209, %p210
      %p212 = scmp.ne.s32.totalorder %s201, %s204
      %p213 = scmp.eq.s32.totalorder %s29, 1
      %p214 = por %p212, %p213
      %p215 = scmp.ne.s32.totalorder %s204, %s205
      %p216 = scmp.eq.s32.totalorder %s29, 0
      %p217 = por %p215, %p216
      %p218 = scmp.ne.s32.totalorder %s204, %s205
      %p219 = scmp.eq.s32.totalorder %s30, 1
      %p220 = por %p218, %p219
      %p222 = scmp.ne.s32.totalorder %s205, %s221
      %p223 = scmp.eq.s32.totalorder %s30, 0
      %p224 = por %p222, %p223
      %s225 = ssub.s32 %s24, %s31
      %p226 = scmp.eq.s32.totalorder %s225, 0
      %s228 = sadd.s32 %s227, 1
      %s229 = scalar_select %p226, %s227, %s228
      %p232 = pneg %p226
      %p233 = scmp.eq.s32.totalorder %s24, 1
      %p234 = por %p232, %p233
      %p235 = scmp.ne.s32.totalorder %s227, %s230
      %p236 = scmp.eq.s32.totalorder %s24, 0
      %p237 = por %p235, %p236
      %p238 = scmp.ne.s32.totalorder %s227, %s230
      %p239 = scmp.eq.s32.totalorder %s29, 1
      %p240 = por %p238, %p239
      %p241 = scmp.ne.s32.totalorder %s230, %s231
      %p242 = scmp.eq.s32.totalorder %s29, 0
      %p243 = por %p241, %p242
      %p244 = scmp.ne.s32.totalorder %s230, %s231
      %p245 = scmp.eq.s32.totalorder %s30, 1
      %p246 = por %p244, %p245
      %p248 = scmp.ne.s32.totalorder %s231, %s247
      %p249 = scmp.eq.s32.totalorder %s30, 0
      %p250 = por %p248, %p249
      %p251 = scmp.le.s32.totalorder 1, %s24
      %p252 = scmp.lt.s32.totalorder %s24, 3
      %p253 = pnand %p251, %p252
      %p254 = pneg %p253
      // Predicated region
      $region9: #{tpu_custom_call.1} parent=5 // pred_check
        _
      $region10: #{tpu_custom_call.1} parent=5 // pred_check_branch
        %256 = sbr.rel (%p253) target = $region12
      $region11: #{tpu_custom_call.1} parent=5 // pred_region
        %s257 = ssub.s32 %s24, 1
        // Predicated region
        $region13: #{tpu_custom_call.1} parent=11 // pred_check
          %p258 = pneg %p71
        $region14: #{tpu_custom_call.1} parent=11 // pred_check_branch
          %260 = sbr.rel (%p258) target = $region16
        $region15: #{tpu_custom_call.1} parent=11 // pred_region
          _
        $region16: #{tpu_custom_call.1} parent=11 // pred_fallthru
          _
        // Predicated region
        $region17: #{tpu_custom_call.1} parent=11 // pred_check
          %p261 = pneg %p92
        $region18: #{tpu_custom_call.1} parent=11 // pred_check_branch
          %263 = sbr.rel (%p261) target = $region20
        $region19: #{tpu_custom_call.1} parent=11 // pred_region
          _
        $region20: #{tpu_custom_call.1} parent=11 // pred_fallthru
          _
        // Predicated region
        $region21: #{tpu_custom_call.1} parent=11 // pred_check
          %p264 = pneg %p113
        $region22: #{tpu_custom_call.1} parent=11 // pred_check_branch
          %266 = sbr.rel (%p264) target = $region24
        $region23: #{tpu_custom_call.1} parent=11 // pred_region
          _
        $region24: #{tpu_custom_call.1} parent=11 // pred_fallthru
          _
      $region12: #{tpu_custom_call.1} parent=5 // pred_fallthru
        _
      %p267 = scmp.lt.s32.totalorder %s24, 2
      // Predicated region
      $region25: #{tpu_custom_call.1} parent=5 // pred_check
        %p268 = pneg %p267
      $region26: #{tpu_custom_call.1} parent=5 // pred_check_branch
        %270 = sbr.rel (%p268) target = $region28
      $region27: #{tpu_custom_call.1} parent=5 // pred_region
        // Predicated region
        $region29: #{tpu_custom_call.1} parent=27 // pred_check
          %p271 = pneg %p44
        $region30: #{tpu_custom_call.1} parent=27 // pred_check_branch
          %273 = sbr.rel (%p271) target = $region32
        $region31: #{tpu_custom_call.1} parent=27 // pred_region
          %p274 = scmp.lt.s32.totalorder %s24, 1
          %s275 = scalar_select %p274, %s24, 1
          %s276 = smul.addr %s275, 8
          %s277 = scalar_lea.vmem %s0, %s276
        $region32: #{tpu_custom_call.1} parent=27 // pred_fallthru
          _
      $region28: #{tpu_custom_call.1} parent=5 // pred_fallthru
        _
      %p278 = scmp.le.s32.totalorder 1, %s24
      %p279 = scmp.lt.s32.totalorder %s24, 3
      %p280 = pnand %p278, %p279
      %p281 = pneg %p280
      // Predicated region
      $region33: #{tpu_custom_call.1} parent=5 // pred_check
        _
      $region34: #{tpu_custom_call.1} parent=5 // pred_check_branch
        %283 = sbr.rel (%p280) target = $region36
      $region35: #{tpu_custom_call.1} parent=5 // pred_region
        %s284 = ssub.s32 %s24, 1
        %p285 = scmp.lt.s32.totalorder %s29, 1
        %s286 = scalar_select %p285, %s29, 1
        %s287 = smul.addr %s286, 8
        %s288 = scalar_lea.vmem %s0, %s287
        %p289 = pneg %p50
        %p290 = pneg %p47
        %p291 = pneg %p71
        %p292 = pneg %p68
        %p293 = pneg %p92
        %p294 = pneg %p89
        %p295 = pneg %p113
        %p296 = pneg %p110
        %p297 = pneg %p139
        %p298 = pneg %p136
        %s299 = sand.u32 %s126, 1
        %s300 = scalar_lea.sflag [#allocation3], %s299
        %s301 = sand.u32 %s126, 1
        %s302 = smul.addr %s301, 8
        %s303 = scalar_lea.vmem [#allocation2], %s302
        %p304 = pneg %p165
        %p305 = pneg %p162
        %s306 = sand.u32 %s29, 1
        %s307 = scalar_lea.sflag [#allocation5], %s306
        %s308 = sand.u32 %s152, 1
        %s309 = smul.addr %s308, 8
        %s310 = scalar_lea.vmem [#allocation4], %s309
        %p311 = pneg %p191
        %p312 = pneg %p188
        %s313 = sand.u32 %s29, 1
        %s314 = scalar_lea.sflag [#allocation5], %s313
        %s315 = sand.u32 %s178, 1
        %s316 = smul.addr %s315, 8
        %s317 = scalar_lea.vmem [#allocation6], %s316
        %p318 = pneg %p217
        %p319 = pneg %p214
        %s320 = sand.u32 %s29, 1
        %s321 = scalar_lea.sflag [#allocation8], %s320
        %s322 = sand.u32 %s204, 1
        %s323 = scalar_lea.vmem [#allocation7], %s322
        %p324 = pneg %p243
        %p325 = pneg %p240
        %s326 = sand.u32 %s29, 1
        %s327 = scalar_lea.sflag [#allocation8], %s326
        %s328 = sand.u32 %s230, 1
        %s329 = scalar_lea.vmem [#allocation9], %s328
        %p330 = scmp.lt.s32.totalorder %s29, 1
        %s331 = scalar_select %p330, %s29, 1
        %s332 = smul.addr %s331, 8
        %s333 = scalar_lea.vmem %s0, %s332
        %v335 = vld [vmem:[%s333] sm:$0xff]
        %v336 = vpack.c.bf16 %v335, %v335
        %v337 = vld [vmem:[%s1] sm:$0xf]
        %v338 = vld [vmem:[%s1 + $0x4] sm:$0xf]
        %v339 = vld [vmem:[%s1 + $0x8] sm:$0xf]
        %v340 = vld [vmem:[%s1 + $0xc] sm:$0xf]
        %v341 = vld [vmem:[%s1 + $0x10] sm:$0xf]
        %v342 = vld [vmem:[%s1 + $0x14] sm:$0xf]
        %v343 = vld [vmem:[%s1 + $0x18] sm:$0xf]
        %v344 = vld [vmem:[%s1 + $0x1c] sm:$0xf]
        %v345 = vld [vmem:[%s2] sm:$0x1]
        %v347 = vlaneseq
        %v348 = vshrl.u32 %v347, 7
        %v349 = vsub.s32 0, %v348
        %v350 = vrot.slane %v345, %v349
        %v360 = vunpack.c.l.b16 %v337
        %v361 = vunpack.c.l.b16 %v338
        %v362 = vunpack.c.l.b16 %v339
        %v363 = vunpack.c.l.b16 %v340
        %v364 = vunpack.c.l.b16 %v341
        %v365 = vunpack.c.l.b16 %v342
        %v366 = vunpack.c.l.b16 %v343
        %v367 = vunpack.c.l.b16 %v344
        %v368 = vpack.c.b16 %v361, %v360
        %v369 = vpack.c.b16 %v363, %v362
        %v370 = vpack.c.b16 %v365, %v364
        %v371 = vpack.c.b16 %v367, %v366
        %vm376 = vcmask 523264
        %v378 = vsel %vm376, %v336, 0
        %380 = vmatprep.subr.bf16.mxu0 0
        %381 = vmatpush1.bf16.msra.mxu0 0
        %382 = vmatprep.subr.bf16.mxu0 0
        %383 = vmatpush1.bf16.msra.mxu0 0
        %384 = vmatprep.subr.bf16.mxu0 0
        %385 = vmatpush1.bf16.msra.mxu0 0
        %386 = vmatprep.subr.bf16.mxu0 0
        %387 = vmatpush1.bf16.msra.mxu0 0
        %388 = vmatprep.subr.bf16.mxu0 0
        %389 = vmatpush1.bf16.msra.mxu0 %v371
        %390 = vmatprep.subr.bf16.mxu0 0
        %391 = vmatpush1.bf16.msra.mxu0 %v370
        %392 = vmatprep.subr.bf16.mxu0 0
        %393 = vmatpush1.bf16.msra.mxu0 %v369
        %394 = vmatprep.subr.bf16.mxu0 0
        %395 = vmatpush1.bf16.msra.mxu0 %v368
        %396 = vmatprep.subr.bf16.mxu0 0
        %397 = vmatpush2.bf16.msra.mxu0 0
        %398 = vmatprep.subr.bf16.mxu0 0
        %399 = vmatpush2.bf16.msra.mxu0 0
        %400 = vmatprep.subr.bf16.mxu0 0
        %401 = vmatpush2.bf16.msra.mxu0 0
        %402 = vmatprep.subr.bf16.mxu0 0
        %403 = vmatpush2.bf16.msra.mxu0 0
        %404 = vmatprep.subr.bf16.mxu0 0
        %405 = vmatpush2.bf16.msra.mxu0 0
        %406 = vmatprep.subr.bf16.mxu0 0
        %407 = vmatpush2.bf16.msra.mxu0 0
        %408 = vmatprep.subr.bf16.mxu0 0
        %409 = vmatpush2.bf16.msra.mxu0 0
        %410 = vmatprep.subr.bf16.mxu0 0
        %411 = vmatpush2.bf16.msra.mxu0 0
        %412 = vmatprep.mubr.bf16.mxu0 0
        %413 = vmatmul.mubr.bf16.gmra.mxu0 %v378
        %v414 = vpop.f32.mrf.mxu0
        %v415 = vadd.f32 %v350, %v414
        %v416 = vpop.f32.mrf.mxu0
        %v417 = vpop.f32.mrf.mxu0
        %v418 = vpop.f32.mrf.mxu0
        %419 = vdwg.mxu0
        %v420 = vxor.u32 %v415, 2147483648
        %v421 = vmul.f32 %v420, 1.442695
        %v422 = vpow.pop %v421
        %v423 = vadd.f32 %v422, 1.0
        %v424 = vrcp.pop %v423
        %v425 = vmul.f32 1.0, %v424
        %vm427 = vcmp.le.s32.totalorder %v425, 532676607
        %v428 = vsel %vm427, 1, 0
        %v429 = vand.u32 %v428, 65535
        %v430 = vshrl.u32 %v428, 16
        %v431 = vcvt.s32.f32 %v429
        %v432 = vcvt.s32.f32 %v430
        %433 = vadd.xlane.f32.xlu0 %v431
        %v434 = vpop.xlane.xlu0 %433
        %435 = vadd.xlane.f32.xlu0 %v432
        %v436 = vpop.xlane.xlu0 %435
        %v437 = vcvt.f32.s32 %v434
        %v438 = vcvt.f32.s32 %v436
        %v439 = vshll.u32 %v438, 16
        %v440 = vadd.s32 %v439, %v437
        %vm441 = vcmp.ge.s32.totalorder %v440, 112
        %v442 = vsel %vm441, 532676607, 1065353216
        %v443 = vsel %vm441, 4294967295, 532676607
        %v444 = vsub.s32 %v442, %v443
        %v445 = vshra.s32 %v444, 1
        %v446 = vadd.s32 %v443, %v445
        %vm447 = vcmp.le.s32.totalorder %v425, %v446
        %v448 = vsel %vm447, 1, 0
        %v449 = vand.u32 %v448, 65535
        %v450 = vshrl.u32 %v448, 16
        %v451 = vcvt.s32.f32 %v449
        %v452 = vcvt.s32.f32 %v450
        %453 = vadd.xlane.f32.xlu0 %v451
        %v454 = vpop.xlane.xlu0 %453
        %455 = vadd.xlane.f32.xlu0 %v452
        %v456 = vpop.xlane.xlu0 %455
        %v457 = vcvt.f32.s32 %v454
        %v458 = vcvt.f32.s32 %v456
        %v459 = vshll.u32 %v458, 16
        %v460 = vadd.s32 %v459, %v457
        %vm461 = vcmp.ge.s32.totalorder %v460, 112
        %v462 = vsel %vm461, %v446, %v442
        %v463 = vsel %vm461, %v443, %v446
        %v464 = vsub.s32 %v462, %v463
        %v465 = vshra.s32 %v464, 1
        %v466 = vadd.s32 %v463, %v465
        %vm467 = vcmp.le.s32.totalorder %v425, %v466
        %v468 = vsel %vm467, 1, 0
        %v469 = vand.u32 %v468, 65535
        %v470 = vshrl.u32 %v468, 16
        %v471 = vcvt.s32.f32 %v469
        %v472 = vcvt.s32.f32 %v470
        %473 = vadd.xlane.f32.xlu0 %v471
        %v474 = vpop.xlane.xlu0 %473
        %475 = vadd.xlane.f32.xlu0 %v472
        %v476 = vpop.xlane.xlu0 %475
        %v477 = vcvt.f32.s32 %v474
        %v478 = vcvt.f32.s32 %v476
        %v479 = vshll.u32 %v478, 16
        %v480 = vadd.s32 %v479, %v477
        %vm481 = vcmp.ge.s32.totalorder %v480, 112
        %v482 = vsel %vm481, %v466, %v462
        %v483 = vsel %vm481, %v463, %v466
        %v484 = vsub.s32 %v482, %v483
        %v485 = vshra.s32 %v484, 1
        %v486 = vadd.s32 %v483, %v485
        %vm487 = vcmp.le.s32.totalorder %v425, %v486
        %v488 = vsel %vm487, 1, 0
        %v489 = vand.u32 %v488, 65535
        %v490 = vshrl.u32 %v488, 16
        %v491 = vcvt.s32.f32 %v489
        %v492 = vcvt.s32.f32 %v490
        %493 = vadd.xlane.f32.xlu0 %v491
        %v494 = vpop.xlane.xlu0 %493
        %495 = vadd.xlane.f32.xlu0 %v492
        %v496 = vpop.xlane.xlu0 %495
        %v497 = vcvt.f32.s32 %v494
        %v498 = vcvt.f32.s32 %v496
        %v499 = vshll.u32 %v498, 16
        %v500 = vadd.s32 %v499, %v497
        %vm501 = vcmp.ge.s32.totalorder %v500, 112
        %v502 = vsel %vm501, %v486, %v482
        %v503 = vsel %vm501, %v483, %v486
        %v504 = vsub.s32 %v502, %v503
        %v505 = vshra.s32 %v504, 1
        %v506 = vadd.s32 %v503, %v505
        %vm507 = vcmp.le.s32.totalorder %v425, %v506
        %v508 = vsel %vm507, 1, 0
        %v509 = vand.u32 %v508, 65535
        %v510 = vshrl.u32 %v508, 16
        %v511 = vcvt.s32.f32 %v509
        %v512 = vcvt.s32.f32 %v510
        %513 = vadd.xlane.f32.xlu0 %v511
        %v514 = vpop.xlane.xlu0 %513
        %515 = vadd.xlane.f32.xlu0 %v512
        %v516 = vpop.xlane.xlu0 %515
        %v517 = vcvt.f32.s32 %v514
        %v518 = vcvt.f32.s32 %v516
        %v519 = vshll.u32 %v518, 16
        %v520 = vadd.s32 %v519, %v517
        %vm521 = vcmp.ge.s32.totalorder %v520, 112
        %v522 = vsel %vm521, %v506, %v502
        %v523 = vsel %vm521, %v503, %v506
        %v524 = vsub.s32 %v522, %v523
        %v525 = vshra.s32 %v524, 1
        %v526 = vadd.s32 %v523, %v525
        %vm527 = vcmp.le.s32.totalorder %v425, %v526
        %v528 = vsel %vm527, 1, 0
        %v529 = vand.u32 %v528, 65535
        %v530 = vshrl.u32 %v528, 16
        %v531 = vcvt.s32.f32 %v529
        %v532 = vcvt.s32.f32 %v530
        %533 = vadd.xlane.f32.xlu0 %v531
        %v534 = vpop.xlane.xlu0 %533
        %535 = vadd.xlane.f32.xlu0 %v532
        %v536 = vpop.xlane.xlu0 %535
        %v537 = vcvt.f32.s32 %v534
        %v538 = vcvt.f32.s32 %v536
        %v539 = vshll.u32 %v538, 16
        %v540 = vadd.s32 %v539, %v537
        %vm541 = vcmp.ge.s32.totalorder %v540, 112
        %v542 = vsel %vm541, %v526, %v522
        %v543 = vsel %vm541, %v523, %v526
        %v544 = vsub.s32 %v542, %v543
        %v545 = vshra.s32 %v544, 1
        %v546 = vadd.s32 %v543, %v545
        %vm547 = vcmp.le.s32.totalorder %v425, %v546
        %v548 = vsel %vm547, 1, 0
        %v549 = vand.u32 %v548, 65535
        %v550 = vshrl.u32 %v548, 16
        %v551 = vcvt.s32.f32 %v549
        %v552 = vcvt.s32.f32 %v550
        %553 = vadd.xlane.f32.xlu0 %v551
        %v554 = vpop.xlane.xlu0 %553
        %555 = vadd.xlane.f32.xlu0 %v552
        %v556 = vpop.xlane.xlu0 %555
        %v557 = vcvt.f32.s32 %v554
        %v558 = vcvt.f32.s32 %v556
        %v559 = vshll.u32 %v558, 16
        %v560 = vadd.s32 %v559, %v557
        %vm561 = vcmp.ge.s32.totalorder %v560, 112
        %v562 = vsel %vm561, %v546, %v542
        %v563 = vsel %vm561, %v543, %v546
        %v564 = vsub.s32 %v562, %v563
        %v565 = vshra.s32 %v564, 1
        %v566 = vadd.s32 %v563, %v565
        %vm567 = vcmp.le.s32.totalorder %v425, %v566
        %v568 = vsel %vm567, 1, 0
        %v569 = vand.u32 %v568, 65535
        %v570 = vshrl.u32 %v568, 16
        %v571 = vcvt.s32.f32 %v569
        %v572 = vcvt.s32.f32 %v570
        %573 = vadd.xlane.f32.xlu0 %v571
        %v574 = vpop.xlane.xlu0 %573
        %575 = vadd.xlane.f32.xlu0 %v572
        %v576 = vpop.xlane.xlu0 %575
        %v577 = vcvt.f32.s32 %v574
        %v578 = vcvt.f32.s32 %v576
        %v579 = vshll.u32 %v578, 16
        %v580 = vadd.s32 %v579, %v577
        %vm581 = vcmp.ge.s32.totalorder %v580, 112
        %v582 = vsel %vm581, %v566, %v562
        %v583 = vsel %vm581, %v563, %v566
        %v584 = vsub.s32 %v582, %v583
        %v585 = vshra.s32 %v584, 1
        %v586 = vadd.s32 %v583, %v585
        %vm587 = vcmp.le.s32.totalorder %v425, %v586
        %v588 = vsel %vm587, 1, 0
        %v589 = vand.u32 %v588, 65535
        %v590 = vshrl.u32 %v588, 16
        %v591 = vcvt.s32.f32 %v589
        %v592 = vcvt.s32.f32 %v590
        %593 = vadd.xlane.f32.xlu0 %v591
        %v594 = vpop.xlane.xlu0 %593
        %595 = vadd.xlane.f32.xlu0 %v592
        %v596 = vpop.xlane.xlu0 %595
        %v597 = vcvt.f32.s32 %v594
        %v598 = vcvt.f32.s32 %v596
        %v599 = vshll.u32 %v598, 16
        %v600 = vadd.s32 %v599, %v597
        %vm601 = vcmp.ge.s32.totalorder %v600, 112
        %v602 = vsel %vm601, %v586, %v582
        %v603 = vsel %vm601, %v583, %v586
        %v604 = vsub.s32 %v602, %v603
        %v605 = vshra.s32 %v604, 1
        %v606 = vadd.s32 %v603, %v605
        %vm607 = vcmp.le.s32.totalorder %v425, %v606
        %v608 = vsel %vm607, 1, 0
        %v609 = vand.u32 %v608, 65535
        %v610 = vshrl.u32 %v608, 16
        %v611 = vcvt.s32.f32 %v609
        %v612 = vcvt.s32.f32 %v610
        %613 = vadd.xlane.f32.xlu0 %v611
        %v614 = vpop.xlane.xlu0 %613
        %615 = vadd.xlane.f32.xlu0 %v612
        %v616 = vpop.xlane.xlu0 %615
        %v617 = vcvt.f32.s32 %v614
        %v618 = vcvt.f32.s32 %v616
        %v619 = vshll.u32 %v618, 16
        %v620 = vadd.s32 %v619, %v617
        %vm621 = vcmp.ge.s32.totalorder %v620, 112
        %v622 = vsel %vm621, %v606, %v602
        %v623 = vsel %vm621, %v603, %v606
        %v624 = vsub.s32 %v622, %v623
        %v625 = vshra.s32 %v624, 1
        %v626 = vadd.s32 %v623, %v625
        %vm627 = vcmp.le.s32.totalorder %v425, %v626
        %v628 = vsel %vm627, 1, 0
        %v629 = vand.u32 %v628, 65535
        %v630 = vshrl.u32 %v628, 16
        %v631 = vcvt.s32.f32 %v629
        %v632 = vcvt.s32.f32 %v630
        %633 = vadd.xlane.f32.xlu0 %v631
        %v634 = vpop.xlane.xlu0 %633
        %635 = vadd.xlane.f32.xlu0 %v632
        %v636 = vpop.xlane.xlu0 %635
        %v637 = vcvt.f32.s32 %v634
        %v638 = vcvt.f32.s32 %v636
        %v639 = vshll.u32 %v638, 16
        %v640 = vadd.s32 %v639, %v637
        %vm641 = vcmp.ge.s32.totalorder %v640, 112
        %v642 = vsel %vm641, %v626, %v622
        %v643 = vsel %vm641, %v623, %v626
        %v644 = vsub.s32 %v642, %v643
        %v645 = vshra.s32 %v644, 1
        %v646 = vadd.s32 %v643, %v645
        %vm647 = vcmp.le.s32.totalorder %v425, %v646
        %v648 = vsel %vm647, 1, 0
        %v649 = vand.u32 %v648, 65535
        %v650 = vshrl.u32 %v648, 16
        %v651 = vcvt.s32.f32 %v649
        %v652 = vcvt.s32.f32 %v650
        %653 = vadd.xlane.f32.xlu0 %v651
        %v654 = vpop.xlane.xlu0 %653
        %655 = vadd.xlane.f32.xlu0 %v652
        %v656 = vpop.xlane.xlu0 %655
        %v657 = vcvt.f32.s32 %v654
        %v658 = vcvt.f32.s32 %v656
        %v659 = vshll.u32 %v658, 16
        %v660 = vadd.s32 %v659, %v657
        %vm661 = vcmp.ge.s32.totalorder %v660, 112
        %v662 = vsel %vm661, %v646, %v642
        %v663 = vsel %vm661, %v643, %v646
        %v664 = vsub.s32 %v662, %v663
        %v665 = vshra.s32 %v664, 1
        %v666 = vadd.s32 %v663, %v665
        %vm667 = vcmp.le.s32.totalorder %v425, %v666
        %v668 = vsel %vm667, 1, 0
        %v669 = vand.u32 %v668, 65535
        %v670 = vshrl.u32 %v668, 16
        %v671 = vcvt.s32.f32 %v669
        %v672 = vcvt.s32.f32 %v670
        %673 = vadd.xlane.f32.xlu0 %v671
        %v674 = vpop.xlane.xlu0 %673
        %675 = vadd.xlane.f32.xlu0 %v672
        %v676 = vpop.xlane.xlu0 %675
        %v677 = vcvt.f32.s32 %v674
        %v678 = vcvt.f32.s32 %v676
        %v679 = vshll.u32 %v678, 16
        %v680 = vadd.s32 %v679, %v677
        %vm681 = vcmp.ge.s32.totalorder %v680, 112
        %v682 = vsel %vm681, %v666, %v662
        %v683 = vsel %vm681, %v663, %v666
        %v684 = vsub.s32 %v682, %v683
        %v685 = vshra.s32 %v684, 1
        %v686 = vadd.s32 %v683, %v685
        %vm687 = vcmp.le.s32.totalorder %v425, %v686
        %v688 = vsel %vm687, 1, 0
        %v689 = vand.u32 %v688, 65535
        %v690 = vshrl.u32 %v688, 16
        %v691 = vcvt.s32.f32 %v689
        %v692 = vcvt.s32.f32 %v690
        %693 = vadd.xlane.f32.xlu0 %v691
        %v694 = vpop.xlane.xlu0 %693
        %695 = vadd.xlane.f32.xlu0 %v692
        %v696 = vpop.xlane.xlu0 %695
        %v697 = vcvt.f32.s32 %v694
        %v698 = vcvt.f32.s32 %v696
        %v699 = vshll.u32 %v698, 16
        %v700 = vadd.s32 %v699, %v697
        %vm701 = vcmp.ge.s32.totalorder %v700, 112
        %v702 = vsel %vm701, %v686, %v682
        %v703 = vsel %vm701, %v683, %v686
        %v704 = vsub.s32 %v702, %v703
        %v705 = vshra.s32 %v704, 1
        %v706 = vadd.s32 %v703, %v705
        %vm707 = vcmp.le.s32.totalorder %v425, %v706
        %v708 = vsel %vm707, 1, 0
        %v709 = vand.u32 %v708, 65535
        %v710 = vshrl.u32 %v708, 16
        %v711 = vcvt.s32.f32 %v709
        %v712 = vcvt.s32.f32 %v710
        %713 = vadd.xlane.f32.xlu0 %v711
        %v714 = vpop.xlane.xlu0 %713
        %715 = vadd.xlane.f32.xlu0 %v712
        %v716 = vpop.xlane.xlu0 %715
        %v717 = vcvt.f32.s32 %v714
        %v718 = vcvt.f32.s32 %v716
        %v719 = vshll.u32 %v718, 16
        %v720 = vadd.s32 %v719, %v717
        %vm721 = vcmp.ge.s32.totalorder %v720, 112
        %v722 = vsel %vm721, %v706, %v702
        %v723 = vsel %vm721, %v703, %v706
        %v724 = vsub.s32 %v722, %v723
        %v725 = vshra.s32 %v724, 1
        %v726 = vadd.s32 %v723, %v725
        %vm727 = vcmp.le.s32.totalorder %v425, %v726
        %v728 = vsel %vm727, 1, 0
        %v729 = vand.u32 %v728, 65535
        %v730 = vshrl.u32 %v728, 16
        %v731 = vcvt.s32.f32 %v729
        %v732 = vcvt.s32.f32 %v730
        %733 = vadd.xlane.f32.xlu0 %v731
        %v734 = vpop.xlane.xlu0 %733
        %735 = vadd.xlane.f32.xlu0 %v732
        %v736 = vpop.xlane.xlu0 %735
        %v737 = vcvt.f32.s32 %v734
        %v738 = vcvt.f32.s32 %v736
        %v739 = vshll.u32 %v738, 16
        %v740 = vadd.s32 %v739, %v737
        %vm741 = vcmp.ge.s32.totalorder %v740, 112
        %v742 = vsel %vm741, %v726, %v722
        %v743 = vsel %vm741, %v723, %v726
        %v744 = vsub.s32 %v742, %v743
        %v745 = vshra.s32 %v744, 1
        %v746 = vadd.s32 %v743, %v745
        %vm747 = vcmp.le.s32.totalorder %v425, %v746
        %v748 = vsel %vm747, 1, 0
        %v749 = vand.u32 %v748, 65535
        %v750 = vshrl.u32 %v748, 16
        %v751 = vcvt.s32.f32 %v749
        %v752 = vcvt.s32.f32 %v750
        %753 = vadd.xlane.f32.xlu0 %v751
        %v754 = vpop.xlane.xlu0 %753
        %755 = vadd.xlane.f32.xlu0 %v752
        %v756 = vpop.xlane.xlu0 %755
        %v757 = vcvt.f32.s32 %v754
        %v758 = vcvt.f32.s32 %v756
        %v759 = vshll.u32 %v758, 16
        %v760 = vadd.s32 %v759, %v757
        %vm761 = vcmp.ge.s32.totalorder %v760, 112
        %v762 = vsel %vm761, %v746, %v742
        %v763 = vsel %vm761, %v743, %v746
        %v764 = vsub.s32 %v762, %v763
        %v765 = vshra.s32 %v764, 1
        %v766 = vadd.s32 %v763, %v765
        %vm767 = vcmp.le.s32.totalorder %v425, %v766
        %v768 = vsel %vm767, 1, 0
        %v769 = vand.u32 %v768, 65535
        %v770 = vshrl.u32 %v768, 16
        %v771 = vcvt.s32.f32 %v769
        %v772 = vcvt.s32.f32 %v770
        %773 = vadd.xlane.f32.xlu0 %v771
        %v774 = vpop.xlane.xlu0 %773
        %775 = vadd.xlane.f32.xlu0 %v772
        %v776 = vpop.xlane.xlu0 %775
        %v777 = vcvt.f32.s32 %v774
        %v778 = vcvt.f32.s32 %v776
        %v779 = vshll.u32 %v778, 16
        %v780 = vadd.s32 %v779, %v777
        %vm781 = vcmp.ge.s32.totalorder %v780, 112
        %v782 = vsel %vm781, %v766, %v762
        %v783 = vsel %vm781, %v763, %v766
        %v784 = vsub.s32 %v782, %v783
        %v785 = vshra.s32 %v784, 1
        %v786 = vadd.s32 %v783, %v785
        %vm787 = vcmp.le.s32.totalorder %v425, %v786
        %v788 = vsel %vm787, 1, 0
        %v789 = vand.u32 %v788, 65535
        %v790 = vshrl.u32 %v788, 16
        %v791 = vcvt.s32.f32 %v789
        %v792 = vcvt.s32.f32 %v790
        %793 = vadd.xlane.f32.xlu0 %v791
        %v794 = vpop.xlane.xlu0 %793
        %795 = vadd.xlane.f32.xlu0 %v792
        %v796 = vpop.xlane.xlu0 %795
        %v797 = vcvt.f32.s32 %v794
        %v798 = vcvt.f32.s32 %v796
        %v799 = vshll.u32 %v798, 16
        %v800 = vadd.s32 %v799, %v797
        %vm801 = vcmp.ge.s32.totalorder %v800, 112
        %v802 = vsel %vm801, %v786, %v782
        %v803 = vsel %vm801, %v783, %v786
        %v804 = vsub.s32 %v802, %v803
        %v805 = vshra.s32 %v804, 1
        %v806 = vadd.s32 %v803, %v805
        %vm807 = vcmp.le.s32.totalorder %v425, %v806
        %v808 = vsel %vm807, 1, 0
        %v809 = vand.u32 %v808, 65535
        %v810 = vshrl.u32 %v808, 16
        %v811 = vcvt.s32.f32 %v809
        %v812 = vcvt.s32.f32 %v810
        %813 = vadd.xlane.f32.xlu0 %v811
        %v814 = vpop.xlane.xlu0 %813
        %815 = vadd.xlane.f32.xlu0 %v812
        %v816 = vpop.xlane.xlu0 %815
        %v817 = vcvt.f32.s32 %v814
        %v818 = vcvt.f32.s32 %v816
        %v819 = vshll.u32 %v818, 16
        %v820 = vadd.s32 %v819, %v817
        %vm821 = vcmp.ge.s32.totalorder %v820, 112
        %v822 = vsel %vm821, %v806, %v802
        %v823 = vsel %vm821, %v803, %v806
        %v824 = vsub.s32 %v822, %v823
        %v825 = vshra.s32 %v824, 1
        %v826 = vadd.s32 %v823, %v825
        %vm827 = vcmp.le.s32.totalorder %v425, %v826
        %v828 = vsel %vm827, 1, 0
        %v829 = vand.u32 %v828, 65535
        %v830 = vshrl.u32 %v828, 16
        %v831 = vcvt.s32.f32 %v829
        %v832 = vcvt.s32.f32 %v830
        %833 = vadd.xlane.f32.xlu0 %v831
        %v834 = vpop.xlane.xlu0 %833
        %835 = vadd.xlane.f32.xlu0 %v832
        %v836 = vpop.xlane.xlu0 %835
        %v837 = vcvt.f32.s32 %v834
        %v838 = vcvt.f32.s32 %v836
        %v839 = vshll.u32 %v838, 16
        %v840 = vadd.s32 %v839, %v837
        %vm841 = vcmp.ge.s32.totalorder %v840, 112
        %v842 = vsel %vm841, %v826, %v822
        %v843 = vsel %vm841, %v823, %v826
        %v844 = vsub.s32 %v842, %v843
        %v845 = vshra.s32 %v844, 1
        %v846 = vadd.s32 %v843, %v845
        %vm847 = vcmp.le.s32.totalorder %v425, %v846
        %v848 = vsel %vm847, 1, 0
        %v849 = vand.u32 %v848, 65535
        %v850 = vshrl.u32 %v848, 16
        %v851 = vcvt.s32.f32 %v849
        %v852 = vcvt.s32.f32 %v850
        %853 = vadd.xlane.f32.xlu0 %v851
        %v854 = vpop.xlane.xlu0 %853
        %855 = vadd.xlane.f32.xlu0 %v852
        %v856 = vpop.xlane.xlu0 %855
        %v857 = vcvt.f32.s32 %v854
        %v858 = vcvt.f32.s32 %v856
        %v859 = vshll.u32 %v858, 16
        %v860 = vadd.s32 %v859, %v857
        %vm861 = vcmp.ge.s32.totalorder %v860, 112
        %v862 = vsel %vm861, %v846, %v842
        %v863 = vsel %vm861, %v843, %v846
        %v864 = vsub.s32 %v862, %v863
        %v865 = vshra.s32 %v864, 1
        %v866 = vadd.s32 %v863, %v865
        %vm867 = vcmp.le.s32.totalorder %v425, %v866
        %v868 = vsel %vm867, 1, 0
        %v869 = vand.u32 %v868, 65535
        %v870 = vshrl.u32 %v868, 16
        %v871 = vcvt.s32.f32 %v869
        %v872 = vcvt.s32.f32 %v870
        %873 = vadd.xlane.f32.xlu0 %v871
        %v874 = vpop.xlane.xlu0 %873
        %875 = vadd.xlane.f32.xlu0 %v872
        %v876 = vpop.xlane.xlu0 %875
        %v877 = vcvt.f32.s32 %v874
        %v878 = vcvt.f32.s32 %v876
        %v879 = vshll.u32 %v878, 16
        %v880 = vadd.s32 %v879, %v877
        %vm881 = vcmp.ge.s32.totalorder %v880, 112
        %v882 = vsel %vm881, %v866, %v862
        %v883 = vsel %vm881, %v863, %v866
        %v884 = vsub.s32 %v882, %v883
        %v885 = vshra.s32 %v884, 1
        %v886 = vadd.s32 %v883, %v885
        %vm887 = vcmp.le.s32.totalorder %v425, %v886
        %v888 = vsel %vm887, 1, 0
        %v889 = vand.u32 %v888, 65535
        %v890 = vshrl.u32 %v888, 16
        %v891 = vcvt.s32.f32 %v889
        %v892 = vcvt.s32.f32 %v890
        %893 = vadd.xlane.f32.xlu0 %v891
        %v894 = vpop.xlane.xlu0 %893
        %895 = vadd.xlane.f32.xlu0 %v892
        %v896 = vpop.xlane.xlu0 %895
        %v897 = vcvt.f32.s32 %v894
        %v898 = vcvt.f32.s32 %v896
        %v899 = vshll.u32 %v898, 16
        %v900 = vadd.s32 %v899, %v897
        %vm901 = vcmp.ge.s32.totalorder %v900, 112
        %v902 = vsel %vm901, %v886, %v882
        %v903 = vsel %vm901, %v883, %v886
        %v904 = vsub.s32 %v902, %v903
        %v905 = vshra.s32 %v904, 1
        %v906 = vadd.s32 %v903, %v905
        %vm907 = vcmp.le.s32.totalorder %v425, %v906
        %v908 = vsel %vm907, 1, 0
        %v909 = vand.u32 %v908, 65535
        %v910 = vshrl.u32 %v908, 16
        %v911 = vcvt.s32.f32 %v909
        %v912 = vcvt.s32.f32 %v910
        %913 = vadd.xlane.f32.xlu0 %v911
        %v914 = vpop.xlane.xlu0 %913
        %915 = vadd.xlane.f32.xlu0 %v912
        %v916 = vpop.xlane.xlu0 %915
        %v917 = vcvt.f32.s32 %v914
        %v918 = vcvt.f32.s32 %v916
        %v919 = vshll.u32 %v918, 16
        %v920 = vadd.s32 %v919, %v917
        %vm921 = vcmp.ge.s32.totalorder %v920, 112
        %v922 = vsel %vm921, %v906, %v902
        %v923 = vsel %vm921, %v903, %v906
        %v924 = vsub.s32 %v922, %v923
        %v925 = vshra.s32 %v924, 1
        %v926 = vadd.s32 %v923, %v925
        %vm927 = vcmp.le.s32.totalorder %v425, %v926
        %v928 = vsel %vm927, 1, 0
        %v929 = vand.u32 %v928, 65535
        %v930 = vshrl.u32 %v928, 16
        %v931 = vcvt.s32.f32 %v929
        %v932 = vcvt.s32.f32 %v930
        %933 = vadd.xlane.f32.xlu0 %v931
        %v934 = vpop.xlane.xlu0 %933
        %935 = vadd.xlane.f32.xlu0 %v932
        %v936 = vpop.xlane.xlu0 %935
        %v937 = vcvt.f32.s32 %v934
        %v938 = vcvt.f32.s32 %v936
        %v939 = vshll.u32 %v938, 16
        %v940 = vadd.s32 %v939, %v937
        %vm941 = vcmp.ge.s32.totalorder %v940, 112
        %v942 = vsel %vm941, %v926, %v922
        %v943 = vsel %vm941, %v923, %v926
        %v944 = vsub.s32 %v942, %v943
        %v945 = vshra.s32 %v944, 1
        %v946 = vadd.s32 %v943, %v945
        %vm947 = vcmp.le.s32.totalorder %v425, %v946
        %v948 = vsel %vm947, 1, 0
        %v949 = vand.u32 %v948, 65535
        %v950 = vshrl.u32 %v948, 16
        %v951 = vcvt.s32.f32 %v949
        %v952 = vcvt.s32.f32 %v950
        %953 = vadd.xlane.f32.xlu0 %v951
        %v954 = vpop.xlane.xlu0 %953
        %955 = vadd.xlane.f32.xlu0 %v952
        %v956 = vpop.xlane.xlu0 %955
        %v957 = vcvt.f32.s32 %v954
        %v958 = vcvt.f32.s32 %v956
        %v959 = vshll.u32 %v958, 16
        %v960 = vadd.s32 %v959, %v957
        %vm961 = vcmp.ge.s32.totalorder %v960, 112
        %v962 = vsel %vm961, %v946, %v942
        %v963 = vsel %vm961, %v943, %v946
        %v964 = vsub.s32 %v962, %v963
        %v965 = vshra.s32 %v964, 1
        %v966 = vadd.s32 %v963, %v965
        %vm967 = vcmp.le.s32.totalorder %v425, %v966
        %v968 = vsel %vm967, 1, 0
        %v969 = vand.u32 %v968, 65535
        %v970 = vshrl.u32 %v968, 16
        %v971 = vcvt.s32.f32 %v969
        %v972 = vcvt.s32.f32 %v970
        %973 = vadd.xlane.f32.xlu0 %v971
        %v974 = vpop.xlane.xlu0 %973
        %975 = vadd.xlane.f32.xlu0 %v972
        %v976 = vpop.xlane.xlu0 %975
        %v977 = vcvt.f32.s32 %v974
        %v978 = vcvt.f32.s32 %v976
        %v979 = vshll.u32 %v978, 16
        %v980 = vadd.s32 %v979, %v977
        %vm981 = vcmp.ge.s32.totalorder %v980, 112
        %v982 = vsel %vm981, %v966, %v962
        %v983 = vsel %vm981, %v963, %v966
        %v984 = vsub.s32 %v982, %v983
        %v985 = vshra.s32 %v984, 1
        %v986 = vadd.s32 %v983, %v985
        %vm987 = vcmp.le.s32.totalorder %v425, %v986
        %v988 = vsel %vm987, 1, 0
        %v989 = vand.u32 %v988, 65535
        %v990 = vshrl.u32 %v988, 16
        %v991 = vcvt.s32.f32 %v989
        %v992 = vcvt.s32.f32 %v990
        %993 = vadd.xlane.f32.xlu0 %v991
        %v994 = vpop.xlane.xlu0 %993
        %995 = vadd.xlane.f32.xlu0 %v992
        %v996 = vpop.xlane.xlu0 %995
        %v997 = vcvt.f32.s32 %v994
        %v998 = vcvt.f32.s32 %v996
        %v999 = vshll.u32 %v998, 16
        %v1000 = vadd.s32 %v999, %v997
        %vm1001 = vcmp.ge.s32.totalorder %v1000, 112
        %v1002 = vsel %vm1001, %v986, %v982
        %v1003 = vsel %vm1001, %v983, %v986
        %v1004 = vsub.s32 %v1002, %v1003
        %v1005 = vshra.s32 %v1004, 1
        %v1006 = vadd.s32 %v1003, %v1005
        %vm1007 = vcmp.le.s32.totalorder %v425, %v1006
        %v1008 = vsel %vm1007, 1, 0
        %v1009 = vand.u32 %v1008, 65535
        %v1010 = vshrl.u32 %v1008, 16
        %v1011 = vcvt.s32.f32 %v1009
        %v1012 = vcvt.s32.f32 %v1010
        %1013 = vadd.xlane.f32.xlu0 %v1011
        %v1014 = vpop.xlane.xlu0 %1013
        %1015 = vadd.xlane.f32.xlu0 %v1012
        %v1016 = vpop.xlane.xlu0 %1015
        %v1017 = vcvt.f32.s32 %v1014
        %v1018 = vcvt.f32.s32 %v1016
        %v1019 = vshll.u32 %v1018, 16
        %v1020 = vadd.s32 %v1019, %v1017
        %vm1021 = vcmp.ge.s32.totalorder %v1020, 112
        %v1022 = vsel %vm1021, %v1006, %v1002
        %vm1023 = vcmp.ge.s32.totalorder %v425, %v1022
        %v1024 = vsel %vm1023, 1, 0
        %v1025 = vcvt.s32.f32 %v1024
        %1026 = vst [vmem:[%s310] sm:$0xff] %v425
        %1027 = vst [vmem:[%s317] sm:$0xff] %v1025
        %v1028 = vpack.c.bf16 %v1025, %v1025
        %v1029 = vld [vmem:[%s3] sm:$0xf]
        %v1030 = vld [vmem:[%s3 + $0x4] sm:$0xf]
        %v1031 = vld [vmem:[%s3 + $0x8] sm:$0xf]
        %v1032 = vld [vmem:[%s3 + $0xc] sm:$0xf]
        %v1033 = vld [vmem:[%s3 + $0x10] sm:$0xf]
        %v1034 = vld [vmem:[%s3 + $0x14] sm:$0xf]
        %v1035 = vld [vmem:[%s3 + $0x18] sm:$0xf]
        %v1036 = vld [vmem:[%s3 + $0x1c] sm:$0xf]
        %v1037 = vld [vmem:[%s3 + $0x20] sm:$0xf]
        %v1038 = vld [vmem:[%s3 + $0x24] sm:$0xf]
        %v1039 = vld [vmem:[%s3 + $0x28] sm:$0xf]
        %v1040 = vld [vmem:[%s3 + $0x2c] sm:$0xf]
        %v1041 = vld [vmem:[%s3 + $0x30] sm:$0xf]
        %v1042 = vld [vmem:[%s3 + $0x34] sm:$0xf]
        %v1043 = vld [vmem:[%s3 + $0x38] sm:$0xf]
        %v1044 = vld [vmem:[%s3 + $0x3c] sm:$0xf]
        %v1061 = vunpack.c.l.b16 %v1029
        %v1062 = vunpack.c.l.b16 %v1030
        %v1063 = vunpack.c.l.b16 %v1031
        %v1064 = vunpack.c.l.b16 %v1032
        %v1065 = vunpack.c.l.b16 %v1033
        %v1066 = vunpack.c.l.b16 %v1034
        %v1067 = vunpack.c.l.b16 %v1035
        %v1068 = vunpack.c.l.b16 %v1036
        %v1069 = vunpack.c.l.b16 %v1037
        %v1070 = vunpack.c.l.b16 %v1038
        %v1071 = vunpack.c.l.b16 %v1039
        %v1072 = vunpack.c.l.b16 %v1040
        %v1073 = vunpack.c.l.b16 %v1041
        %v1074 = vunpack.c.l.b16 %v1042
        %v1075 = vunpack.c.l.b16 %v1043
        %v1076 = vunpack.c.l.b16 %v1044
        %v1077 = vpack.c.b16 %v1062, %v1061
        %v1078 = vpack.c.b16 %v1064, %v1063
        %v1079 = vpack.c.b16 %v1066, %v1065
        %v1080 = vpack.c.b16 %v1068, %v1067
        %v1081 = vpack.c.b16 %v1070, %v1069
        %v1082 = vpack.c.b16 %v1072, %v1071
        %v1083 = vpack.c.b16 %v1074, %v1073
        %v1084 = vpack.c.b16 %v1076, %v1075
        %1093 = vmatprep.subr.bf16.mxu0 0
        %1094 = vmatpush1.bf16.msra.mxu0 %v1084
        %1095 = vmatprep.subr.bf16.mxu0 0
        %1096 = vmatpush1.bf16.msra.mxu0 %v1083
        %1097 = vmatprep.subr.bf16.mxu0 0
        %1098 = vmatpush1.bf16.msra.mxu0 %v1082
        %1099 = vmatprep.subr.bf16.mxu0 0
        %1100 = vmatpush1.bf16.msra.mxu0 %v1081
        %1101 = vmatprep.subr.bf16.mxu0 0
        %1102 = vmatpush1.bf16.msra.mxu0 %v1080
        %1103 = vmatprep.subr.bf16.mxu0 0
        %1104 = vmatpush1.bf16.msra.mxu0 %v1079
        %1105 = vmatprep.subr.bf16.mxu0 0
        %1106 = vmatpush1.bf16.msra.mxu0 %v1078
        %1107 = vmatprep.subr.bf16.mxu0 0
        %1108 = vmatpush1.bf16.msra.mxu0 %v1077
        %1109 = vmatprep.subr.bf16.mxu0 0
        %1110 = vmatpush2.bf16.msra.mxu0 0
        %1111 = vmatprep.subr.bf16.mxu0 0
        %1112 = vmatpush2.bf16.msra.mxu0 0
        %1113 = vmatprep.subr.bf16.mxu0 0
        %1114 = vmatpush2.bf16.msra.mxu0 0
        %1115 = vmatprep.subr.bf16.mxu0 0
        %1116 = vmatpush2.bf16.msra.mxu0 0
        %1117 = vmatprep.subr.bf16.mxu0 0
        %1118 = vmatpush2.bf16.msra.mxu0 0
        %1119 = vmatprep.subr.bf16.mxu0 0
        %1120 = vmatpush2.bf16.msra.mxu0 0
        %1121 = vmatprep.subr.bf16.mxu0 0
        %1122 = vmatpush2.bf16.msra.mxu0 0
        %1123 = vmatprep.subr.bf16.mxu0 0
        %1124 = vmatpush2.bf16.msra.mxu0 0
        %1125 = vmatprep.mubr.bf16.mxu0 0
        %1126 = vmatmul.mubr.bf16.gmra.mxu0 %v1028
        %v1127 = vpop.f32.mrf.mxu0
        %v1128 = vadd.f32 0.0, %v1127
        %v1129 = vpop.f32.mrf.mxu0
        %v1130 = vpop.f32.mrf.mxu0
        %v1131 = vpop.f32.mrf.mxu0
        %1132 = vdwg.mxu0
        %1133 = vst.msk [vmem:[%s303] sm:$0xff] %vm376, %v1128
        %s1134 = smul.u32 %s29, 8
        %v1135 = vlaneseq
        %v1136 = vshrl.u32 %v1135, 7
        %v1137 = vstv %s1134
        %v1138 = vadd.s32 %v1137, %v1136
        %vm1139 = vcmp.lt.s32.totalorder %v1138, 16
        %v1140 = vsub.f32 %v425, %v1025
        %v1141 = vsub.f32 %v1128, %v335
        %v1142 = vmul.f32 %v1140, %v1140
        %v1143 = vsel %vm1139, 1, 0
        %vm1144 = vcmp.eq.s32.totalorder %v1143, 1
        %v1145 = vsel %vm1144, %v1142, 0.0
        %v1146 = vrot.slane %v1145, 4
        %v1147 = vadd.f32 %v1145, %v1146
        %v1148 = vrot.slane %v1147, 2
        %v1149 = vadd.f32 %v1147, %v1148
        %v1150 = vrot.slane %v1149, 1
        %v1151 = vadd.f32 %v1149, %v1150
        %v1152 = vmul.f32 %v1141, %v1141
        %v1153 = vsel %vm1144, %v1152, 0.0
        %v1154 = vsel %vm376, %v1153, 0.0
        %v1155 = vrot.slane %v1154, 4
        %v1156 = vadd.f32 %v1154, %v1155
        %v1157 = vrot.slane %v1156, 2
        %v1158 = vadd.f32 %v1156, %v1157
        %v1159 = vrot.slane %v1158, 1
        %v1160 = vadd.f32 %v1158, %v1159
        %1161 = vst [vmem:[%s323] sm:$0x1] %v1151
        %vm1162 = vcmask 516096
        %1163 = vst.msk [vmem:[%s329] sm:$0x1] %vm1162, %v1160
        %s1164 = sand.u32 %s126, 1
        %s1165 = scalar_lea.sflag [#allocation3], %s1164
        %s1166 = sand.u32 %s126, 1
        %s1167 = smul.addr %s1166, 8
        %s1168 = scalar_lea.vmem [#allocation2], %s1167
        %s1169 = sand.u32 %s29, 1
        %s1170 = scalar_lea.sflag [#allocation5], %s1169
        %s1171 = sand.u32 %s152, 1
        %s1172 = smul.addr %s1171, 8
        %s1173 = scalar_lea.vmem [#allocation4], %s1172
        %s1174 = sand.u32 %s29, 1
        %s1175 = scalar_lea.sflag [#allocation5], %s1174
        %s1176 = sand.u32 %s178, 1
        %s1177 = smul.addr %s1176, 8
        %s1178 = scalar_lea.vmem [#allocation6], %s1177
        %s1179 = sand.u32 %s29, 1
        %s1180 = scalar_lea.sflag [#allocation8], %s1179
        %s1181 = sand.u32 %s204, 1
        %s1182 = scalar_lea.vmem [#allocation7], %s1181
        %s1183 = sand.u32 %s29, 1
        %s1184 = scalar_lea.sflag [#allocation8], %s1183
        %s1185 = sand.u32 %s230, 1
        %s1186 = scalar_lea.vmem [#allocation9], %s1185
        // Predicated region
        $region37: #{tpu_custom_call.1} parent=35 // pred_check
          %p1187 = pneg %p136
        $region38: #{tpu_custom_call.1} parent=35 // pred_check_branch
          %1189 = sbr.rel (%p1187) target = $region40
        $region39: #{tpu_custom_call.1} parent=35 // pred_region
          %s1191 = ssub.s32 128, 128
          %1192 = vsyncadd %s1165, %s1191
          %s1193 = smul.addr %s29, 128
          %s1194 = scalar_lea.hbm %s4, %s1193
          %s1196 = sshll.u32 %s1168, 4
          %s1197 = int_to_ptr.vmem [resolvable:$true] %s1196
          %1199 = dma.vmem_to_hbm [thread:$0]  %s1197, 128, %s1194, %s1165
        $region40: #{tpu_custom_call.1} parent=35 // pred_fallthru
          _
        // Predicated region
        $region41: #{tpu_custom_call.1} parent=35 // pred_check
          %p1200 = pneg %p162
        $region42: #{tpu_custom_call.1} parent=35 // pred_check_branch
          %1202 = sbr.rel (%p1200) target = $region44
        $region43: #{tpu_custom_call.1} parent=35 // pred_region
          %s1204 = ssub.s32 128, 128
          %1205 = vsyncadd %s1170, %s1204
          %s1206 = smul.addr %s29, 128
          %s1207 = scalar_lea.hbm %s5, %s1206
          %s1209 = sshll.u32 %s1173, 4
          %s1210 = int_to_ptr.vmem [resolvable:$true] %s1209
          %1212 = dma.vmem_to_hbm [thread:$0]  %s1210, 128, %s1207, %s1170
        $region44: #{tpu_custom_call.1} parent=35 // pred_fallthru
          _
        // Predicated region
        $region45: #{tpu_custom_call.1} parent=35 // pred_check
          %p1213 = pneg %p188
        $region46: #{tpu_custom_call.1} parent=35 // pred_check_branch
          %1215 = sbr.rel (%p1213) target = $region48
        $region47: #{tpu_custom_call.1} parent=35 // pred_region
          %s1217 = ssub.s32 128, 128
          %1218 = vsyncadd %s1175, %s1217
          %s1219 = smul.addr %s29, 128
          %s1220 = scalar_lea.hbm %s6, %s1219
          %s1222 = sshll.u32 %s1178, 4
          %s1223 = int_to_ptr.vmem [resolvable:$true] %s1222
          %1225 = dma.vmem_to_hbm [thread:$0]  %s1223, 128, %s1220, %s1175
        $region48: #{tpu_custom_call.1} parent=35 // pred_fallthru
          _
        // Predicated region
        $region49: #{tpu_custom_call.1} parent=35 // pred_check
          %p1226 = pneg %p214
        $region50: #{tpu_custom_call.1} parent=35 // pred_check_branch
          %1228 = sbr.rel (%p1226) target = $region52
        $region51: #{tpu_custom_call.1} parent=35 // pred_region
          %s1230 = ssub.s32 16, 16
          %1231 = vsyncadd %s1180, %s1230
          %s1232 = smul.addr %s29, 16
          %s1233 = scalar_lea.hbm %s7, %s1232
          %s1235 = sshll.u32 %s1182, 4
          %s1236 = int_to_ptr.vmem [resolvable:$true] %s1235
          %1238 = dma.vmem_to_hbm [thread:$0]  %s1236, 16, %s1233, %s1180
        $region52: #{tpu_custom_call.1} parent=35 // pred_fallthru
          _
        // Predicated region
        $region53: #{tpu_custom_call.1} parent=35 // pred_check
          %p1239 = pneg %p240
        $region54: #{tpu_custom_call.1} parent=35 // pred_check_branch
          %1241 = sbr.rel (%p1239) target = $region56
        $region55: #{tpu_custom_call.1} parent=35 // pred_region
          %s1243 = ssub.s32 16, 16
          %1244 = vsyncadd %s1184, %s1243
          %s1245 = smul.addr %s29, 16
          %s1246 = scalar_lea.hbm %s8, %s1245
          %s1248 = sshll.u32 %s1186, 4
          %s1249 = int_to_ptr.vmem [resolvable:$true] %s1248
          %1251 = dma.vmem_to_hbm [thread:$0]  %s1249, 16, %s1246, %s1184
        $region56: #{tpu_custom_call.1} parent=35 // pred_fallthru
          _
      $region36: #{tpu_custom_call.1} parent=5 // pred_fallthru
        _
      %p1252 = scmp.le.s32.totalorder 2, %s24
      // Predicated region
      $region57: #{tpu_custom_call.1} parent=5 // pred_check
        %p1253 = pneg %p1252
      $region58: #{tpu_custom_call.1} parent=5 // pred_check_branch
        %1255 = sbr.rel (%p1253) target = $region60
      $region59: #{tpu_custom_call.1} parent=5 // pred_region
        %s1256 = ssub.s32 %s24, 2
        // Predicated region
        $region61: #{tpu_custom_call.1} parent=59 // pred_check
          %p1257 = pneg %p142
        $region62: #{tpu_custom_call.1} parent=59 // pred_check_branch
          %1259 = sbr.rel (%p1257) target = $region64
        $region63: #{tpu_custom_call.1} parent=59 // pred_region
          %s1260 = sand.u32 %s127, 1
          %s1261 = scalar_lea.sflag [#allocation3], %s1260
          %s1262 = sand.u32 %s127, 1
          %s1263 = smul.addr %s1262, 8
          %s1264 = scalar_lea.vmem [#allocation2], %s1263
          %1265 = dma.done %s1261, 128
        $region64: #{tpu_custom_call.1} parent=59 // pred_fallthru
          _
        // Predicated region
        $region65: #{tpu_custom_call.1} parent=59 // pred_check
          %p1266 = pneg %p168
        $region66: #{tpu_custom_call.1} parent=59 // pred_check_branch
          %1268 = sbr.rel (%p1266) target = $region68
        $region67: #{tpu_custom_call.1} parent=59 // pred_region
          %s1269 = sand.u32 %s30, 1
          %s1270 = scalar_lea.sflag [#allocation5], %s1269
          %s1271 = sand.u32 %s153, 1
          %s1272 = smul.addr %s1271, 8
          %s1273 = scalar_lea.vmem [#allocation4], %s1272
          %1274 = dma.done %s1270, 128
        $region68: #{tpu_custom_call.1} parent=59 // pred_fallthru
          _
        // Predicated region
        $region69: #{tpu_custom_call.1} parent=59 // pred_check
          %p1275 = pneg %p194
        $region70: #{tpu_custom_call.1} parent=59 // pred_check_branch
          %1277 = sbr.rel (%p1275) target = $region72
        $region71: #{tpu_custom_call.1} parent=59 // pred_region
          %s1278 = sand.u32 %s30, 1
          %s1279 = scalar_lea.sflag [#allocation5], %s1278
          %s1280 = sand.u32 %s179, 1
          %s1281 = smul.addr %s1280, 8
          %s1282 = scalar_lea.vmem [#allocation6], %s1281
          %1283 = dma.done %s1279, 128
        $region72: #{tpu_custom_call.1} parent=59 // pred_fallthru
          _
        // Predicated region
        $region73: #{tpu_custom_call.1} parent=59 // pred_check
          %p1284 = pneg %p220
        $region74: #{tpu_custom_call.1} parent=59 // pred_check_branch
          %1286 = sbr.rel (%p1284) target = $region76
        $region75: #{tpu_custom_call.1} parent=59 // pred_region
          %s1287 = sand.u32 %s30, 1
          %s1288 = scalar_lea.sflag [#allocation8], %s1287
          %s1289 = sand.u32 %s205, 1
          %s1290 = scalar_lea.vmem [#allocation7], %s1289
          %1291 = dma.done %s1288, 16
        $region76: #{tpu_custom_call.1} parent=59 // pred_fallthru
          _
        // Predicated region
        $region77: #{tpu_custom_call.1} parent=59 // pred_check
          %p1292 = pneg %p246
        $region78: #{tpu_custom_call.1} parent=59 // pred_check_branch
          %1294 = sbr.rel (%p1292) target = $region80
        $region79: #{tpu_custom_call.1} parent=59 // pred_region
          %s1295 = sand.u32 %s30, 1
          %s1296 = scalar_lea.sflag [#allocation8], %s1295
          %s1297 = sand.u32 %s231, 1
          %s1298 = scalar_lea.vmem [#allocation9], %s1297
          %1299 = dma.done %s1296, 16
        $region80: #{tpu_custom_call.1} parent=59 // pred_fallthru
          _
      $region60: #{tpu_custom_call.1} parent=5 // pred_fallthru
        _
    $region6: #{tpu_custom_call.1} parent=1 // loop_footer
      %s28 = sadd.s32 1, %s24
    $region7: #{tpu_custom_call.1} parent=1 // loop_footer_branch
      %23 = sbr.rel target = $region3
    $region8: #{tpu_custom_call.1} parent=1 // loop_exit
      _
    %1300 = vsyncpa [#allocation3], 1
    %s1301 = scalar_lea.sflag [#allocation3], 1
    %1302 = vsyncpa %s1301, 1
    %1303 = vsyncpa [#allocation5], 1
    %s1304 = scalar_lea.sflag [#allocation5], 1
    %1305 = vsyncpa %s1304, 1
    %1306 = vsyncpa [#allocation8], 1
    %s1307 = scalar_lea.sflag [#allocation8], 1
    %1308 = vsyncpa %s1307, 1

// kernel: tpu_custom_call.1
$region0: #{tpu_custom_call.1}
  #allocation0 [shape = 'u32[]', space=smem, size = 0x4, offset = 0x4, fixed_abs, tag = 'smem constant byte address 0x4 - core index']
  #allocation1 [shape = 'u32[144,128]{1,0:T(1,128)}', space=vmem, size = 0x12000, scoped, tag = 'internal scratch']
  %s0 = inlined_call_operand.vmem [shape: f32[16,64], index: 0, kind: input, shape index: {}]
  %s1 = inlined_call_operand.vmem [shape: bf16[64,128], index: 1, kind: input, shape index: {}]
  %s2 = inlined_call_operand.vmem [shape: f32[1,128], index: 2, kind: input, shape index: {}]
  %s3 = inlined_call_operand.vmem [shape: bf16[128,64], index: 3, kind: input, shape index: {}]
  %s4 = inlined_call_operand.hbm [shape: f32[16,64], index: 4, kind: output, shape index: {0}]
  %s5 = inlined_call_operand.hbm [shape: f32[16,128], index: 5, kind: output, shape index: {1}]
  %s6 = inlined_call_operand.hbm [shape: f32[16,128], index: 6, kind: output, shape index: {2}]
  %s7 = inlined_call_operand.hbm [shape: f32[2,1,128], index: 7, kind: output, shape index: {3}]
  %s8 = inlined_call_operand.hbm [shape: f32[2,1,64], index: 8, kind: output, shape index: {4}]
  %9 = xla_tuple %s4, %s5, %s6, %s7, %s8
  %s10 = sld [smem:[#allocation0]]
  $region81: #{tpu_custom_call.1} parent=0
    _
  %s12 = ssub.s32 1, %s10
  %s13 = scalar_select 0, %s12, %s10
  $region1: #{tpu_custom_call.1} parent=0
    #allocation2 [shape = 'u8[8192]{0}', space=vmem, size = 0x2000, scoped, tag = 'output window, operand 0']
    #allocation3 [shape = 's32[2]{0}', space=sflag, size = 0x8, scoped, tag = 'scoped memory for tpu_custom_call.1']
    #allocation4 [shape = 'u8[8192]{0}', space=vmem, size = 0x2000, scoped, tag = 'output window, operand 1']
    #allocation5 [shape = 's32[2]{0}', space=sflag, size = 0x8, scoped, tag = 'scoped memory for tpu_custom_call.1']
    #allocation6 [shape = 'u8[8192]{0}', space=vmem, size = 0x2000, scoped, tag = 'output window, operand 2']
    #allocation7 [shape = 'u8[1024]{0}', space=vmem, size = 0x400, scoped, tag = 'output window, operand 3']
    #allocation8 [shape = 's32[2]{0}', space=sflag, size = 0x8, scoped, tag = 'scoped memory for tpu_custom_call.1']
    #allocation9 [shape = 'u8[1024]{0}', space=vmem, size = 0x400, scoped, tag = 'output window, operand 4']
    %14 = vsyncpa [#allocation3], 0
    %s15 = scalar_lea.sflag [#allocation3], 1
    %16 = vsyncpa %s15, 0
    %17 = vsyncpa [#allocation5], 0
    %s18 = scalar_lea.sflag [#allocation5], 1
    %19 = vsyncpa %s18, 0
    %20 = vsyncpa [#allocation8], 0
    %s21 = scalar_lea.sflag [#allocation8], 1
    %22 = vsyncpa %s21, 0
    loop: start=0, step=1, limit=4
    $region2: #{tpu_custom_call.1} parent=1 // loop_pre_header
      _
    $region3: #{tpu_custom_call.1} parent=1 // loop_header
      %s24 = sphi 0, %s28
      %p25 = scmp.ge.s32.totalorder %s24, 4
      %s34 = sphi 0, %s36
      %s37 = sphi 0, %s34
      %s38 = sphi 0, %s37
      %s54 = sphi 0, %s38
      %s58 = sphi 0, %s58
      %s60 = sphi 0, %s58
      %s61 = sphi 0, %s60
      %s75 = sphi 0, %s61
      %s79 = sphi 0, %s79
      %s81 = sphi 0, %s79
      %s82 = sphi 0, %s81
      %s96 = sphi 0, %s82
      %s100 = sphi 0, %s100
      %s102 = sphi 0, %s100
      %s103 = sphi 0, %s102
      %s117 = sphi 0, %s103
      %s123 = sphi 0, %s125
      %s126 = sphi 0, %s123
      %s127 = sphi 0, %s126
      %s143 = sphi 0, %s127
      %s149 = sphi 0, %s151
      %s152 = sphi 0, %s149
      %s153 = sphi 0, %s152
      %s169 = sphi 0, %s153
      %s175 = sphi 0, %s177
      %s178 = sphi 0, %s175
      %s179 = sphi 0, %s178
      %s195 = sphi 0, %s179
      %s201 = sphi 0, %s203
      %s204 = sphi 0, %s201
      %s205 = sphi 0, %s204
      %s221 = sphi 0, %s205
      %s227 = sphi 0, %s229
      %s230 = sphi 0, %s227
      %s231 = sphi 0, %s230
      %s247 = sphi 0, %s231
    $region4: #{tpu_custom_call.1} parent=1 // loop_header_branch
      %27 = sbr.rel (%p25) target = $region8
    $region5: #{tpu_custom_call.1} parent=1 // loop_body
      %s29 = ssub.s32 %s24, 1
      %s30 = ssub.s32 %s24, 2
      %s31 = sadd.s32 %s24, 1
      %s32 = ssub.s32 %s24, %s31
      %p33 = scmp.eq.s32.totalorder %s32, 0
      %s35 = sadd.s32 %s34, 1
      %s36 = scalar_select %p33, %s34, %s35
      %p39 = pneg %p33
      %p40 = scmp.eq.s32.totalorder %s24, 1
      %p41 = por %p39, %p40
      %p42 = scmp.ne.s32.totalorder %s34, %s37
      %p43 = scmp.eq.s32.totalorder %s24, 0
      %p44 = por %p42, %p43
      %p45 = scmp.ne.s32.totalorder %s34, %s37
      %p46 = scmp.eq.s32.totalorder %s29, 1
      %p47 = por %p45, %p46
      %p48 = scmp.ne.s32.totalorder %s37, %s38
      %p49 = scmp.eq.s32.totalorder %s29, 0
      %p50 = por %p48, %p49
      %p51 = scmp.ne.s32.totalorder %s37, %s38
      %p52 = scmp.eq.s32.totalorder %s30, 1
      %p53 = por %p51, %p52
      %p55 = scmp.ne.s32.totalorder %s38, %s54
      %p56 = scmp.eq.s32.totalorder %s30, 0
      %p57 = por %p55, %p56
      %s59 = sadd.s32 %s58, 1
      %p62 = scmp.eq.s32.totalorder %s24, 1
      %p63 = scmp.ne.s32.totalorder %s58, %s60
      %p64 = scmp.eq.s32.totalorder %s24, 0
      %p65 = por %p63, %p64
      %p66 = scmp.ne.s32.totalorder %s58, %s60
      %p67 = scmp.eq.s32.totalorder %s29, 1
      %p68 = por %p66, %p67
      %p69 = scmp.ne.s32.totalorder %s60, %s61
      %p70 = scmp.eq.s32.totalorder %s29, 0
      %p71 = por %p69, %p70
      %p72 = scmp.ne.s32.totalorder %s60, %s61
      %p73 = scmp.eq.s32.totalorder %s30, 1
      %p74 = por %p72, %p73
      %p76 = scmp.ne.s32.totalorder %s61, %s75
      %p77 = scmp.eq.s32.totalorder %s30, 0
      %p78 = por %p76, %p77
      %s80 = sadd.s32 %s79, 1
      %p83 = scmp.eq.s32.totalorder %s24, 1
      %p84 = scmp.ne.s32.totalorder %s79, %s81
      %p85 = scmp.eq.s32.totalorder %s24, 0
      %p86 = por %p84, %p85
      %p87 = scmp.ne.s32.totalorder %s79, %s81
      %p88 = scmp.eq.s32.totalorder %s29, 1
      %p89 = por %p87, %p88
      %p90 = scmp.ne.s32.totalorder %s81, %s82
      %p91 = scmp.eq.s32.totalorder %s29, 0
      %p92 = por %p90, %p91
      %p93 = scmp.ne.s32.totalorder %s81, %s82
      %p94 = scmp.eq.s32.totalorder %s30, 1
      %p95 = por %p93, %p94
      %p97 = scmp.ne.s32.totalorder %s82, %s96
      %p98 = scmp.eq.s32.totalorder %s30, 0
      %p99 = por %p97, %p98
      %s101 = sadd.s32 %s100, 1
      %p104 = scmp.eq.s32.totalorder %s24, 1
      %p105 = scmp.ne.s32.totalorder %s100, %s102
      %p106 = scmp.eq.s32.totalorder %s24, 0
      %p107 = por %p105, %p106
      %p108 = scmp.ne.s32.totalorder %s100, %s102
      %p109 = scmp.eq.s32.totalorder %s29, 1
      %p110 = por %p108, %p109
      %p111 = scmp.ne.s32.totalorder %s102, %s103
      %p112 = scmp.eq.s32.totalorder %s29, 0
      %p113 = por %p111, %p112
      %p114 = scmp.ne.s32.totalorder %s102, %s103
      %p115 = scmp.eq.s32.totalorder %s30, 1
      %p116 = por %p114, %p115
      %p118 = scmp.ne.s32.totalorder %s103, %s117
      %p119 = scmp.eq.s32.totalorder %s30, 0
      %p120 = por %p118, %p119
      %s121 = ssub.s32 %s24, %s31
      %p122 = scmp.eq.s32.totalorder %s121, 0
      %s124 = sadd.s32 %s123, 1
      %s125 = scalar_select %p122, %s123, %s124
      %p128 = pneg %p122
      %p129 = scmp.eq.s32.totalorder %s24, 1
      %p130 = por %p128, %p129
      %p131 = scmp.ne.s32.totalorder %s123, %s126
      %p132 = scmp.eq.s32.totalorder %s24, 0
      %p133 = por %p131, %p132
      %p134 = scmp.ne.s32.totalorder %s123, %s126
      %p135 = scmp.eq.s32.totalorder %s29, 1
      %p136 = por %p134, %p135
      %p137 = scmp.ne.s32.totalorder %s126, %s127
      %p138 = scmp.eq.s32.totalorder %s29, 0
      %p139 = por %p137, %p138
      %p140 = scmp.ne.s32.totalorder %s126, %s127
      %p141 = scmp.eq.s32.totalorder %s30, 1
      %p142 = por %p140, %p141
      %p144 = scmp.ne.s32.totalorder %s127, %s143
      %p145 = scmp.eq.s32.totalorder %s30, 0
      %p146 = por %p144, %p145
      %s147 = ssub.s32 %s24, %s31
      %p148 = scmp.eq.s32.totalorder %s147, 0
      %s150 = sadd.s32 %s149, 1
      %s151 = scalar_select %p148, %s149, %s150
      %p154 = pneg %p148
      %p155 = scmp.eq.s32.totalorder %s24, 1
      %p156 = por %p154, %p155
      %p157 = scmp.ne.s32.totalorder %s149, %s152
      %p158 = scmp.eq.s32.totalorder %s24, 0
      %p159 = por %p157, %p158
      %p160 = scmp.ne.s32.totalorder %s149, %s152
      %p161 = scmp.eq.s32.totalorder %s29, 1
      %p162 = por %p160, %p161
      %p163 = scmp.ne.s32.totalorder %s152, %s153
      %p164 = scmp.eq.s32.totalorder %s29, 0
      %p165 = por %p163, %p164
      %p166 = scmp.ne.s32.totalorder %s152, %s153
      %p167 = scmp.eq.s32.totalorder %s30, 1
      %p168 = por %p166, %p167
      %p170 = scmp.ne.s32.totalorder %s153, %s169
      %p171 = scmp.eq.s32.totalorder %s30, 0
      %p172 = por %p170, %p171
      %s173 = ssub.s32 %s24, %s31
      %p174 = scmp.eq.s32.totalorder %s173, 0
      %s176 = sadd.s32 %s175, 1
      %s177 = scalar_select %p174, %s175, %s176
      %p180 = pneg %p174
      %p181 = scmp.eq.s32.totalorder %s24, 1
      %p182 = por %p180, %p181
      %p183 = scmp.ne.s32.totalorder %s175, %s178
      %p184 = scmp.eq.s32.totalorder %s24, 0
      %p185 = por %p183, %p184
      %p186 = scmp.ne.s32.totalorder %s175, %s178
      %p187 = scmp.eq.s32.totalorder %s29, 1
      %p188 = por %p186, %p187
      %p189 = scmp.ne.s32.totalorder %s178, %s179
      %p190 = scmp.eq.s32.totalorder %s29, 0
      %p191 = por %p189, %p190
      %p192 = scmp.ne.s32.totalorder %s178, %s179
      %p193 = scmp.eq.s32.totalorder %s30, 1
      %p194 = por %p192, %p193
      %p196 = scmp.ne.s32.totalorder %s179, %s195
      %p197 = scmp.eq.s32.totalorder %s30, 0
      %p198 = por %p196, %p197
      %s199 = ssub.s32 %s24, %s31
      %p200 = scmp.eq.s32.totalorder %s199, 0
      %s202 = sadd.s32 %s201, 1
      %s203 = scalar_select %p200, %s201, %s202
      %p206 = pneg %p200
      %p207 = scmp.eq.s32.totalorder %s24, 1
      %p208 = por %p206, %p207
      %p209 = scmp.ne.s32.totalorder %s201, %s204
      %p210 = scmp.eq.s32.totalorder %s24, 0
      %p211 = por %p209, %p210
      %p212 = scmp.ne.s32.totalorder %s201, %s204
      %p213 = scmp.eq.s32.totalorder %s29, 1
      %p214 = por %p212, %p213
      %p215 = scmp.ne.s32.totalorder %s204, %s205
      %p216 = scmp.eq.s32.totalorder %s29, 0
      %p217 = por %p215, %p216
      %p218 = scmp.ne.s32.totalorder %s204, %s205
      %p219 = scmp.eq.s32.totalorder %s30, 1
      %p220 = por %p218, %p219
      %p222 = scmp.ne.s32.totalorder %s205, %s221
      %p223 = scmp.eq.s32.totalorder %s30, 0
      %p224 = por %p222, %p223
      %s225 = ssub.s32 %s24, %s31
      %p226 = scmp.eq.s32.totalorder %s225, 0
      %s228 = sadd.s32 %s227, 1
      %s229 = scalar_select %p226, %s227, %s228
      %p232 = pneg %p226
      %p233 = scmp.eq.s32.totalorder %s24, 1
      %p234 = por %p232, %p233
      %p235 = scmp.ne.s32.totalorder %s227, %s230
      %p236 = scmp.eq.s32.totalorder %s24, 0
      %p237 = por %p235, %p236
      %p238 = scmp.ne.s32.totalorder %s227, %s230
      %p239 = scmp.eq.s32.totalorder %s29, 1
      %p240 = por %p238, %p239
      %p241 = scmp.ne.s32.totalorder %s230, %s231
      %p242 = scmp.eq.s32.totalorder %s29, 0
      %p243 = por %p241, %p242
      %p244 = scmp.ne.s32.totalorder %s230, %s231
      %p245 = scmp.eq.s32.totalorder %s30, 1
      %p246 = por %p244, %p245
      %p248 = scmp.ne.s32.totalorder %s231, %s247
      %p249 = scmp.eq.s32.totalorder %s30, 0
      %p250 = por %p248, %p249
      %p251 = scmp.le.s32.totalorder 1, %s24
      %p252 = scmp.lt.s32.totalorder %s24, 3
      %p253 = pnand %p251, %p252
      %p254 = pneg %p253
      // Predicated region
      $region9: #{tpu_custom_call.1} parent=5 // pred_check
        _
      $region10: #{tpu_custom_call.1} parent=5 // pred_check_branch
        %256 = sbr.rel (%p253) target = $region12
      $region11: #{tpu_custom_call.1} parent=5 // pred_region
        %s257 = ssub.s32 %s24, 1
        // Predicated region
        $region13: #{tpu_custom_call.1} parent=11 // pred_check
          %p258 = pneg %p71
        $region14: #{tpu_custom_call.1} parent=11 // pred_check_branch
          %260 = sbr.rel (%p258) target = $region16
        $region15: #{tpu_custom_call.1} parent=11 // pred_region
          _
        $region16: #{tpu_custom_call.1} parent=11 // pred_fallthru
          _
        // Predicated region
        $region17: #{tpu_custom_call.1} parent=11 // pred_check
          %p261 = pneg %p92
        $region18: #{tpu_custom_call.1} parent=11 // pred_check_branch
          %263 = sbr.rel (%p261) target = $region20
        $region19: #{tpu_custom_call.1} parent=11 // pred_region
          _
        $region20: #{tpu_custom_call.1} parent=11 // pred_fallthru
          _
        // Predicated region
        $region21: #{tpu_custom_call.1} parent=11 // pred_check
          %p264 = pneg %p113
        $region22: #{tpu_custom_call.1} parent=11 // pred_check_branch
          %266 = sbr.rel (%p264) target = $region24
        $region23: #{tpu_custom_call.1} parent=11 // pred_region
          _
        $region24: #{tpu_custom_call.1} parent=11 // pred_fallthru
          _
      $region12: #{tpu_custom_call.1} parent=5 // pred_fallthru
        _
      %p267 = scmp.lt.s32.totalorder %s24, 2
      // Predicated region
      $region25: #{tpu_custom_call.1} parent=5 // pred_check
        %p268 = pneg %p267
      $region26: #{tpu_custom_call.1} parent=5 // pred_check_branch
        %270 = sbr.rel (%p268) target = $region28
      $region27: #{tpu_custom_call.1} parent=5 // pred_region
        // Predicated region
        $region29: #{tpu_custom_call.1} parent=27 // pred_check
          %p271 = pneg %p44
        $region30: #{tpu_custom_call.1} parent=27 // pred_check_branch
          %273 = sbr.rel (%p271) target = $region32
        $region31: #{tpu_custom_call.1} parent=27 // pred_region
          %p274 = scmp.lt.s32.totalorder %s24, 1
          %s275 = scalar_select %p274, %s24, 1
          %s276 = smul.addr %s275, 8
          %s277 = scalar_lea.vmem %s0, %s276
        $region32: #{tpu_custom_call.1} parent=27 // pred_fallthru
          _
      $region28: #{tpu_custom_call.1} parent=5 // pred_fallthru
        _
      %p278 = scmp.le.s32.totalorder 1, %s24
      %p279 = scmp.lt.s32.totalorder %s24, 3
      %p280 = pnand %p278, %p279
      %p281 = pneg %p280
      // Predicated region
      $region33: #{tpu_custom_call.1} parent=5 // pred_check
        _
      $region34: #{tpu_custom_call.1} parent=5 // pred_check_branch
        %283 = sbr.rel (%p280) target = $region36
      $region35: #{tpu_custom_call.1} parent=5 // pred_region
        %s284 = ssub.s32 %s24, 1
        %p285 = scmp.lt.s32.totalorder %s29, 1
        %s286 = scalar_select %p285, %s29, 1
        %s287 = smul.addr %s286, 8
        %s288 = scalar_lea.vmem %s0, %s287
        %p289 = pneg %p50
        %p290 = pneg %p47
        %p291 = pneg %p71
        %p292 = pneg %p68
        %p293 = pneg %p92
        %p294 = pneg %p89
        %p295 = pneg %p113
        %p296 = pneg %p110
        %p297 = pneg %p139
        %p298 = pneg %p136
        %s299 = sand.u32 %s126, 1
        %s300 = scalar_lea.sflag [#allocation3], %s299
        %s301 = sand.u32 %s126, 1
        %s302 = smul.addr %s301, 8
        %s303 = scalar_lea.vmem [#allocation2], %s302
        %p304 = pneg %p165
        %p305 = pneg %p162
        %s306 = sand.u32 %s29, 1
        %s307 = scalar_lea.sflag [#allocation5], %s306
        %s308 = sand.u32 %s152, 1
        %s309 = smul.addr %s308, 8
        %s310 = scalar_lea.vmem [#allocation4], %s309
        %p311 = pneg %p191
        %p312 = pneg %p188
        %s313 = sand.u32 %s29, 1
        %s314 = scalar_lea.sflag [#allocation5], %s313
        %s315 = sand.u32 %s178, 1
        %s316 = smul.addr %s315, 8
        %s317 = scalar_lea.vmem [#allocation6], %s316
        %p318 = pneg %p217
        %p319 = pneg %p214
        %s320 = sand.u32 %s29, 1
        %s321 = scalar_lea.sflag [#allocation8], %s320
        %s322 = sand.u32 %s204, 1
        %s323 = scalar_lea.vmem [#allocation7], %s322
        %p324 = pneg %p243
        %p325 = pneg %p240
        %s326 = sand.u32 %s29, 1
        %s327 = scalar_lea.sflag [#allocation8], %s326
        %s328 = sand.u32 %s230, 1
        %s329 = scalar_lea.vmem [#allocation9], %s328
        %p330 = scmp.lt.s32.totalorder %s29, 1
        %s331 = scalar_select %p330, %s29, 1
        %s332 = smul.addr %s331, 8
        %s333 = scalar_lea.vmem %s0, %s332
        %v335 = vld [vmem:[%s333] sm:$0xff]
        %v336 = vpack.c.bf16 %v335, %v335
        %v337 = vld [vmem:[%s1] sm:$0xf]
        %v338 = vld [vmem:[%s1 + $0x4] sm:$0xf]
        %v339 = vld [vmem:[%s1 + $0x8] sm:$0xf]
        %v340 = vld [vmem:[%s1 + $0xc] sm:$0xf]
        %v341 = vld [vmem:[%s1 + $0x10] sm:$0xf]
        %v342 = vld [vmem:[%s1 + $0x14] sm:$0xf]
        %v343 = vld [vmem:[%s1 + $0x18] sm:$0xf]
        %v344 = vld [vmem:[%s1 + $0x1c] sm:$0xf]
        %v345 = vld [vmem:[%s2] sm:$0x1]
        %v347 = vlaneseq
        %v348 = vshrl.u32 %v347, 7
        %v349 = vsub.s32 0, %v348
        %v350 = vrot.slane %v345, %v349
        %v360 = vunpack.c.l.b16 %v337
        %v361 = vunpack.c.l.b16 %v338
        %v362 = vunpack.c.l.b16 %v339
        %v363 = vunpack.c.l.b16 %v340
        %v364 = vunpack.c.l.b16 %v341
        %v365 = vunpack.c.l.b16 %v342
        %v366 = vunpack.c.l.b16 %v343
        %v367 = vunpack.c.l.b16 %v344
        %v368 = vpack.c.b16 %v361, %v360
        %v369 = vpack.c.b16 %v363, %v362
        %v370 = vpack.c.b16 %v365, %v364
        %v371 = vpack.c.b16 %v367, %v366
        %vm376 = vcmask 523264
        %v378 = vsel %vm376, %v336, 0
        %380 = vmatprep.subr.bf16.mxu0 0
        %381 = vmatpush1.bf16.msra.mxu0 0
        %382 = vmatprep.subr.bf16.mxu0 0
        %383 = vmatpush1.bf16.msra.mxu0 0
        %384 = vmatprep.subr.bf16.mxu0 0
        %385 = vmatpush1.bf16.msra.mxu0 0
        %386 = vmatprep.subr.bf16.mxu0 0
        %387 = vmatpush1.bf16.msra.mxu0 0
        %388 = vmatprep.subr.bf16.mxu0 0
        %389 = vmatpush1.bf16.msra.mxu0 %v371
        %390 = vmatprep.subr.bf16.mxu0 0
        %391 = vmatpush1.bf16.msra.mxu0 %v370
        %392 = vmatprep.subr.bf16.mxu0 0
        %393 = vmatpush1.bf16.msra.mxu0 %v369
        %394 = vmatprep.subr.bf16.mxu0 0
        %395 = vmatpush1.bf16.msra.mxu0 %v368
        %396 = vmatprep.subr.bf16.mxu0 0
        %397 = vmatpush2.bf16.msra.mxu0 0
        %398 = vmatprep.subr.bf16.mxu0 0
        %399 = vmatpush2.bf16.msra.mxu0 0
        %400 = vmatprep.subr.bf16.mxu0 0
        %401 = vmatpush2.bf16.msra.mxu0 0
        %402 = vmatprep.subr.bf16.mxu0 0
        %403 = vmatpush2.bf16.msra.mxu0 0
        %404 = vmatprep.subr.bf16.mxu0 0
        %405 = vmatpush2.bf16.msra.mxu0 0
        %406 = vmatprep.subr.bf16.mxu0 0
        %407 = vmatpush2.bf16.msra.mxu0 0
        %408 = vmatprep.subr.bf16.mxu0 0
        %409 = vmatpush2.bf16.msra.mxu0 0
        %410 = vmatprep.subr.bf16.mxu0 0
        %411 = vmatpush2.bf16.msra.mxu0 0
        %412 = vmatprep.mubr.bf16.mxu0 0
        %413 = vmatmul.mubr.bf16.gmra.mxu0 %v378
        %v414 = vpop.f32.mrf.mxu0
        %v415 = vadd.f32 %v350, %v414
        %v416 = vpop.f32.mrf.mxu0
        %v417 = vpop.f32.mrf.mxu0
        %v418 = vpop.f32.mrf.mxu0
        %419 = vdwg.mxu0
        %v420 = vxor.u32 %v415, 2147483648
        %v421 = vmul.f32 %v420, 1.442695
        %v422 = vpow.pop %v421
        %v423 = vadd.f32 %v422, 1.0
        %v424 = vrcp.pop %v423
        %v425 = vmul.f32 1.0, %v424
        %vm427 = vcmp.le.s32.totalorder %v425, 532676607
        %v428 = vsel %vm427, 1, 0
        %v429 = vand.u32 %v428, 65535
        %v430 = vshrl.u32 %v428, 16
        %v431 = vcvt.s32.f32 %v429
        %v432 = vcvt.s32.f32 %v430
        %433 = vadd.xlane.f32.xlu0 %v431
        %v434 = vpop.xlane.xlu0 %433
        %435 = vadd.xlane.f32.xlu0 %v432
        %v436 = vpop.xlane.xlu0 %435
        %v437 = vcvt.f32.s32 %v434
        %v438 = vcvt.f32.s32 %v436
        %v439 = vshll.u32 %v438, 16
        %v440 = vadd.s32 %v439, %v437
        %vm441 = vcmp.ge.s32.totalorder %v440, 112
        %v442 = vsel %vm441, 532676607, 1065353216
        %v443 = vsel %vm441, 4294967295, 532676607
        %v444 = vsub.s32 %v442, %v443
        %v445 = vshra.s32 %v444, 1
        %v446 = vadd.s32 %v443, %v445
        %vm447 = vcmp.le.s32.totalorder %v425, %v446
        %v448 = vsel %vm447, 1, 0
        %v449 = vand.u32 %v448, 65535
        %v450 = vshrl.u32 %v448, 16
        %v451 = vcvt.s32.f32 %v449
        %v452 = vcvt.s32.f32 %v450
        %453 = vadd.xlane.f32.xlu0 %v451
        %v454 = vpop.xlane.xlu0 %453
        %455 = vadd.xlane.f32.xlu0 %v452
        %v456 = vpop.xlane.xlu0 %455
        %v457 = vcvt.f32.s32 %v454
        %v458 = vcvt.f32.s32 %v456
        %v459 = vshll.u32 %v458, 16
        %v460 = vadd.s32 %v459, %v457
        %vm461 = vcmp.ge.s32.totalorder %v460, 112
        %v462 = vsel %vm461, %v446, %v442
        %v463 = vsel %vm461, %v443, %v446
        %v464 = vsub.s32 %v462, %v463
        %v465 = vshra.s32 %v464, 1
        %v466 = vadd.s32 %v463, %v465
        %vm467 = vcmp.le.s32.totalorder %v425, %v466
        %v468 = vsel %vm467, 1, 0
        %v469 = vand.u32 %v468, 65535
        %v470 = vshrl.u32 %v468, 16
        %v471 = vcvt.s32.f32 %v469
        %v472 = vcvt.s32.f32 %v470
        %473 = vadd.xlane.f32.xlu0 %v471
        %v474 = vpop.xlane.xlu0 %473
        %475 = vadd.xlane.f32.xlu0 %v472
        %v476 = vpop.xlane.xlu0 %475
        %v477 = vcvt.f32.s32 %v474
        %v478 = vcvt.f32.s32 %v476
        %v479 = vshll.u32 %v478, 16
        %v480 = vadd.s32 %v479, %v477
        %vm481 = vcmp.ge.s32.totalorder %v480, 112
        %v482 = vsel %vm481, %v466, %v462
        %v483 = vsel %vm481, %v463, %v466
        %v484 = vsub.s32 %v482, %v483
        %v485 = vshra.s32 %v484, 1
        %v486 = vadd.s32 %v483, %v485
        %vm487 = vcmp.le.s32.totalorder %v425, %v486
        %v488 = vsel %vm487, 1, 0
        %v489 = vand.u32 %v488, 65535
        %v490 = vshrl.u32 %v488, 16
        %v491 = vcvt.s32.f32 %v489
        %v492 = vcvt.s32.f32 %v490
        %493 = vadd.xlane.f32.xlu0 %v491
        %v494 = vpop.xlane.xlu0 %493
        %495 = vadd.xlane.f32.xlu0 %v492
        %v496 = vpop.xlane.xlu0 %495
        %v497 = vcvt.f32.s32 %v494
        %v498 = vcvt.f32.s32 %v496
        %v499 = vshll.u32 %v498, 16
        %v500 = vadd.s32 %v499, %v497
        %vm501 = vcmp.ge.s32.totalorder %v500, 112
        %v502 = vsel %vm501, %v486, %v482
        %v503 = vsel %vm501, %v483, %v486
        %v504 = vsub.s32 %v502, %v503
        %v505 = vshra.s32 %v504, 1
        %v506 = vadd.s32 %v503, %v505
        %vm507 = vcmp.le.s32.totalorder %v425, %v506
        %v508 = vsel %vm507, 1, 0
        %v509 = vand.u32 %v508, 65535
        %v510 = vshrl.u32 %v508, 16
        %v511 = vcvt.s32.f32 %v509
        %v512 = vcvt.s32.f32 %v510
        %513 = vadd.xlane.f32.xlu0 %v511
        %v514 = vpop.xlane.xlu0 %513
        %515 = vadd.xlane.f32.xlu0 %v512
        %v516 = vpop.xlane.xlu0 %515
        %v517 = vcvt.f32.s32 %v514
        %v518 = vcvt.f32.s32 %v516
        %v519 = vshll.u32 %v518, 16
        %v520 = vadd.s32 %v519, %v517
        %vm521 = vcmp.ge.s32.totalorder %v520, 112
        %v522 = vsel %vm521, %v506, %v502
        %v523 = vsel %vm521, %v503, %v506
        %v524 = vsub.s32 %v522, %v523
        %v525 = vshra.s32 %v524, 1
        %v526 = vadd.s32 %v523, %v525
        %vm527 = vcmp.le.s32.totalorder %v425, %v526
        %v528 = vsel %vm527, 1, 0
        %v529 = vand.u32 %v528, 65535
        %v530 = vshrl.u32 %v528, 16
        %v531 = vcvt.s32.f32 %v529
        %v532 = vcvt.s32.f32 %v530
        %533 = vadd.xlane.f32.xlu0 %v531
        %v534 = vpop.xlane.xlu0 %533
        %535 = vadd.xlane.f32.xlu0 %v532
        %v536 = vpop.xlane.xlu0 %535
        %v537 = vcvt.f32.s32 %v534
        %v538 = vcvt.f32.s32 %v536
        %v539 = vshll.u32 %v538, 16
        %v540 = vadd.s32 %v539, %v537
        %vm541 = vcmp.ge.s32.totalorder %v540, 112
        %v542 = vsel %vm541, %v526, %v522
        %v543 = vsel %vm541, %v523, %v526
        %v544 = vsub.s32 %v542, %v543
        %v545 = vshra.s32 %v544, 1
        %v546 = vadd.s32 %v543, %v545
        %vm547 = vcmp.le.s32.totalorder %v425, %v546
        %v548 = vsel %vm547, 1, 0
        %v549 = vand.u32 %v548, 65535
        %v550 = vshrl.u32 %v548, 16
        %v551 = vcvt.s32.f32 %v549
        %v552 = vcvt.s32.f32 %v550
        %553 = vadd.xlane.f32.xlu0 %v551
        %v554 = vpop.xlane.xlu0 %553
        %555 = vadd.xlane.f32.xlu0 %v552
        %v556 = vpop.xlane.xlu0 %555
        %v557 = vcvt.f32.s32 %v554
        %v558 = vcvt.f32.s32 %v556
        %v559 = vshll.u32 %v558, 16
        %v560 = vadd.s32 %v559, %v557
        %vm561 = vcmp.ge.s32.totalorder %v560, 112
        %v562 = vsel %vm561, %v546, %v542
        %v563 = vsel %vm561, %v543, %v546
        %v564 = vsub.s32 %v562, %v563
        %v565 = vshra.s32 %v564, 1
        %v566 = vadd.s32 %v563, %v565
        %vm567 = vcmp.le.s32.totalorder %v425, %v566
        %v568 = vsel %vm567, 1, 0
        %v569 = vand.u32 %v568, 65535
        %v570 = vshrl.u32 %v568, 16
        %v571 = vcvt.s32.f32 %v569
        %v572 = vcvt.s32.f32 %v570
        %573 = vadd.xlane.f32.xlu0 %v571
        %v574 = vpop.xlane.xlu0 %573
        %575 = vadd.xlane.f32.xlu0 %v572
        %v576 = vpop.xlane.xlu0 %575
        %v577 = vcvt.f32.s32 %v574
        %v578 = vcvt.f32.s32 %v576
        %v579 = vshll.u32 %v578, 16
        %v580 = vadd.s32 %v579, %v577
        %vm581 = vcmp.ge.s32.totalorder %v580, 112
        %v582 = vsel %vm581, %v566, %v562
        %v583 = vsel %vm581, %v563, %v566
        %v584 = vsub.s32 %v582, %v583
        %v585 = vshra.s32 %v584, 1
        %v586 = vadd.s32 %v583, %v585
        %vm587 = vcmp.le.s32.totalorder %v425, %v586
        %v588 = vsel %vm587, 1, 0
        %v589 = vand.u32 %v588, 65535
        %v590 = vshrl.u32 %v588, 16
        %v591 = vcvt.s32.f32 %v589
        %v592 = vcvt.s32.f32 %v590
        %593 = vadd.xlane.f32.xlu0 %v591
        %v594 = vpop.xlane.xlu0 %593
        %595 = vadd.xlane.f32.xlu0 %v592
        %v596 = vpop.xlane.xlu0 %595
        %v597 = vcvt.f32.s32 %v594
        %v598 = vcvt.f32.s32 %v596
        %v599 = vshll.u32 %v598, 16
        %v600 = vadd.s32 %v599, %v597
        %vm601 = vcmp.ge.s32.totalorder %v600, 112
        %v602 = vsel %vm601, %v586, %v582
        %v603 = vsel %vm601, %v583, %v586
        %v604 = vsub.s32 %v602, %v603
        %v605 = vshra.s32 %v604, 1
        %v606 = vadd.s32 %v603, %v605
        %vm607 = vcmp.le.s32.totalorder %v425, %v606
        %v608 = vsel %vm607, 1, 0
        %v609 = vand.u32 %v608, 65535
        %v610 = vshrl.u32 %v608, 16
        %v611 = vcvt.s32.f32 %v609
        %v612 = vcvt.s32.f32 %v610
        %613 = vadd.xlane.f32.xlu0 %v611
        %v614 = vpop.xlane.xlu0 %613
        %615 = vadd.xlane.f32.xlu0 %v612
        %v616 = vpop.xlane.xlu0 %615
        %v617 = vcvt.f32.s32 %v614
        %v618 = vcvt.f32.s32 %v616
        %v619 = vshll.u32 %v618, 16
        %v620 = vadd.s32 %v619, %v617
        %vm621 = vcmp.ge.s32.totalorder %v620, 112
        %v622 = vsel %vm621, %v606, %v602
        %v623 = vsel %vm621, %v603, %v606
        %v624 = vsub.s32 %v622, %v623
        %v625 = vshra.s32 %v624, 1
        %v626 = vadd.s32 %v623, %v625
        %vm627 = vcmp.le.s32.totalorder %v425, %v626
        %v628 = vsel %vm627, 1, 0
        %v629 = vand.u32 %v628, 65535
        %v630 = vshrl.u32 %v628, 16
        %v631 = vcvt.s32.f32 %v629
        %v632 = vcvt.s32.f32 %v630
        %633 = vadd.xlane.f32.xlu0 %v631
        %v634 = vpop.xlane.xlu0 %633
        %635 = vadd.xlane.f32.xlu0 %v632
        %v636 = vpop.xlane.xlu0 %635
        %v637 = vcvt.f32.s32 %v634
        %v638 = vcvt.f32.s32 %v636
        %v639 = vshll.u32 %v638, 16
        %v640 = vadd.s32 %v639, %v637
        %vm641 = vcmp.ge.s32.totalorder %v640, 112
        %v642 = vsel %vm641, %v626, %v622
        %v643 = vsel %vm641, %v623, %v626
        %v644 = vsub.s32 %v642, %v643
        %v645 = vshra.s32 %v644, 1
        %v646 = vadd.s32 %v643, %v645
        %vm647 = vcmp.le.s32.totalorder %v425, %v646
        %v648 = vsel %vm647, 1, 0
        %v649 = vand.u32 %v648, 65535
        %v650 = vshrl.u32 %v648, 16
        %v651 = vcvt.s32.f32 %v649
        %v652 = vcvt.s32.f32 %v650
        %653 = vadd.xlane.f32.xlu0 %v651
        %v654 = vpop.xlane.xlu0 %653
        %655 = vadd.xlane.f32.xlu0 %v652
        %v656 = vpop.xlane.xlu0 %655
        %v657 = vcvt.f32.s32 %v654
        %v658 = vcvt.f32.s32 %v656
        %v659 = vshll.u32 %v658, 16
        %v660 = vadd.s32 %v659, %v657
        %vm661 = vcmp.ge.s32.totalorder %v660, 112
        %v662 = vsel %vm661, %v646, %v642
        %v663 = vsel %vm661, %v643, %v646
        %v664 = vsub.s32 %v662, %v663
        %v665 = vshra.s32 %v664, 1
        %v666 = vadd.s32 %v663, %v665
        %vm667 = vcmp.le.s32.totalorder %v425, %v666
        %v668 = vsel %vm667, 1, 0
        %v669 = vand.u32 %v668, 65535
        %v670 = vshrl.u32 %v668, 16
        %v671 = vcvt.s32.f32 %v669
        %v672 = vcvt.s32.f32 %v670
        %673 = vadd.xlane.f32.xlu0 %v671
        %v674 = vpop.xlane.xlu0 %673
        %675 = vadd.xlane.f32.xlu0 %v672
        %v676 = vpop.xlane.xlu0 %675
        %v677 = vcvt.f32.s32 %v674
        %v678 = vcvt.f32.s32 %v676
        %v679 = vshll.u32 %v678, 16
        %v680 = vadd.s32 %v679, %v677
        %vm681 = vcmp.ge.s32.totalorder %v680, 112
        %v682 = vsel %vm681, %v666, %v662
        %v683 = vsel %vm681, %v663, %v666
        %v684 = vsub.s32 %v682, %v683
        %v685 = vshra.s32 %v684, 1
        %v686 = vadd.s32 %v683, %v685
        %vm687 = vcmp.le.s32.totalorder %v425, %v686
        %v688 = vsel %vm687, 1, 0
        %v689 = vand.u32 %v688, 65535
        %v690 = vshrl.u32 %v688, 16
        %v691 = vcvt.s32.f32 %v689
        %v692 = vcvt.s32.f32 %v690
        %693 = vadd.xlane.f32.xlu0 %v691
        %v694 = vpop.xlane.xlu0 %693
        %695 = vadd.xlane.f32.xlu0 %v692
        %v696 = vpop.xlane.xlu0 %695
        %v697 = vcvt.f32.s32 %v694
        %v698 = vcvt.f32.s32 %v696
        %v699 = vshll.u32 %v698, 16
        %v700 = vadd.s32 %v699, %v697
        %vm701 = vcmp.ge.s32.totalorder %v700, 112
        %v702 = vsel %vm701, %v686, %v682
        %v703 = vsel %vm701, %v683, %v686
        %v704 = vsub.s32 %v702, %v703
        %v705 = vshra.s32 %v704, 1
        %v706 = vadd.s32 %v703, %v705
        %vm707 = vcmp.le.s32.totalorder %v425, %v706
        %v708 = vsel %vm707, 1, 0
        %v709 = vand.u32 %v708, 65535
        %v710 = vshrl.u32 %v708, 16
        %v711 = vcvt.s32.f32 %v709
        %v712 = vcvt.s32.f32 %v710
        %713 = vadd.xlane.f32.xlu0 %v711
        %v714 = vpop.xlane.xlu0 %713
        %715 = vadd.xlane.f32.xlu0 %v712
        %v716 = vpop.xlane.xlu0 %715
        %v717 = vcvt.f32.s32 %v714
        %v718 = vcvt.f32.s32 %v716
        %v719 = vshll.u32 %v718, 16
        %v720 = vadd.s32 %v719, %v717
        %vm721 = vcmp.ge.s32.totalorder %v720, 112
        %v722 = vsel %vm721, %v706, %v702
        %v723 = vsel %vm721, %v703, %v706
        %v724 = vsub.s32 %v722, %v723
        %v725 = vshra.s32 %v724, 1
        %v726 = vadd.s32 %v723, %v725
        %vm727 = vcmp.le.s32.totalorder %v425, %v726
        %v728 = vsel %vm727, 1, 0
        %v729 = vand.u32 %v728, 65535
        %v730 = vshrl.u32 %v728, 16
        %v731 = vcvt.s32.f32 %v729
        %v732 = vcvt.s32.f32 %v730
        %733 = vadd.xlane.f32.xlu0 %v731
        %v734 = vpop.xlane.xlu0 %733
        %735 = vadd.xlane.f32.xlu0 %v732
        %v736 = vpop.xlane.xlu0 %735
        %v737 = vcvt.f32.s32 %v734
        %v738 = vcvt.f32.s32 %v736
        %v739 = vshll.u32 %v738, 16
        %v740 = vadd.s32 %v739, %v737
        %vm741 = vcmp.ge.s32.totalorder %v740, 112
        %v742 = vsel %vm741, %v726, %v722
        %v743 = vsel %vm741, %v723, %v726
        %v744 = vsub.s32 %v742, %v743
        %v745 = vshra.s32 %v744, 1
        %v746 = vadd.s32 %v743, %v745
        %vm747 = vcmp.le.s32.totalorder %v425, %v746
        %v748 = vsel %vm747, 1, 0
        %v749 = vand.u32 %v748, 65535
        %v750 = vshrl.u32 %v748, 16
        %v751 = vcvt.s32.f32 %v749
        %v752 = vcvt.s32.f32 %v750
        %753 = vadd.xlane.f32.xlu0 %v751
        %v754 = vpop.xlane.xlu0 %753
        %755 = vadd.xlane.f32.xlu0 %v752
        %v756 = vpop.xlane.xlu0 %755
        %v757 = vcvt.f32.s32 %v754
        %v758 = vcvt.f32.s32 %v756
        %v759 = vshll.u32 %v758, 16
        %v760 = vadd.s32 %v759, %v757
        %vm761 = vcmp.ge.s32.totalorder %v760, 112
        %v762 = vsel %vm761, %v746, %v742
        %v763 = vsel %vm761, %v743, %v746
        %v764 = vsub.s32 %v762, %v763
        %v765 = vshra.s32 %v764, 1
        %v766 = vadd.s32 %v763, %v765
        %vm767 = vcmp.le.s32.totalorder %v425, %v766
        %v768 = vsel %vm767, 1, 0
        %v769 = vand.u32 %v768, 65535
        %v770 = vshrl.u32 %v768, 16
        %v771 = vcvt.s32.f32 %v769
        %v772 = vcvt.s32.f32 %v770
        %773 = vadd.xlane.f32.xlu0 %v771
        %v774 = vpop.xlane.xlu0 %773
        %775 = vadd.xlane.f32.xlu0 %v772
        %v776 = vpop.xlane.xlu0 %775
        %v777 = vcvt.f32.s32 %v774
        %v778 = vcvt.f32.s32 %v776
        %v779 = vshll.u32 %v778, 16
        %v780 = vadd.s32 %v779, %v777
        %vm781 = vcmp.ge.s32.totalorder %v780, 112
        %v782 = vsel %vm781, %v766, %v762
        %v783 = vsel %vm781, %v763, %v766
        %v784 = vsub.s32 %v782, %v783
        %v785 = vshra.s32 %v784, 1
        %v786 = vadd.s32 %v783, %v785
        %vm787 = vcmp.le.s32.totalorder %v425, %v786
        %v788 = vsel %vm787, 1, 0
        %v789 = vand.u32 %v788, 65535
        %v790 = vshrl.u32 %v788, 16
        %v791 = vcvt.s32.f32 %v789
        %v792 = vcvt.s32.f32 %v790
        %793 = vadd.xlane.f32.xlu0 %v791
        %v794 = vpop.xlane.xlu0 %793
        %795 = vadd.xlane.f32.xlu0 %v792
        %v796 = vpop.xlane.xlu0 %795
        %v797 = vcvt.f32.s32 %v794
        %v798 = vcvt.f32.s32 %v796
        %v799 = vshll.u32 %v798, 16
        %v800 = vadd.s32 %v799, %v797
        %vm801 = vcmp.ge.s32.totalorder %v800, 112
        %v802 = vsel %vm801, %v786, %v782
        %v803 = vsel %vm801, %v783, %v786
        %v804 = vsub.s32 %v802, %v803
        %v805 = vshra.s32 %v804, 1
        %v806 = vadd.s32 %v803, %v805
        %vm807 = vcmp.le.s32.totalorder %v425, %v806
        %v808 = vsel %vm807, 1, 0
        %v809 = vand.u32 %v808, 65535
        %v810 = vshrl.u32 %v808, 16
        %v811 = vcvt.s32.f32 %v809
        %v812 = vcvt.s32.f32 %v810
        %813 = vadd.xlane.f32.xlu0 %v811
        %v814 = vpop.xlane.xlu0 %813
        %815 = vadd.xlane.f32.xlu0 %v812
        %v816 = vpop.xlane.xlu0 %815
        %v817 = vcvt.f32.s32 %v814
        %v818 = vcvt.f32.s32 %v816
        %v819 = vshll.u32 %v818, 16
        %v820 = vadd.s32 %v819, %v817
        %vm821 = vcmp.ge.s32.totalorder %v820, 112
        %v822 = vsel %vm821, %v806, %v802
        %v823 = vsel %vm821, %v803, %v806
        %v824 = vsub.s32 %v822, %v823
        %v825 = vshra.s32 %v824, 1
        %v826 = vadd.s32 %v823, %v825
        %vm827 = vcmp.le.s32.totalorder %v425, %v826
        %v828 = vsel %vm827, 1, 0
        %v829 = vand.u32 %v828, 65535
        %v830 = vshrl.u32 %v828, 16
        %v831 = vcvt.s32.f32 %v829
        %v832 = vcvt.s32.f32 %v830
        %833 = vadd.xlane.f32.xlu0 %v831
        %v834 = vpop.xlane.xlu0 %833
        %835 = vadd.xlane.f32.xlu0 %v832
        %v836 = vpop.xlane.xlu0 %835
        %v837 = vcvt.f32.s32 %v834
        %v838 = vcvt.f32.s32 %v836
        %v839 = vshll.u32 %v838, 16
        %v840 = vadd.s32 %v839, %v837
        %vm841 = vcmp.ge.s32.totalorder %v840, 112
        %v842 = vsel %vm841, %v826, %v822
        %v843 = vsel %vm841, %v823, %v826
        %v844 = vsub.s32 %v842, %v843
        %v845 = vshra.s32 %v844, 1
        %v846 = vadd.s32 %v843, %v845
        %vm847 = vcmp.le.s32.totalorder %v425, %v846
        %v848 = vsel %vm847, 1, 0
        %v849 = vand.u32 %v848, 65535
        %v850 = vshrl.u32 %v848, 16
        %v851 = vcvt.s32.f32 %v849
        %v852 = vcvt.s32.f32 %v850
        %853 = vadd.xlane.f32.xlu0 %v851
        %v854 = vpop.xlane.xlu0 %853
        %855 = vadd.xlane.f32.xlu0 %v852
        %v856 = vpop.xlane.xlu0 %855
        %v857 = vcvt.f32.s32 %v854
        %v858 = vcvt.f32.s32 %v856
        %v859 = vshll.u32 %v858, 16
        %v860 = vadd.s32 %v859, %v857
        %vm861 = vcmp.ge.s32.totalorder %v860, 112
        %v862 = vsel %vm861, %v846, %v842
        %v863 = vsel %vm861, %v843, %v846
        %v864 = vsub.s32 %v862, %v863
        %v865 = vshra.s32 %v864, 1
        %v866 = vadd.s32 %v863, %v865
        %vm867 = vcmp.le.s32.totalorder %v425, %v866
        %v868 = vsel %vm867, 1, 0
        %v869 = vand.u32 %v868, 65535
        %v870 = vshrl.u32 %v868, 16
        %v871 = vcvt.s32.f32 %v869
        %v872 = vcvt.s32.f32 %v870
        %873 = vadd.xlane.f32.xlu0 %v871
        %v874 = vpop.xlane.xlu0 %873
        %875 = vadd.xlane.f32.xlu0 %v872
        %v876 = vpop.xlane.xlu0 %875
        %v877 = vcvt.f32.s32 %v874
        %v878 = vcvt.f32.s32 %v876
        %v879 = vshll.u32 %v878, 16
        %v880 = vadd.s32 %v879, %v877
        %vm881 = vcmp.ge.s32.totalorder %v880, 112
        %v882 = vsel %vm881, %v866, %v862
        %v883 = vsel %vm881, %v863, %v866
        %v884 = vsub.s32 %v882, %v883
        %v885 = vshra.s32 %v884, 1
        %v886 = vadd.s32 %v883, %v885
        %vm887 = vcmp.le.s32.totalorder %v425, %v886
        %v888 = vsel %vm887, 1, 0
        %v889 = vand.u32 %v888, 65535
        %v890 = vshrl.u32 %v888, 16
        %v891 = vcvt.s32.f32 %v889
        %v892 = vcvt.s32.f32 %v890
        %893 = vadd.xlane.f32.xlu0 %v891
        %v894 = vpop.xlane.xlu0 %893
        %895 = vadd.xlane.f32.xlu0 %v892
        %v896 = vpop.xlane.xlu0 %895
        %v897 = vcvt.f32.s32 %v894
        %v898 = vcvt.f32.s32 %v896
        %v899 = vshll.u32 %v898, 16
        %v900 = vadd.s32 %v899, %v897
        %vm901 = vcmp.ge.s32.totalorder %v900, 112
        %v902 = vsel %vm901, %v886, %v882
        %v903 = vsel %vm901, %v883, %v886
        %v904 = vsub.s32 %v902, %v903
        %v905 = vshra.s32 %v904, 1
        %v906 = vadd.s32 %v903, %v905
        %vm907 = vcmp.le.s32.totalorder %v425, %v906
        %v908 = vsel %vm907, 1, 0
        %v909 = vand.u32 %v908, 65535
        %v910 = vshrl.u32 %v908, 16
        %v911 = vcvt.s32.f32 %v909
        %v912 = vcvt.s32.f32 %v910
        %913 = vadd.xlane.f32.xlu0 %v911
        %v914 = vpop.xlane.xlu0 %913
        %915 = vadd.xlane.f32.xlu0 %v912
        %v916 = vpop.xlane.xlu0 %915
        %v917 = vcvt.f32.s32 %v914
        %v918 = vcvt.f32.s32 %v916
        %v919 = vshll.u32 %v918, 16
        %v920 = vadd.s32 %v919, %v917
        %vm921 = vcmp.ge.s32.totalorder %v920, 112
        %v922 = vsel %vm921, %v906, %v902
        %v923 = vsel %vm921, %v903, %v906
        %v924 = vsub.s32 %v922, %v923
        %v925 = vshra.s32 %v924, 1
        %v926 = vadd.s32 %v923, %v925
        %vm927 = vcmp.le.s32.totalorder %v425, %v926
        %v928 = vsel %vm927, 1, 0
        %v929 = vand.u32 %v928, 65535
        %v930 = vshrl.u32 %v928, 16
        %v931 = vcvt.s32.f32 %v929
        %v932 = vcvt.s32.f32 %v930
        %933 = vadd.xlane.f32.xlu0 %v931
        %v934 = vpop.xlane.xlu0 %933
        %935 = vadd.xlane.f32.xlu0 %v932
        %v936 = vpop.xlane.xlu0 %935
        %v937 = vcvt.f32.s32 %v934
        %v938 = vcvt.f32.s32 %v936
        %v939 = vshll.u32 %v938, 16
        %v940 = vadd.s32 %v939, %v937
        %vm941 = vcmp.ge.s32.totalorder %v940, 112
        %v942 = vsel %vm941, %v926, %v922
        %v943 = vsel %vm941, %v923, %v926
        %v944 = vsub.s32 %v942, %v943
        %v945 = vshra.s32 %v944, 1
        %v946 = vadd.s32 %v943, %v945
        %vm947 = vcmp.le.s32.totalorder %v425, %v946
        %v948 = vsel %vm947, 1, 0
        %v949 = vand.u32 %v948, 65535
        %v950 = vshrl.u32 %v948, 16
        %v951 = vcvt.s32.f32 %v949
        %v952 = vcvt.s32.f32 %v950
        %953 = vadd.xlane.f32.xlu0 %v951
        %v954 = vpop.xlane.xlu0 %953
        %955 = vadd.xlane.f32.xlu0 %v952
        %v956 = vpop.xlane.xlu0 %955
        %v957 = vcvt.f32.s32 %v954
        %v958 = vcvt.f32.s32 %v956
        %v959 = vshll.u32 %v958, 16
        %v960 = vadd.s32 %v959, %v957
        %vm961 = vcmp.ge.s32.totalorder %v960, 112
        %v962 = vsel %vm961, %v946, %v942
        %v963 = vsel %vm961, %v943, %v946
        %v964 = vsub.s32 %v962, %v963
        %v965 = vshra.s32 %v964, 1
        %v966 = vadd.s32 %v963, %v965
        %vm967 = vcmp.le.s32.totalorder %v425, %v966
        %v968 = vsel %vm967, 1, 0
        %v969 = vand.u32 %v968, 65535
        %v970 = vshrl.u32 %v968, 16
        %v971 = vcvt.s32.f32 %v969
        %v972 = vcvt.s32.f32 %v970
        %973 = vadd.xlane.f32.xlu0 %v971
        %v974 = vpop.xlane.xlu0 %973
        %975 = vadd.xlane.f32.xlu0 %v972
        %v976 = vpop.xlane.xlu0 %975
        %v977 = vcvt.f32.s32 %v974
        %v978 = vcvt.f32.s32 %v976
        %v979 = vshll.u32 %v978, 16
        %v980 = vadd.s32 %v979, %v977
        %vm981 = vcmp.ge.s32.totalorder %v980, 112
        %v982 = vsel %vm981, %v966, %v962
        %v983 = vsel %vm981, %v963, %v966
        %v984 = vsub.s32 %v982, %v983
        %v985 = vshra.s32 %v984, 1
        %v986 = vadd.s32 %v983, %v985
        %vm987 = vcmp.le.s32.totalorder %v425, %v986
        %v988 = vsel %vm987, 1, 0
        %v989 = vand.u32 %v988, 65535
        %v990 = vshrl.u32 %v988, 16
        %v991 = vcvt.s32.f32 %v989
        %v992 = vcvt.s32.f32 %v990
        %993 = vadd.xlane.f32.xlu0 %v991
        %v994 = vpop.xlane.xlu0 %993
        %995 = vadd.xlane.f32.xlu0 %v992
        %v996 = vpop.xlane.xlu0 %995
        %v997 = vcvt.f32.s32 %v994
        %v998 = vcvt.f32.s32 %v996
        %v999 = vshll.u32 %v998, 16
        %v1000 = vadd.s32 %v999, %v997
        %vm1001 = vcmp.ge.s32.totalorder %v1000, 112
        %v1002 = vsel %vm1001, %v986, %v982
        %v1003 = vsel %vm1001, %v983, %v986
        %v1004 = vsub.s32 %v1002, %v1003
        %v1005 = vshra.s32 %v1004, 1
        %v1006 = vadd.s32 %v1003, %v1005
        %vm1007 = vcmp.le.s32.totalorder %v425, %v1006
        %v1008 = vsel %vm1007, 1, 0
        %v1009 = vand.u32 %v1008, 65535
        %v1010 = vshrl.u32 %v1008, 16
        %v1011 = vcvt.s32.f32 %v1009
        %v1012 = vcvt.s32.f32 %v1010
        %1013 = vadd.xlane.f32.xlu0 %v1011
        %v1014 = vpop.xlane.xlu0 %1013
        %1015 = vadd.xlane.f32.xlu0 %v1012
        %v1016 = vpop.xlane.xlu0 %1015
        %v1017 = vcvt.f32.s32 %v1014
        %v1018 = vcvt.f32.s32 %v1016
        %v1019 = vshll.u32 %v1018, 16
        %v1020 = vadd.s32 %v1019, %v1017
        %vm1021 = vcmp.ge.s32.totalorder %v1020, 112
        %v1022 = vsel %vm1021, %v1006, %v1002
        %vm1023 = vcmp.ge.s32.totalorder %v425, %v1022
        %v1024 = vsel %vm1023, 1, 0
        %v1025 = vcvt.s32.f32 %v1024
        %1026 = vst [vmem:[%s310] sm:$0xff] %v425
        %1027 = vst [vmem:[%s317] sm:$0xff] %v1025
        %v1028 = vpack.c.bf16 %v1025, %v1025
        %v1029 = vld [vmem:[%s3] sm:$0xf]
        %v1030 = vld [vmem:[%s3 + $0x4] sm:$0xf]
        %v1031 = vld [vmem:[%s3 + $0x8] sm:$0xf]
        %v1032 = vld [vmem:[%s3 + $0xc] sm:$0xf]
        %v1033 = vld [vmem:[%s3 + $0x10] sm:$0xf]
        %v1034 = vld [vmem:[%s3 + $0x14] sm:$0xf]
        %v1035 = vld [vmem:[%s3 + $0x18] sm:$0xf]
        %v1036 = vld [vmem:[%s3 + $0x1c] sm:$0xf]
        %v1037 = vld [vmem:[%s3 + $0x20] sm:$0xf]
        %v1038 = vld [vmem:[%s3 + $0x24] sm:$0xf]
        %v1039 = vld [vmem:[%s3 + $0x28] sm:$0xf]
        %v1040 = vld [vmem:[%s3 + $0x2c] sm:$0xf]
        %v1041 = vld [vmem:[%s3 + $0x30] sm:$0xf]
        %v1042 = vld [vmem:[%s3 + $0x34] sm:$0xf]
        %v1043 = vld [vmem:[%s3 + $0x38] sm:$0xf]
        %v1044 = vld [vmem:[%s3 + $0x3c] sm:$0xf]
        %v1061 = vunpack.c.l.b16 %v1029
        %v1062 = vunpack.c.l.b16 %v1030
        %v1063 = vunpack.c.l.b16 %v1031
        %v1064 = vunpack.c.l.b16 %v1032
        %v1065 = vunpack.c.l.b16 %v1033
        %v1066 = vunpack.c.l.b16 %v1034
        %v1067 = vunpack.c.l.b16 %v1035
        %v1068 = vunpack.c.l.b16 %v1036
        %v1069 = vunpack.c.l.b16 %v1037
        %v1070 = vunpack.c.l.b16 %v1038
        %v1071 = vunpack.c.l.b16 %v1039
        %v1072 = vunpack.c.l.b16 %v1040
        %v1073 = vunpack.c.l.b16 %v1041
        %v1074 = vunpack.c.l.b16 %v1042
        %v1075 = vunpack.c.l.b16 %v1043
        %v1076 = vunpack.c.l.b16 %v1044
        %v1077 = vpack.c.b16 %v1062, %v1061
        %v1078 = vpack.c.b16 %v1064, %v1063
        %v1079 = vpack.c.b16 %v1066, %v1065
        %v1080 = vpack.c.b16 %v1068, %v1067
        %v1081 = vpack.c.b16 %v1070, %v1069
        %v1082 = vpack.c.b16 %v1072, %v1071
        %v1083 = vpack.c.b16 %v1074, %v1073
        %v1084 = vpack.c.b16 %v1076, %v1075
        %1093 = vmatprep.subr.bf16.mxu0 0
        %1094 = vmatpush1.bf16.msra.mxu0 %v1084
        %1095 = vmatprep.subr.bf16.mxu0 0
        %1096 = vmatpush1.bf16.msra.mxu0 %v1083
        %1097 = vmatprep.subr.bf16.mxu0 0
        %1098 = vmatpush1.bf16.msra.mxu0 %v1082
        %1099 = vmatprep.subr.bf16.mxu0 0
        %1100 = vmatpush1.bf16.msra.mxu0 %v1081
        %1101 = vmatprep.subr.bf16.mxu0 0
        %1102 = vmatpush1.bf16.msra.mxu0 %v1080
        %1103 = vmatprep.subr.bf16.mxu0 0
        %1104 = vmatpush1.bf16.msra.mxu0 %v1079
        %1105 = vmatprep.subr.bf16.mxu0 0
        %1106 = vmatpush1.bf16.msra.mxu0 %v1078
        %1107 = vmatprep.subr.bf16.mxu0 0
        %1108 = vmatpush1.bf16.msra.mxu0 %v1077
        %1109 = vmatprep.subr.bf16.mxu0 0
        %1110 = vmatpush2.bf16.msra.mxu0 0
        %1111 = vmatprep.subr.bf16.mxu0 0
        %1112 = vmatpush2.bf16.msra.mxu0 0
        %1113 = vmatprep.subr.bf16.mxu0 0
        %1114 = vmatpush2.bf16.msra.mxu0 0
        %1115 = vmatprep.subr.bf16.mxu0 0
        %1116 = vmatpush2.bf16.msra.mxu0 0
        %1117 = vmatprep.subr.bf16.mxu0 0
        %1118 = vmatpush2.bf16.msra.mxu0 0
        %1119 = vmatprep.subr.bf16.mxu0 0
        %1120 = vmatpush2.bf16.msra.mxu0 0
        %1121 = vmatprep.subr.bf16.mxu0 0
        %1122 = vmatpush2.bf16.msra.mxu0 0
        %1123 = vmatprep.subr.bf16.mxu0 0
        %1124 = vmatpush2.bf16.msra.mxu0 0
        %1125 = vmatprep.mubr.bf16.mxu0 0
        %1126 = vmatmul.mubr.bf16.gmra.mxu0 %v1028
        %v1127 = vpop.f32.mrf.mxu0
        %v1128 = vadd.f32 0.0, %v1127
        %v1129 = vpop.f32.mrf.mxu0
        %v1130 = vpop.f32.mrf.mxu0
        %v1131 = vpop.f32.mrf.mxu0
        %1132 = vdwg.mxu0
        %1133 = vst.msk [vmem:[%s303] sm:$0xff] %vm376, %v1128
        %s1134 = smul.u32 %s29, 8
        %v1135 = vlaneseq
        %v1136 = vshrl.u32 %v1135, 7
        %v1137 = vstv %s1134
        %v1138 = vadd.s32 %v1137, %v1136
        %vm1139 = vcmp.lt.s32.totalorder %v1138, 16
        %v1140 = vsub.f32 %v425, %v1025
        %v1141 = vsub.f32 %v1128, %v335
        %v1142 = vmul.f32 %v1140, %v1140
        %v1143 = vsel %vm1139, 1, 0
        %vm1144 = vcmp.eq.s32.totalorder %v1143, 1
        %v1145 = vsel %vm1144, %v1142, 0.0
        %v1146 = vrot.slane %v1145, 4
        %v1147 = vadd.f32 %v1145, %v1146
        %v1148 = vrot.slane %v1147, 2
        %v1149 = vadd.f32 %v1147, %v1148
        %v1150 = vrot.slane %v1149, 1
        %v1151 = vadd.f32 %v1149, %v1150
        %v1152 = vmul.f32 %v1141, %v1141
        %v1153 = vsel %vm1144, %v1152, 0.0
        %v1154 = vsel %vm376, %v1153, 0.0
        %v1155 = vrot.slane %v1154, 4
        %v1156 = vadd.f32 %v1154, %v1155
        %v1157 = vrot.slane %v1156, 2
        %v1158 = vadd.f32 %v1156, %v1157
        %v1159 = vrot.slane %v1158, 1
        %v1160 = vadd.f32 %v1158, %v1159
        %1161 = vst [vmem:[%s323] sm:$0x1] %v1151
        %vm1162 = vcmask 516096
        %1163 = vst.msk [vmem:[%s329] sm:$0x1] %vm1162, %v1160
        %s1164 = sand.u32 %s126, 1
        %s1165 = scalar_lea.sflag [#allocation3], %s1164
        %s1166 = sand.u32 %s126, 1
        %s1167 = smul.addr %s1166, 8
        %s1168 = scalar_lea.vmem [#allocation2], %s1167
        %s1169 = sand.u32 %s29, 1
        %s1170 = scalar_lea.sflag [#allocation5], %s1169
        %s1171 = sand.u32 %s152, 1
        %s1172 = smul.addr %s1171, 8
        %s1173 = scalar_lea.vmem [#allocation4], %s1172
        %s1174 = sand.u32 %s29, 1
        %s1175 = scalar_lea.sflag [#allocation5], %s1174
        %s1176 = sand.u32 %s178, 1
        %s1177 = smul.addr %s1176, 8
        %s1178 = scalar_lea.vmem [#allocation6], %s1177
        %s1179 = sand.u32 %s29, 1
        %s1180 = scalar_lea.sflag [#allocation8], %s1179
        %s1181 = sand.u32 %s204, 1
        %s1182 = scalar_lea.vmem [#allocation7], %s1181
        %s1183 = sand.u32 %s29, 1
        %s1184 = scalar_lea.sflag [#allocation8], %s1183
        %s1185 = sand.u32 %s230, 1
        %s1186 = scalar_lea.vmem [#allocation9], %s1185
        // Predicated region
        $region37: #{tpu_custom_call.1} parent=35 // pred_check
          %p1187 = pneg %p136
        $region38: #{tpu_custom_call.1} parent=35 // pred_check_branch
          %1189 = sbr.rel (%p1187) target = $region40
        $region39: #{tpu_custom_call.1} parent=35 // pred_region
          %s1191 = ssub.s32 128, 128
          %1192 = vsyncadd %s1165, %s1191
          %s1193 = smul.addr %s29, 128
          %s1194 = scalar_lea.hbm %s4, %s1193
          %s1196 = sshll.u32 %s1168, 4
          %s1197 = int_to_ptr.vmem [resolvable:$true] %s1196
          %1199 = dma.vmem_to_hbm [thread:$0]  %s1197, 128, %s1194, %s1165
        $region40: #{tpu_custom_call.1} parent=35 // pred_fallthru
          _
        // Predicated region
        $region41: #{tpu_custom_call.1} parent=35 // pred_check
          %p1200 = pneg %p162
        $region42: #{tpu_custom_call.1} parent=35 // pred_check_branch
          %1202 = sbr.rel (%p1200) target = $region44
        $region43: #{tpu_custom_call.1} parent=35 // pred_region
          %s1204 = ssub.s32 128, 128
          %1205 = vsyncadd %s1170, %s1204
          %s1206 = smul.addr %s29, 128
          %s1207 = scalar_lea.hbm %s5, %s1206
          %s1209 = sshll.u32 %s1173, 4
          %s1210 = int_to_ptr.vmem [resolvable:$true] %s1209
          %1212 = dma.vmem_to_hbm [thread:$0]  %s1210, 128, %s1207, %s1170
        $region44: #{tpu_custom_call.1} parent=35 // pred_fallthru
          _
        // Predicated region
        $region45: #{tpu_custom_call.1} parent=35 // pred_check
          %p1213 = pneg %p188
        $region46: #{tpu_custom_call.1} parent=35 // pred_check_branch
          %1215 = sbr.rel (%p1213) target = $region48
        $region47: #{tpu_custom_call.1} parent=35 // pred_region
          %s1217 = ssub.s32 128, 128
          %1218 = vsyncadd %s1175, %s1217
          %s1219 = smul.addr %s29, 128
          %s1220 = scalar_lea.hbm %s6, %s1219
          %s1222 = sshll.u32 %s1178, 4
          %s1223 = int_to_ptr.vmem [resolvable:$true] %s1222
          %1225 = dma.vmem_to_hbm [thread:$0]  %s1223, 128, %s1220, %s1175
        $region48: #{tpu_custom_call.1} parent=35 // pred_fallthru
          _
        // Predicated region
        $region49: #{tpu_custom_call.1} parent=35 // pred_check
          %p1226 = pneg %p214
        $region50: #{tpu_custom_call.1} parent=35 // pred_check_branch
          %1228 = sbr.rel (%p1226) target = $region52
        $region51: #{tpu_custom_call.1} parent=35 // pred_region
          %s1230 = ssub.s32 16, 16
          %1231 = vsyncadd %s1180, %s1230
          %s1232 = smul.addr %s29, 16
          %s1233 = scalar_lea.hbm %s7, %s1232
          %s1235 = sshll.u32 %s1182, 4
          %s1236 = int_to_ptr.vmem [resolvable:$true] %s1235
          %1238 = dma.vmem_to_hbm [thread:$0]  %s1236, 16, %s1233, %s1180
        $region52: #{tpu_custom_call.1} parent=35 // pred_fallthru
          _
        // Predicated region
        $region53: #{tpu_custom_call.1} parent=35 // pred_check
          %p1239 = pneg %p240
        $region54: #{tpu_custom_call.1} parent=35 // pred_check_branch
          %1241 = sbr.rel (%p1239) target = $region56
        $region55: #{tpu_custom_call.1} parent=35 // pred_region
          %s1243 = ssub.s32 16, 16
          %1244 = vsyncadd %s1184, %s1243
          %s1245 = smul.addr %s29, 16
          %s1246 = scalar_lea.hbm %s8, %s1245
          %s1248 = sshll.u32 %s1186, 4
          %s1249 = int_to_ptr.vmem [resolvable:$true] %s1248
          %1251 = dma.vmem_to_hbm [thread:$0]  %s1249, 16, %s1246, %s1184
        $region56: #{tpu_custom_call.1} parent=35 // pred_fallthru
          _
      $region36: #{tpu_custom_call.1} parent=5 // pred_fallthru
        _
      %p1252 = scmp.le.s32.totalorder 2, %s24
      // Predicated region
      $region57: #{tpu_custom_call.1} parent=5 // pred_check
        %p1253 = pneg %p1252
      $region58: #{tpu_custom_call.1} parent=5 // pred_check_branch
        %1255 = sbr.rel (%p1253) target = $region60
      $region59: #{tpu_custom_call.1} parent=5 // pred_region
        %s1256 = ssub.s32 %s24, 2
        // Predicated region
        $region61: #{tpu_custom_call.1} parent=59 // pred_check
          %p1257 = pneg %p142
        $region62: #{tpu_custom_call.1} parent=59 // pred_check_branch
          %1259 = sbr.rel (%p1257) target = $region64
        $region63: #{tpu_custom_call.1} parent=59 // pred_region
          %s1260 = sand.u32 %s127, 1
          %s1261 = scalar_lea.sflag [#allocation3], %s1260
          %s1262 = sand.u32 %s127, 1
          %s1263 = smul.addr %s1262, 8
          %s1264 = scalar_lea.vmem [#allocation2], %s1263
          %1265 = dma.done %s1261, 128
        $region64: #{tpu_custom_call.1} parent=59 // pred_fallthru
          _
        // Predicated region
        $region65: #{tpu_custom_call.1} parent=59 // pred_check
          %p1266 = pneg %p168
        $region66: #{tpu_custom_call.1} parent=59 // pred_check_branch
          %1268 = sbr.rel (%p1266) target = $region68
        $region67: #{tpu_custom_call.1} parent=59 // pred_region
          %s1269 = sand.u32 %s30, 1
          %s1270 = scalar_lea.sflag [#allocation5], %s1269
          %s1271 = sand.u32 %s153, 1
          %s1272 = smul.addr %s1271, 8
          %s1273 = scalar_lea.vmem [#allocation4], %s1272
          %1274 = dma.done %s1270, 128
        $region68: #{tpu_custom_call.1} parent=59 // pred_fallthru
          _
        // Predicated region
        $region69: #{tpu_custom_call.1} parent=59 // pred_check
          %p1275 = pneg %p194
        $region70: #{tpu_custom_call.1} parent=59 // pred_check_branch
          %1277 = sbr.rel (%p1275) target = $region72
        $region71: #{tpu_custom_call.1} parent=59 // pred_region
          %s1278 = sand.u32 %s30, 1
          %s1279 = scalar_lea.sflag [#allocation5], %s1278
          %s1280 = sand.u32 %s179, 1
          %s1281 = smul.addr %s1280, 8
          %s1282 = scalar_lea.vmem [#allocation6], %s1281
          %1283 = dma.done %s1279, 128
        $region72: #{tpu_custom_call.1} parent=59 // pred_fallthru
          _
        // Predicated region
        $region73: #{tpu_custom_call.1} parent=59 // pred_check
          %p1284 = pneg %p220
        $region74: #{tpu_custom_call.1} parent=59 // pred_check_branch
          %1286 = sbr.rel (%p1284) target = $region76
        $region75: #{tpu_custom_call.1} parent=59 // pred_region
          %s1287 = sand.u32 %s30, 1
          %s1288 = scalar_lea.sflag [#allocation8], %s1287
          %s1289 = sand.u32 %s205, 1
          %s1290 = scalar_lea.vmem [#allocation7], %s1289
          %1291 = dma.done %s1288, 16
        $region76: #{tpu_custom_call.1} parent=59 // pred_fallthru
          _
        // Predicated region
        $region77: #{tpu_custom_call.1} parent=59 // pred_check
          %p1292 = pneg %p246
        $region78: #{tpu_custom_call.1} parent=59 // pred_check_branch
          %1294 = sbr.rel (%p1292) target = $region80
        $region79: #{tpu_custom_call.1} parent=59 // pred_region
          %s1295 = sand.u32 %s30, 1
          %s1296 = scalar_lea.sflag [#allocation8], %s1295
          %s1297 = sand.u32 %s231, 1
          %s1298 = scalar_lea.vmem [#allocation9], %s1297
          %1299 = dma.done %s1296, 16
        $region80: #{tpu_custom_call.1} parent=59 // pred_fallthru
          _
      $region60: #{tpu_custom_call.1} parent=5 // pred_fallthru
        _
    $region6: #{tpu_custom_call.1} parent=1 // loop_footer
      %s28 = sadd.s32 1, %s24
    $region7: #{tpu_custom_call.1} parent=1 // loop_footer_branch
      %23 = sbr.rel target = $region3
    $region8: #{tpu_custom_call.1} parent=1 // loop_exit
      _
    %1300 = vsyncpa [#allocation3], 1
    %s1301 = scalar_lea.sflag [#allocation3], 1
    %1302 = vsyncpa %s1301, 1
    %1303 = vsyncpa [#allocation5], 1
    %s1304 = scalar_lea.sflag [#allocation5], 1
    %1305 = vsyncpa %s1304, 1
    %1306 = vsyncpa [#allocation8], 1
    %s1307 = scalar_lea.sflag [#allocation8], 1
    %1308 = vsyncpa %s1307, 1

</llo_original>
